<compile_context>
chip_gen: v6e
topology: v6e:2x2x1
jax: 0.10.0
libtpu: 0.0.40
codegen_flags: <defaults>
</compile_context>

<pallas_src>
import jax
import jax.numpy as jnp
from jax import lax
from jax.experimental import pallas as pl
from jax.experimental.pallas import tpu as pltpu  # noqa: F401  (TPU backend)


_CONV2_KSIZE = (3, 13, 3)
_CONV2_STRIDE = (2, 1, 2)
_CONV2_PAD = (1, 1, 1)
_BN_EPS = 0.01          # the module constructs BatchNorm3d(base, eps=0.01)


def _round_up(n, m):
    return (n + m - 1) // m * m


# ---------------------------------------------------------------------------
# Fused Pallas kernel (single invocation, all three stems):
#   ReLU(conv1 patches) -> conv2 GEMM (bf16 MXU, f32 acc) -> ReLU
#   -> training-mode BatchNorm3d (single-pass stats, eps=0.01)
#   -> channel-concat of the stems into one lane-contiguous store.
# ---------------------------------------------------------------------------
def _fused_stems_kernel(p_ref, w_ref, o_ref):
    # p_ref: (3, M, Kp) bf16  pre-ReLU conv1-output patches (K zero-padded)
    # w_ref: (3, C, Kp) bf16  conv2 weights, lane-dense (K on the lane axis)
    # o_ref: (M, 3*C)   f32   normalized stems, channel-concatenated
    p = jnp.maximum(p_ref[...], 0)          # ReLU after conv1 (zero pad stays 0)
    # All three stem GEMMs as one batched MXU contraction, f32 accumulation.
    z = jnp.einsum("smk,sck->smc", p, w_ref[...],
                   preferred_element_type=jnp.float32)
    z = jnp.maximum(z, 0.0)                 # ReLU after conv2
    # BatchNorm3d, training mode, default affine, biased variance.
    # Single pass: sum and sum-of-squares per (stem, channel).
    inv_m = 1.0 / z.shape[1]
    s1 = jnp.sum(z, axis=1, keepdims=True)
    s2 = jnp.sum(z * z, axis=1, keepdims=True)
    mean = s1 * inv_m
    var = s2 * inv_m - mean * mean
    zn = (z - mean) * lax.rsqrt(var + _BN_EPS)
    # (3, M, C) -> (M, 3C): stems concatenated along the lane (channel) axis.
    o_ref[...] = jnp.concatenate(
        [zn[s] for s in range(zn.shape[0])], axis=-1).astype(o_ref.dtype)


def fused_stems(patches, w2mats):
    """patches: (3, M, Kp) bf16; w2mats: (3, C, Kp) bf16  ->  (M, 3C) f32."""
    s, m, kp = patches.shape
    c = w2mats.shape[1]
    return pl.pallas_call(
        _fused_stems_kernel,
        out_shape=jax.ShapeDtypeStruct((m, s * c), jnp.float32),
        grid=(1,),                                    # single kernel invocation
        in_specs=[
            pl.BlockSpec((s, m, kp), lambda i: (0, 0, 0)),
            pl.BlockSpec((s, c, kp), lambda i: (0, 0, 0)),
        ],
        out_specs=pl.BlockSpec((m, s * c), lambda i: (0, 0)),
    )(patches, w2mats)


# ---------------------------------------------------------------------------
# JAX glue: im2col for the (3,13,3)/stride(2,1,2) conv, run ONCE for all stems.
# TODO(synk): a fully in-kernel im2col (streaming y1 into VMEM and building
# patch rows with pl.ds slices) was left out: the (3,13,3) windows at these
# non-(8,128)-aligned shapes would need many Mosaic relayouts per row.
# ---------------------------------------------------------------------------
def _stack_slices(x, axis, k, stride, out_len, stack_axis):
    parts = []
    for off in range(k):
        idx = [slice(None)] * x.ndim
        idx[axis] = slice(off, off + (out_len - 1) * stride + 1, stride)
        parts.append(x[tuple(idx)])
    return jnp.stack(parts, axis=stack_axis)


def im2col_3d(x, ksize, stride, padding):
    # x: (N, D, H, W, C) channels-last.  Patch columns are ordered
    # (kd, kh, kw, c), matching w.reshape(kd*kh*kw*Cin, Cout).
    kd, kh, kw = ksize
    sd, sh, sw = stride
    pd, ph, pw = padding
    xp = jnp.pad(x, ((0, 0), (pd, pd), (ph, ph), (pw, pw), (0, 0)))
    N, Dp, Hp, Wp, C = xp.shape
    Do = (Dp - kd) // sd + 1
    Ho = (Hp - kh) // sh + 1
    Wo = (Wp - kw) // sw + 1
    t = _stack_slices(xp, 1, kd, sd, Do, 2)          # (N, Do, kd, Hp, Wp, C)
    t = _stack_slices(t, 3, kh, sh, Ho, 4)           # (N, Do, kd, Ho, kh, Wp, C)
    t = _stack_slices(t, 5, kw, sw, Wo, 6)           # (N, Do, kd, Ho, kh, Wo, kw, C)
    t = jnp.transpose(t, (0, 1, 3, 5, 2, 4, 6, 7))   # (N, Do, Ho, Wo, kd, kh, kw, C)
    return t.reshape(N * Do * Ho * Wo, kd * kh * kw * C), (N, Do, Ho, Wo)


# ---------------------------------------------------------------------------
# S1 forward
# ---------------------------------------------------------------------------
def prepare_conv2_gemm_weights(params):
    """Stacked conv2 weights as (3, C, Kp) bf16: K (=kd*kh*kw*Cin) on the lane
    axis, zero-padded to a multiple of 128.  Precompute once per model."""
    mats = []
    for name in ("a", "b", "c"):
        w2 = params[name][1]                                       # (3,13,3,Cin,Cout)
        mats.append(jnp.transpose(w2.reshape(-1, w2.shape[-1])))   # (Cout, K)
    w = jnp.stack(mats)                                            # (3, C, K)
    kp = _round_up(w.shape[-1], 128)
    w = jnp.pad(w, ((0, 0), (0, 0), (0, kp - w.shape[-1])))
    return w.astype(jnp.bfloat16)


def s1_forward(params, x_ncdhw, w2_mats=None):
    if w2_mats is None:
        w2_mats = prepare_conv2_gemm_weights(params)
    x = jnp.transpose(x_ncdhw, (0, 2, 3, 4, 1))                    # NCDHW -> NDHWC
    y1 = []
    for name, pad1 in (("a", 5), ("b", 3), ("c", 1)):
        w1 = params[name][0]
        # TODO(synk): conv1 stays on XLA's native conv (per perf review); a
        # Pallas im2col of an 11^3 kernel would inflate the input ~1331x in HBM.
        y1.append(lax.conv_general_dilated(
            x, w1, (1, 1, 1), [(pad1, pad1)] * 3,
            dimension_numbers=("NDHWC", "DHWIO", "NDHWC")))
    y1 = jnp.stack(y1)                                             # (3, N, D, H, W, C)
    S, N = y1.shape[0], y1.shape[1]
    C = y1.shape[-1]
    # One im2col for all three stems (stem axis folded into the batch).
    patches, (_, Do, Ho, Wo) = im2col_3d(
        y1.reshape((S * N,) + y1.shape[2:]),
        _CONV2_KSIZE, _CONV2_STRIDE, _CONV2_PAD)
    M = N * Do * Ho * Wo
    K = patches.shape[-1]
    Kp = w2_mats.shape[-1]                 # K zero-padded (936 -> 1024 here)
    P = jnp.pad(patches.reshape(S, M, K), ((0, 0), (0, 0), (0, Kp - K)))
    P = P.astype(jnp.bfloat16)             # bf16 MXU operands, f32 accumulation
    Y = fused_stems(P, w2_mats)            # (M, 3C) f32 -- single pallas_call
    # (M, 3C) -> NCDHW: one (free) reshape + one transpose.
    y = Y.reshape(N, Do, Ho, Wo, S * C)
    return jnp.transpose(y, (0, 4, 1, 2, 3))


# Pure-XLA f32 reference (no Pallas) for a correctness cross-check.
def s1_forward_reference(params, x_ncdhw):
    x = jnp.transpose(x_ncdhw, (0, 2, 3, 4, 1))
    outs = []
    for name, pad1 in (("a", 5), ("b", 3), ("c", 1)):
        w1, w2 = params[name]
        y = lax.conv_general_dilated(
            x, w1, (1, 1, 1), [(pad1, pad1)] * 3,
            dimension_numbers=("NDHWC", "DHWIO", "NDHWC"))
        y = jnp.maximum(y, 0.0)
        y = lax.conv_general_dilated(
            y, w2, _CONV2_STRIDE, [(1, 1)] * 3,
            dimension_numbers=("NDHWC", "DHWIO", "NDHWC"))
        y = jnp.maximum(y, 0.0)
        mean = jnp.mean(y, axis=(0, 1, 2, 3), keepdims=True)
        var = jnp.mean(jnp.square(y - mean), axis=(0, 1, 2, 3), keepdims=True)
        outs.append((y - mean) * lax.rsqrt(var + _BN_EPS))
    y = jnp.concatenate(outs, axis=-1)
    return jnp.transpose(y, (0, 4, 1, 2, 3))


def init_params(key, in_size, base):
    # Weights generated directly in DHWIO layout (kd, kh, kw, Cin, Cout).
    ks = {"a": 11, "b": 7, "c": 3}
    params = {}
    for i, (name, k) in enumerate(ks.items()):
        k1, k2 = jax.random.split(jax.random.fold_in(key, i))
        fan1 = in_size * k ** 3
        w1 = jax.random.normal(k1, (k, k, k, in_size, base),
                               jnp.float32) / jnp.sqrt(float(fan1))
        fan2 = base * 3 * 13 * 3
        w2 = jax.random.normal(k2, (3, 13, 3, base, base),
                               jnp.float32) / jnp.sqrt(float(fan2))
        params[name] = (w1, w2)
    return params


if __name__ == "__main__":
    key = jax.random.PRNGKey(0)
    in_size, base = 2, 8
    N, D, H, W = 2, 4, 13, 4          # H + 2 >= 13 required by the (3,13,3) conv
    x = jax.random.normal(jax.random.fold_in(key, 100),
                          (N, in_size, D, H, W), jnp.float32)
    params = init_params(key, in_size, base)
    w2_mats = prepare_conv2_gemm_weights(params)   # hoisted out of the jit

    out = jax.jit(s1_forward)(params, x, w2_mats)
    jax.block_until_ready(out)

    # Expected: D: (4+2-3)//2+1 = 2, H: 13+2-13+1 = 3, W: (4+2-3)//2+1 = 2
    assert out.shape == (N, 3 * base, 2, 3, 2), out.shape

    # Cross-check vs. a pure-XLA f32 reference.  Kernel uses bf16 GEMM
    # operands and outputs are BatchNorm-normalized (O(1)) -> loose tolerance.
    ref = jax.jit(s1_forward_reference)(params, x)
    jax.block_until_ready(ref)
    err = float(jnp.max(jnp.abs(out - ref)))
    assert err < 1e-1, err
    print("KERNEL_OK")
</pallas_src>

<mosaic_0001>
module attributes {stable_mosaic.version = 11 : i64} {
  func.func @_fused_stems_kernel(%arg0: i32, %arg1: memref<3x24x1024xbf16, #tpu.memory_space<vmem>>, %arg2: memref<3x8x1024xbf16, #tpu.memory_space<vmem>>, %arg3: memref<24x24xf32, #tpu.memory_space<vmem>>) attributes {dimension_semantics = [#tpu.dimension_semantics<arbitrary>], iteration_bounds = array<i64: 1>, scalar_prefetch = 0 : i64, scratch_operands = 0 : i64, tpu.core_type = #tpu.core_type<tc>, window_params = [{pipeline_mode = #tpu.pipeline_mode<synchronous>, transform_indices = @transform_0, window_bounds = array<i64: 3, 24, 1024>}, {pipeline_mode = #tpu.pipeline_mode<synchronous>, transform_indices = @transform_1, window_bounds = array<i64: 3, 8, 1024>}, {pipeline_mode = #tpu.pipeline_mode<synchronous>, transform_indices = @transform_2, window_bounds = array<i64: 24, 24>}]} {
    %c0 = arith.constant 0 : index
    %c0_0 = arith.constant 0 : index
    %c0_1 = arith.constant 0 : index
    %0 = vector.load %arg1[%c0, %c0_0, %c0_1] : memref<3x24x1024xbf16, #tpu.memory_space<vmem>>, vector<3x24x1024xbf16>
    %cst = arith.constant 0.000000e+00 : bf16
    %1 = vector.broadcast %cst : bf16 to vector<3x24x1024xbf16>
    %2 = arith.maximumf %0, %1 : vector<3x24x1024xbf16>
    %c0_2 = arith.constant 0 : index
    %c0_3 = arith.constant 0 : index
    %c0_4 = arith.constant 0 : index
    %3 = vector.load %arg2[%c0_2, %c0_3, %c0_4] : memref<3x8x1024xbf16, #tpu.memory_space<vmem>>, vector<3x8x1024xbf16>
    "tpu.trace_start"() <{level = 10 : i32, message = "smk,sck->smc"}> : () -> ()
    %cst_5 = arith.constant dense<0.000000e+00> : vector<3x24x8xf32>
    %4 = tpu.matmul %2, %3, %cst_5 {dimension_numbers = #tpu.dot_dimension_numbers<[2], [2], [1], [1], [0, 0, 0, 1, 1, 1], [0], [0]>} : vector<3x24x1024xbf16>, vector<3x8x1024xbf16>, vector<3x24x8xf32> -> vector<3x24x8xf32>
    "tpu.trace_stop"() : () -> ()
    %cst_6 = arith.constant 0.000000e+00 : f32
    %5 = vector.broadcast %cst_6 : f32 to vector<3x24x8xf32>
    %6 = arith.maximumf %4, %5 : vector<3x24x8xf32>
    %cst_7 = arith.constant dense<0.000000e+00> : vector<3x8xf32>
    %7 = vector.multi_reduction <add>, %6, %cst_7 [1] : vector<3x24x8xf32> to vector<3x8xf32>
    %8 = vector.shape_cast %7 : vector<3x8xf32> to vector<3x1x8xf32>
    %9 = arith.mulf %6, %6 : vector<3x24x8xf32>
    %cst_8 = arith.constant dense<0.000000e+00> : vector<3x8xf32>
    %10 = vector.multi_reduction <add>, %9, %cst_8 [1] : vector<3x24x8xf32> to vector<3x8xf32>
    %11 = vector.shape_cast %10 : vector<3x8xf32> to vector<3x1x8xf32>
    %cst_9 = arith.constant 0.0416666679 : f32
    %12 = vector.broadcast %cst_9 : f32 to vector<3x1x8xf32>
    %13 = arith.mulf %8, %12 : vector<3x1x8xf32>
    %cst_10 = arith.constant 0.0416666679 : f32
    %14 = vector.broadcast %cst_10 : f32 to vector<3x1x8xf32>
    %15 = arith.mulf %11, %14 : vector<3x1x8xf32>
    %16 = arith.mulf %13, %13 : vector<3x1x8xf32>
    %17 = arith.subf %15, %16 : vector<3x1x8xf32>
    %18 = vector.broadcast %13 : vector<3x1x8xf32> to vector<3x24x8xf32>
    %19 = arith.subf %6, %18 : vector<3x24x8xf32>
    %cst_11 = arith.constant 0.00999999977 : f32
    %20 = vector.broadcast %cst_11 : f32 to vector<3x1x8xf32>
    %21 = arith.addf %17, %20 : vector<3x1x8xf32>
    %22 = math.rsqrt %21 : vector<3x1x8xf32>
    %23 = vector.broadcast %22 : vector<3x1x8xf32> to vector<3x24x8xf32>
    %24 = arith.mulf %19, %23 : vector<3x24x8xf32>
    %25 = vector.extract_strided_slice %24 {offsets = [0, 0, 0], sizes = [1, 24, 8], strides = [1, 1, 1]} : vector<3x24x8xf32> to vector<1x24x8xf32>
    %26 = vector.shape_cast %25 : vector<1x24x8xf32> to vector<24x8xf32>
    %27 = vector.extract_strided_slice %24 {offsets = [1, 0, 0], sizes = [1, 24, 8], strides = [1, 1, 1]} : vector<3x24x8xf32> to vector<1x24x8xf32>
    %28 = vector.shape_cast %27 : vector<1x24x8xf32> to vector<24x8xf32>
    %29 = vector.extract_strided_slice %24 {offsets = [2, 0, 0], sizes = [1, 24, 8], strides = [1, 1, 1]} : vector<3x24x8xf32> to vector<1x24x8xf32>
    %30 = vector.shape_cast %29 : vector<1x24x8xf32> to vector<24x8xf32>
    %31 = tpu.concatenate %26, %28, %30 in 1 : vector<24x8xf32>, vector<24x8xf32>, vector<24x8xf32> -> vector<24x24xf32>
    %c0_12 = arith.constant 0 : index
    %c0_13 = arith.constant 0 : index
    %32 = vector.load %arg3[%c0_12, %c0_13] : memref<24x24xf32, #tpu.memory_space<vmem>>, vector<24x24xf32>
    tpu.vector_store %arg3[%c0_12, %c0_13], %31 {strides = array<i32>} : memref<24x24xf32, #tpu.memory_space<vmem>>, vector<24x24xf32>,
    return
  }
  func.func @transform_0(%arg0: i32) -> (i32, i32, i32) {
    %c0_i32 = arith.constant 0 : i32
    %c0_i32_0 = arith.constant 0 : i32
    %c0_i32_1 = arith.constant 0 : i32
    %c0_i32_2 = arith.constant 0 : i32
    return %c0_i32, %c0_i32_0, %c0_i32_1 : i32, i32, i32
  }
  func.func @transform_1(%arg0: i32) -> (i32, i32, i32) {
    %c0_i32 = arith.constant 0 : i32
    %c0_i32_0 = arith.constant 0 : i32
    %c0_i32_1 = arith.constant 0 : i32
    %c0_i32_2 = arith.constant 0 : i32
    return %c0_i32, %c0_i32_0, %c0_i32_1 : i32, i32, i32
  }
  func.func @transform_2(%arg0: i32) -> (i32, i32) {
    %c0_i32 = arith.constant 0 : i32
    %c0_i32_0 = arith.constant 0 : i32
    %c0_i32_1 = arith.constant 0 : i32
    return %c0_i32, %c0_i32_0 : i32, i32
  }
}

</mosaic_0001>

<llo_original>
// kernel: reverse.1
$region0: #{reverse.1}
  #allocation2 [shape = 's32[1]{0}', space=sflag, size = 0x4, scoped, tag = 'scoped memory for reverse.1']
  %s0 = inlined_call_operand.hbm [shape: f32[7,7,7,2,8], index: 0, kind: input, shape index: {}]
  %s1 = inlined_call_operand.vmem [shape: bf16[7,7,7,2,8], index: 1, kind: output, shape index: {}]
  $region1: #{reverse.1} parent=0
    #allocation0 [shape = 'u8[351232]{0}', space=vmem, size = 0x55c00, scoped, tag = 'operand span for operand 0']
    #allocation1 [shape = 's32[1]{0}', space=sflag, size = 0x4, scoped, tag = 'scoped memory for reverse.1']
    %2 = vsyncpa [#allocation1], 0
    %s4 = ssub.s32 10976, 10976
    %5 = vsyncadd [#allocation1], %s4
    %s6 = sshll.u32 [#allocation0], 4
    %s7 = int_to_ptr.vmem [resolvable:$true] %s6
    %12 = dma.hbm_to_vmem [thread:$0]  %s0, 10976, %s7, [#allocation1], 32, 32, 2
    %13 = dma.done [#allocation1], 10976
    %s14 = scalar_lea.vmem [#allocation0], 684
    %v15 = vld [vmem:[%s14] sm:$0x3]
    %v16 = vpack.c.bf16 0.0, %v15
    %17 = vst [vmem:[%s1] sm:$0x1] %v16
    %s18 = scalar_lea.vmem [#allocation0], 586
    %v19 = vld [vmem:[%s18] sm:$0x3]
    %s20 = scalar_lea.vmem %s1, 49
    %v21 = vpack.c.bf16 0.0, %v19
    %22 = vst [vmem:[%s20] sm:$0x1] %v21
    %s23 = scalar_lea.vmem [#allocation0], 488
    %v24 = vld [vmem:[%s23] sm:$0x3]
    %s25 = scalar_lea.vmem %s1, 98
    %v26 = vpack.c.bf16 0.0, %v24
    %27 = vst [vmem:[%s25] sm:$0x1] %v26
    %s28 = scalar_lea.vmem [#allocation0], 390
    %v29 = vld [vmem:[%s28] sm:$0x3]
    %s30 = scalar_lea.vmem %s1, 147
    %v31 = vpack.c.bf16 0.0, %v29
    %32 = vst [vmem:[%s30] sm:$0x1] %v31
    %s33 = scalar_lea.vmem [#allocation0], 292
    %v34 = vld [vmem:[%s33] sm:$0x3]
    %s35 = scalar_lea.vmem %s1, 196
    %v36 = vpack.c.bf16 0.0, %v34
    %37 = vst [vmem:[%s35] sm:$0x1] %v36
    %s38 = scalar_lea.vmem [#allocation0], 194
    %v39 = vld [vmem:[%s38] sm:$0x3]
    %s40 = scalar_lea.vmem %s1, 245
    %v41 = vpack.c.bf16 0.0, %v39
    %42 = vst [vmem:[%s40] sm:$0x1] %v41
    %s43 = scalar_lea.vmem [#allocation0], 96
    %v44 = vld [vmem:[%s43] sm:$0x3]
    %s45 = scalar_lea.vmem %s1, 294
    %v46 = vpack.c.bf16 0.0, %v44
    %47 = vst [vmem:[%s45] sm:$0x1] %v46
    %s48 = scalar_lea.vmem [#allocation0], 670
    %v49 = vld [vmem:[%s48] sm:$0x3]
    %s50 = scalar_lea.vmem %s1, 7
    %v51 = vpack.c.bf16 0.0, %v49
    %52 = vst [vmem:[%s50] sm:$0x1] %v51
    %s53 = scalar_lea.vmem [#allocation0], 572
    %v54 = vld [vmem:[%s53] sm:$0x3]
    %s55 = scalar_lea.vmem %s1, 56
    %v56 = vpack.c.bf16 0.0, %v54
    %57 = vst [vmem:[%s55] sm:$0x1] %v56
    %s58 = scalar_lea.vmem [#allocation0], 474
    %v59 = vld [vmem:[%s58] sm:$0x3]
    %s60 = scalar_lea.vmem %s1, 105
    %v61 = vpack.c.bf16 0.0, %v59
    %62 = vst [vmem:[%s60] sm:$0x1] %v61
    %s63 = scalar_lea.vmem [#allocation0], 376
    %v64 = vld [vmem:[%s63] sm:$0x3]
    %s65 = scalar_lea.vmem %s1, 154
    %v66 = vpack.c.bf16 0.0, %v64
    %67 = vst [vmem:[%s65] sm:$0x1] %v66
    %s68 = scalar_lea.vmem [#allocation0], 278
    %v69 = vld [vmem:[%s68] sm:$0x3]
    %s70 = scalar_lea.vmem %s1, 203
    %v71 = vpack.c.bf16 0.0, %v69
    %72 = vst [vmem:[%s70] sm:$0x1] %v71
    %s73 = scalar_lea.vmem [#allocation0], 180
    %v74 = vld [vmem:[%s73] sm:$0x3]
    %s75 = scalar_lea.vmem %s1, 252
    %v76 = vpack.c.bf16 0.0, %v74
    %77 = vst [vmem:[%s75] sm:$0x1] %v76
    %s78 = scalar_lea.vmem [#allocation0], 82
    %v79 = vld [vmem:[%s78] sm:$0x3]
    %s80 = scalar_lea.vmem %s1, 301
    %v81 = vpack.c.bf16 0.0, %v79
    %82 = vst [vmem:[%s80] sm:$0x1] %v81
    %s83 = scalar_lea.vmem [#allocation0], 656
    %v84 = vld [vmem:[%s83] sm:$0x3]
    %s85 = scalar_lea.vmem %s1, 14
    %v86 = vpack.c.bf16 0.0, %v84
    %87 = vst [vmem:[%s85] sm:$0x1] %v86
    %s88 = scalar_lea.vmem [#allocation0], 558
    %v89 = vld [vmem:[%s88] sm:$0x3]
    %s90 = scalar_lea.vmem %s1, 63
    %v91 = vpack.c.bf16 0.0, %v89
    %92 = vst [vmem:[%s90] sm:$0x1] %v91
    %s93 = scalar_lea.vmem [#allocation0], 460
    %v94 = vld [vmem:[%s93] sm:$0x3]
    %s95 = scalar_lea.vmem %s1, 112
    %v96 = vpack.c.bf16 0.0, %v94
    %97 = vst [vmem:[%s95] sm:$0x1] %v96
    %s98 = scalar_lea.vmem [#allocation0], 362
    %v99 = vld [vmem:[%s98] sm:$0x3]
    %s100 = scalar_lea.vmem %s1, 161
    %v101 = vpack.c.bf16 0.0, %v99
    %102 = vst [vmem:[%s100] sm:$0x1] %v101
    %s103 = scalar_lea.vmem [#allocation0], 264
    %v104 = vld [vmem:[%s103] sm:$0x3]
    %s105 = scalar_lea.vmem %s1, 210
    %v106 = vpack.c.bf16 0.0, %v104
    %107 = vst [vmem:[%s105] sm:$0x1] %v106
    %s108 = scalar_lea.vmem [#allocation0], 166
    %v109 = vld [vmem:[%s108] sm:$0x3]
    %s110 = scalar_lea.vmem %s1, 259
    %v111 = vpack.c.bf16 0.0, %v109
    %112 = vst [vmem:[%s110] sm:$0x1] %v111
    %s113 = scalar_lea.vmem [#allocation0], 68
    %v114 = vld [vmem:[%s113] sm:$0x3]
    %s115 = scalar_lea.vmem %s1, 308
    %v116 = vpack.c.bf16 0.0, %v114
    %117 = vst [vmem:[%s115] sm:$0x1] %v116
    %s118 = scalar_lea.vmem [#allocation0], 642
    %v119 = vld [vmem:[%s118] sm:$0x3]
    %s120 = scalar_lea.vmem %s1, 21
    %v121 = vpack.c.bf16 0.0, %v119
    %122 = vst [vmem:[%s120] sm:$0x1] %v121
    %s123 = scalar_lea.vmem [#allocation0], 544
    %v124 = vld [vmem:[%s123] sm:$0x3]
    %s125 = scalar_lea.vmem %s1, 70
    %v126 = vpack.c.bf16 0.0, %v124
    %127 = vst [vmem:[%s125] sm:$0x1] %v126
    %s128 = scalar_lea.vmem [#allocation0], 446
    %v129 = vld [vmem:[%s128] sm:$0x3]
    %s130 = scalar_lea.vmem %s1, 119
    %v131 = vpack.c.bf16 0.0, %v129
    %132 = vst [vmem:[%s130] sm:$0x1] %v131
    %s133 = scalar_lea.vmem [#allocation0], 348
    %v134 = vld [vmem:[%s133] sm:$0x3]
    %s135 = scalar_lea.vmem %s1, 168
    %v136 = vpack.c.bf16 0.0, %v134
    %137 = vst [vmem:[%s135] sm:$0x1] %v136
    %s138 = scalar_lea.vmem [#allocation0], 250
    %v139 = vld [vmem:[%s138] sm:$0x3]
    %s140 = scalar_lea.vmem %s1, 217
    %v141 = vpack.c.bf16 0.0, %v139
    %142 = vst [vmem:[%s140] sm:$0x1] %v141
    %s143 = scalar_lea.vmem [#allocation0], 152
    %v144 = vld [vmem:[%s143] sm:$0x3]
    %s145 = scalar_lea.vmem %s1, 266
    %v146 = vpack.c.bf16 0.0, %v144
    %147 = vst [vmem:[%s145] sm:$0x1] %v146
    %s148 = scalar_lea.vmem [#allocation0], 54
    %v149 = vld [vmem:[%s148] sm:$0x3]
    %s150 = scalar_lea.vmem %s1, 315
    %v151 = vpack.c.bf16 0.0, %v149
    %152 = vst [vmem:[%s150] sm:$0x1] %v151
    %s153 = scalar_lea.vmem [#allocation0], 628
    %v154 = vld [vmem:[%s153] sm:$0x3]
    %s155 = scalar_lea.vmem %s1, 28
    %v156 = vpack.c.bf16 0.0, %v154
    %157 = vst [vmem:[%s155] sm:$0x1] %v156
    %s158 = scalar_lea.vmem [#allocation0], 530
    %v159 = vld [vmem:[%s158] sm:$0x3]
    %s160 = scalar_lea.vmem %s1, 77
    %v161 = vpack.c.bf16 0.0, %v159
    %162 = vst [vmem:[%s160] sm:$0x1] %v161
    %s163 = scalar_lea.vmem [#allocation0], 432
    %v164 = vld [vmem:[%s163] sm:$0x3]
    %s165 = scalar_lea.vmem %s1, 126
    %v166 = vpack.c.bf16 0.0, %v164
    %167 = vst [vmem:[%s165] sm:$0x1] %v166
    %s168 = scalar_lea.vmem [#allocation0], 334
    %v169 = vld [vmem:[%s168] sm:$0x3]
    %s170 = scalar_lea.vmem %s1, 175
    %v171 = vpack.c.bf16 0.0, %v169
    %172 = vst [vmem:[%s170] sm:$0x1] %v171
    %s173 = scalar_lea.vmem [#allocation0], 236
    %v174 = vld [vmem:[%s173] sm:$0x3]
    %s175 = scalar_lea.vmem %s1, 224
    %v176 = vpack.c.bf16 0.0, %v174
    %177 = vst [vmem:[%s175] sm:$0x1] %v176
    %s178 = scalar_lea.vmem [#allocation0], 138
    %v179 = vld [vmem:[%s178] sm:$0x3]
    %s180 = scalar_lea.vmem %s1, 273
    %v181 = vpack.c.bf16 0.0, %v179
    %182 = vst [vmem:[%s180] sm:$0x1] %v181
    %s183 = scalar_lea.vmem [#allocation0], 40
    %v184 = vld [vmem:[%s183] sm:$0x3]
    %s185 = scalar_lea.vmem %s1, 322
    %v186 = vpack.c.bf16 0.0, %v184
    %187 = vst [vmem:[%s185] sm:$0x1] %v186
    %s188 = scalar_lea.vmem [#allocation0], 614
    %v189 = vld [vmem:[%s188] sm:$0x3]
    %s190 = scalar_lea.vmem %s1, 35
    %v191 = vpack.c.bf16 0.0, %v189
    %192 = vst [vmem:[%s190] sm:$0x1] %v191
    %s193 = scalar_lea.vmem [#allocation0], 516
    %v194 = vld [vmem:[%s193] sm:$0x3]
    %s195 = scalar_lea.vmem %s1, 84
    %v196 = vpack.c.bf16 0.0, %v194
    %197 = vst [vmem:[%s195] sm:$0x1] %v196
    %s198 = scalar_lea.vmem [#allocation0], 418
    %v199 = vld [vmem:[%s198] sm:$0x3]
    %s200 = scalar_lea.vmem %s1, 133
    %v201 = vpack.c.bf16 0.0, %v199
    %202 = vst [vmem:[%s200] sm:$0x1] %v201
    %s203 = scalar_lea.vmem [#allocation0], 320
    %v204 = vld [vmem:[%s203] sm:$0x3]
    %s205 = scalar_lea.vmem %s1, 182
    %v206 = vpack.c.bf16 0.0, %v204
    %207 = vst [vmem:[%s205] sm:$0x1] %v206
    %s208 = scalar_lea.vmem [#allocation0], 222
    %v209 = vld [vmem:[%s208] sm:$0x3]
    %s210 = scalar_lea.vmem %s1, 231
    %v211 = vpack.c.bf16 0.0, %v209
    %212 = vst [vmem:[%s210] sm:$0x1] %v211
    %s213 = scalar_lea.vmem [#allocation0], 124
    %v214 = vld [vmem:[%s213] sm:$0x3]
    %s215 = scalar_lea.vmem %s1, 280
    %v216 = vpack.c.bf16 0.0, %v214
    %217 = vst [vmem:[%s215] sm:$0x1] %v216
    %s218 = scalar_lea.vmem [#allocation0], 26
    %v219 = vld [vmem:[%s218] sm:$0x3]
    %s220 = scalar_lea.vmem %s1, 329
    %v221 = vpack.c.bf16 0.0, %v219
    %222 = vst [vmem:[%s220] sm:$0x1] %v221
    %s223 = scalar_lea.vmem [#allocation0], 600
    %v224 = vld [vmem:[%s223] sm:$0x3]
    %s225 = scalar_lea.vmem %s1, 42
    %v226 = vpack.c.bf16 0.0, %v224
    %227 = vst [vmem:[%s225] sm:$0x1] %v226
    %s228 = scalar_lea.vmem [#allocation0], 502
    %v229 = vld [vmem:[%s228] sm:$0x3]
    %s230 = scalar_lea.vmem %s1, 91
    %v231 = vpack.c.bf16 0.0, %v229
    %232 = vst [vmem:[%s230] sm:$0x1] %v231
    %s233 = scalar_lea.vmem [#allocation0], 404
    %v234 = vld [vmem:[%s233] sm:$0x3]
    %s235 = scalar_lea.vmem %s1, 140
    %v236 = vpack.c.bf16 0.0, %v234
    %237 = vst [vmem:[%s235] sm:$0x1] %v236
    %s238 = scalar_lea.vmem [#allocation0], 306
    %v239 = vld [vmem:[%s238] sm:$0x3]
    %s240 = scalar_lea.vmem %s1, 189
    %v241 = vpack.c.bf16 0.0, %v239
    %242 = vst [vmem:[%s240] sm:$0x1] %v241
    %s243 = scalar_lea.vmem [#allocation0], 208
    %v244 = vld [vmem:[%s243] sm:$0x3]
    %s245 = scalar_lea.vmem %s1, 238
    %v246 = vpack.c.bf16 0.0, %v244
    %247 = vst [vmem:[%s245] sm:$0x1] %v246
    %s248 = scalar_lea.vmem [#allocation0], 110
    %v249 = vld [vmem:[%s248] sm:$0x3]
    %s250 = scalar_lea.vmem %s1, 287
    %v251 = vpack.c.bf16 0.0, %v249
    %252 = vst [vmem:[%s250] sm:$0x1] %v251
    %s253 = scalar_lea.vmem [#allocation0], 12
    %v254 = vld [vmem:[%s253] sm:$0x3]
    %s255 = scalar_lea.vmem %s1, 336
    %v256 = vpack.c.bf16 0.0, %v254
    %257 = vst [vmem:[%s255] sm:$0x1] %v256
    %s258 = scalar_lea.vmem [#allocation0], 682
    %v259 = vld [vmem:[%s258] sm:$0x3]
    %s260 = scalar_lea.vmem %s1, 1
    %v261 = vpack.c.bf16 0.0, %v259
    %262 = vst [vmem:[%s260] sm:$0x1] %v261
    %s263 = scalar_lea.vmem [#allocation0], 584
    %v264 = vld [vmem:[%s263] sm:$0x3]
    %s265 = scalar_lea.vmem %s1, 50
    %v266 = vpack.c.bf16 0.0, %v264
    %267 = vst [vmem:[%s265] sm:$0x1] %v266
    %s268 = scalar_lea.vmem [#allocation0], 486
    %v269 = vld [vmem:[%s268] sm:$0x3]
    %s270 = scalar_lea.vmem %s1, 99
    %v271 = vpack.c.bf16 0.0, %v269
    %272 = vst [vmem:[%s270] sm:$0x1] %v271
    %s273 = scalar_lea.vmem [#allocation0], 388
    %v274 = vld [vmem:[%s273] sm:$0x3]
    %s275 = scalar_lea.vmem %s1, 148
    %v276 = vpack.c.bf16 0.0, %v274
    %277 = vst [vmem:[%s275] sm:$0x1] %v276
    %s278 = scalar_lea.vmem [#allocation0], 290
    %v279 = vld [vmem:[%s278] sm:$0x3]
    %s280 = scalar_lea.vmem %s1, 197
    %v281 = vpack.c.bf16 0.0, %v279
    %282 = vst [vmem:[%s280] sm:$0x1] %v281
    %s283 = scalar_lea.vmem [#allocation0], 192
    %v284 = vld [vmem:[%s283] sm:$0x3]
    %s285 = scalar_lea.vmem %s1, 246
    %v286 = vpack.c.bf16 0.0, %v284
    %287 = vst [vmem:[%s285] sm:$0x1] %v286
    %s288 = scalar_lea.vmem [#allocation0], 94
    %v289 = vld [vmem:[%s288] sm:$0x3]
    %s290 = scalar_lea.vmem %s1, 295
    %v291 = vpack.c.bf16 0.0, %v289
    %292 = vst [vmem:[%s290] sm:$0x1] %v291
    %s293 = scalar_lea.vmem [#allocation0], 668
    %v294 = vld [vmem:[%s293] sm:$0x3]
    %s295 = scalar_lea.vmem %s1, 8
    %v296 = vpack.c.bf16 0.0, %v294
    %297 = vst [vmem:[%s295] sm:$0x1] %v296
    %s298 = scalar_lea.vmem [#allocation0], 570
    %v299 = vld [vmem:[%s298] sm:$0x3]
    %s300 = scalar_lea.vmem %s1, 57
    %v301 = vpack.c.bf16 0.0, %v299
    %302 = vst [vmem:[%s300] sm:$0x1] %v301
    %s303 = scalar_lea.vmem [#allocation0], 472
    %v304 = vld [vmem:[%s303] sm:$0x3]
    %s305 = scalar_lea.vmem %s1, 106
    %v306 = vpack.c.bf16 0.0, %v304
    %307 = vst [vmem:[%s305] sm:$0x1] %v306
    %s308 = scalar_lea.vmem [#allocation0], 374
    %v309 = vld [vmem:[%s308] sm:$0x3]
    %s310 = scalar_lea.vmem %s1, 155
    %v311 = vpack.c.bf16 0.0, %v309
    %312 = vst [vmem:[%s310] sm:$0x1] %v311
    %s313 = scalar_lea.vmem [#allocation0], 276
    %v314 = vld [vmem:[%s313] sm:$0x3]
    %s315 = scalar_lea.vmem %s1, 204
    %v316 = vpack.c.bf16 0.0, %v314
    %317 = vst [vmem:[%s315] sm:$0x1] %v316
    %s318 = scalar_lea.vmem [#allocation0], 178
    %v319 = vld [vmem:[%s318] sm:$0x3]
    %s320 = scalar_lea.vmem %s1, 253
    %v321 = vpack.c.bf16 0.0, %v319
    %322 = vst [vmem:[%s320] sm:$0x1] %v321
    %s323 = scalar_lea.vmem [#allocation0], 80
    %v324 = vld [vmem:[%s323] sm:$0x3]
    %s325 = scalar_lea.vmem %s1, 302
    %v326 = vpack.c.bf16 0.0, %v324
    %327 = vst [vmem:[%s325] sm:$0x1] %v326
    %s328 = scalar_lea.vmem [#allocation0], 654
    %v329 = vld [vmem:[%s328] sm:$0x3]
    %s330 = scalar_lea.vmem %s1, 15
    %v331 = vpack.c.bf16 0.0, %v329
    %332 = vst [vmem:[%s330] sm:$0x1] %v331
    %s333 = scalar_lea.vmem [#allocation0], 556
    %v334 = vld [vmem:[%s333] sm:$0x3]
    %s335 = scalar_lea.vmem %s1, 64
    %v336 = vpack.c.bf16 0.0, %v334
    %337 = vst [vmem:[%s335] sm:$0x1] %v336
    %s338 = scalar_lea.vmem [#allocation0], 458
    %v339 = vld [vmem:[%s338] sm:$0x3]
    %s340 = scalar_lea.vmem %s1, 113
    %v341 = vpack.c.bf16 0.0, %v339
    %342 = vst [vmem:[%s340] sm:$0x1] %v341
    %s343 = scalar_lea.vmem [#allocation0], 360
    %v344 = vld [vmem:[%s343] sm:$0x3]
    %s345 = scalar_lea.vmem %s1, 162
    %v346 = vpack.c.bf16 0.0, %v344
    %347 = vst [vmem:[%s345] sm:$0x1] %v346
    %s348 = scalar_lea.vmem [#allocation0], 262
    %v349 = vld [vmem:[%s348] sm:$0x3]
    %s350 = scalar_lea.vmem %s1, 211
    %v351 = vpack.c.bf16 0.0, %v349
    %352 = vst [vmem:[%s350] sm:$0x1] %v351
    %s353 = scalar_lea.vmem [#allocation0], 164
    %v354 = vld [vmem:[%s353] sm:$0x3]
    %s355 = scalar_lea.vmem %s1, 260
    %v356 = vpack.c.bf16 0.0, %v354
    %357 = vst [vmem:[%s355] sm:$0x1] %v356
    %s358 = scalar_lea.vmem [#allocation0], 66
    %v359 = vld [vmem:[%s358] sm:$0x3]
    %s360 = scalar_lea.vmem %s1, 309
    %v361 = vpack.c.bf16 0.0, %v359
    %362 = vst [vmem:[%s360] sm:$0x1] %v361
    %s363 = scalar_lea.vmem [#allocation0], 640
    %v364 = vld [vmem:[%s363] sm:$0x3]
    %s365 = scalar_lea.vmem %s1, 22
    %v366 = vpack.c.bf16 0.0, %v364
    %367 = vst [vmem:[%s365] sm:$0x1] %v366
    %s368 = scalar_lea.vmem [#allocation0], 542
    %v369 = vld [vmem:[%s368] sm:$0x3]
    %s370 = scalar_lea.vmem %s1, 71
    %v371 = vpack.c.bf16 0.0, %v369
    %372 = vst [vmem:[%s370] sm:$0x1] %v371
    %s373 = scalar_lea.vmem [#allocation0], 444
    %v374 = vld [vmem:[%s373] sm:$0x3]
    %s375 = scalar_lea.vmem %s1, 120
    %v376 = vpack.c.bf16 0.0, %v374
    %377 = vst [vmem:[%s375] sm:$0x1] %v376
    %s378 = scalar_lea.vmem [#allocation0], 346
    %v379 = vld [vmem:[%s378] sm:$0x3]
    %s380 = scalar_lea.vmem %s1, 169
    %v381 = vpack.c.bf16 0.0, %v379
    %382 = vst [vmem:[%s380] sm:$0x1] %v381
    %s383 = scalar_lea.vmem [#allocation0], 248
    %v384 = vld [vmem:[%s383] sm:$0x3]
    %s385 = scalar_lea.vmem %s1, 218
    %v386 = vpack.c.bf16 0.0, %v384
    %387 = vst [vmem:[%s385] sm:$0x1] %v386
    %s388 = scalar_lea.vmem [#allocation0], 150
    %v389 = vld [vmem:[%s388] sm:$0x3]
    %s390 = scalar_lea.vmem %s1, 267
    %v391 = vpack.c.bf16 0.0, %v389
    %392 = vst [vmem:[%s390] sm:$0x1] %v391
    %s393 = scalar_lea.vmem [#allocation0], 52
    %v394 = vld [vmem:[%s393] sm:$0x3]
    %s395 = scalar_lea.vmem %s1, 316
    %v396 = vpack.c.bf16 0.0, %v394
    %397 = vst [vmem:[%s395] sm:$0x1] %v396
    %s398 = scalar_lea.vmem [#allocation0], 626
    %v399 = vld [vmem:[%s398] sm:$0x3]
    %s400 = scalar_lea.vmem %s1, 29
    %v401 = vpack.c.bf16 0.0, %v399
    %402 = vst [vmem:[%s400] sm:$0x1] %v401
    %s403 = scalar_lea.vmem [#allocation0], 528
    %v404 = vld [vmem:[%s403] sm:$0x3]
    %s405 = scalar_lea.vmem %s1, 78
    %v406 = vpack.c.bf16 0.0, %v404
    %407 = vst [vmem:[%s405] sm:$0x1] %v406
    %s408 = scalar_lea.vmem [#allocation0], 430
    %v409 = vld [vmem:[%s408] sm:$0x3]
    %s410 = scalar_lea.vmem %s1, 127
    %v411 = vpack.c.bf16 0.0, %v409
    %412 = vst [vmem:[%s410] sm:$0x1] %v411
    %s413 = scalar_lea.vmem [#allocation0], 332
    %v414 = vld [vmem:[%s413] sm:$0x3]
    %s415 = scalar_lea.vmem %s1, 176
    %v416 = vpack.c.bf16 0.0, %v414
    %417 = vst [vmem:[%s415] sm:$0x1] %v416
    %s418 = scalar_lea.vmem [#allocation0], 234
    %v419 = vld [vmem:[%s418] sm:$0x3]
    %s420 = scalar_lea.vmem %s1, 225
    %v421 = vpack.c.bf16 0.0, %v419
    %422 = vst [vmem:[%s420] sm:$0x1] %v421
    %s423 = scalar_lea.vmem [#allocation0], 136
    %v424 = vld [vmem:[%s423] sm:$0x3]
    %s425 = scalar_lea.vmem %s1, 274
    %v426 = vpack.c.bf16 0.0, %v424
    %427 = vst [vmem:[%s425] sm:$0x1] %v426
    %s428 = scalar_lea.vmem [#allocation0], 38
    %v429 = vld [vmem:[%s428] sm:$0x3]
    %s430 = scalar_lea.vmem %s1, 323
    %v431 = vpack.c.bf16 0.0, %v429
    %432 = vst [vmem:[%s430] sm:$0x1] %v431
    %s433 = scalar_lea.vmem [#allocation0], 612
    %v434 = vld [vmem:[%s433] sm:$0x3]
    %s435 = scalar_lea.vmem %s1, 36
    %v436 = vpack.c.bf16 0.0, %v434
    %437 = vst [vmem:[%s435] sm:$0x1] %v436
    %s438 = scalar_lea.vmem [#allocation0], 514
    %v439 = vld [vmem:[%s438] sm:$0x3]
    %s440 = scalar_lea.vmem %s1, 85
    %v441 = vpack.c.bf16 0.0, %v439
    %442 = vst [vmem:[%s440] sm:$0x1] %v441
    %s443 = scalar_lea.vmem [#allocation0], 416
    %v444 = vld [vmem:[%s443] sm:$0x3]
    %s445 = scalar_lea.vmem %s1, 134
    %v446 = vpack.c.bf16 0.0, %v444
    %447 = vst [vmem:[%s445] sm:$0x1] %v446
    %s448 = scalar_lea.vmem [#allocation0], 318
    %v449 = vld [vmem:[%s448] sm:$0x3]
    %s450 = scalar_lea.vmem %s1, 183
    %v451 = vpack.c.bf16 0.0, %v449
    %452 = vst [vmem:[%s450] sm:$0x1] %v451
    %s453 = scalar_lea.vmem [#allocation0], 220
    %v454 = vld [vmem:[%s453] sm:$0x3]
    %s455 = scalar_lea.vmem %s1, 232
    %v456 = vpack.c.bf16 0.0, %v454
    %457 = vst [vmem:[%s455] sm:$0x1] %v456
    %s458 = scalar_lea.vmem [#allocation0], 122
    %v459 = vld [vmem:[%s458] sm:$0x3]
    %s460 = scalar_lea.vmem %s1, 281
    %v461 = vpack.c.bf16 0.0, %v459
    %462 = vst [vmem:[%s460] sm:$0x1] %v461
    %s463 = scalar_lea.vmem [#allocation0], 24
    %v464 = vld [vmem:[%s463] sm:$0x3]
    %s465 = scalar_lea.vmem %s1, 330
    %v466 = vpack.c.bf16 0.0, %v464
    %467 = vst [vmem:[%s465] sm:$0x1] %v466
    %s468 = scalar_lea.vmem [#allocation0], 598
    %v469 = vld [vmem:[%s468] sm:$0x3]
    %s470 = scalar_lea.vmem %s1, 43
    %v471 = vpack.c.bf16 0.0, %v469
    %472 = vst [vmem:[%s470] sm:$0x1] %v471
    %s473 = scalar_lea.vmem [#allocation0], 500
    %v474 = vld [vmem:[%s473] sm:$0x3]
    %s475 = scalar_lea.vmem %s1, 92
    %v476 = vpack.c.bf16 0.0, %v474
    %477 = vst [vmem:[%s475] sm:$0x1] %v476
    %s478 = scalar_lea.vmem [#allocation0], 402
    %v479 = vld [vmem:[%s478] sm:$0x3]
    %s480 = scalar_lea.vmem %s1, 141
    %v481 = vpack.c.bf16 0.0, %v479
    %482 = vst [vmem:[%s480] sm:$0x1] %v481
    %s483 = scalar_lea.vmem [#allocation0], 304
    %v484 = vld [vmem:[%s483] sm:$0x3]
    %s485 = scalar_lea.vmem %s1, 190
    %v486 = vpack.c.bf16 0.0, %v484
    %487 = vst [vmem:[%s485] sm:$0x1] %v486
    %s488 = scalar_lea.vmem [#allocation0], 206
    %v489 = vld [vmem:[%s488] sm:$0x3]
    %s490 = scalar_lea.vmem %s1, 239
    %v491 = vpack.c.bf16 0.0, %v489
    %492 = vst [vmem:[%s490] sm:$0x1] %v491
    %s493 = scalar_lea.vmem [#allocation0], 108
    %v494 = vld [vmem:[%s493] sm:$0x3]
    %s495 = scalar_lea.vmem %s1, 288
    %v496 = vpack.c.bf16 0.0, %v494
    %497 = vst [vmem:[%s495] sm:$0x1] %v496
    %s498 = scalar_lea.vmem [#allocation0], 10
    %v499 = vld [vmem:[%s498] sm:$0x3]
    %s500 = scalar_lea.vmem %s1, 337
    %v501 = vpack.c.bf16 0.0, %v499
    %502 = vst [vmem:[%s500] sm:$0x1] %v501
    %s503 = scalar_lea.vmem [#allocation0], 680
    %v504 = vld [vmem:[%s503] sm:$0x3]
    %s505 = scalar_lea.vmem %s1, 2
    %v506 = vpack.c.bf16 0.0, %v504
    %507 = vst [vmem:[%s505] sm:$0x1] %v506
    %s508 = scalar_lea.vmem [#allocation0], 582
    %v509 = vld [vmem:[%s508] sm:$0x3]
    %s510 = scalar_lea.vmem %s1, 51
    %v511 = vpack.c.bf16 0.0, %v509
    %512 = vst [vmem:[%s510] sm:$0x1] %v511
    %s513 = scalar_lea.vmem [#allocation0], 484
    %v514 = vld [vmem:[%s513] sm:$0x3]
    %s515 = scalar_lea.vmem %s1, 100
    %v516 = vpack.c.bf16 0.0, %v514
    %517 = vst [vmem:[%s515] sm:$0x1] %v516
    %s518 = scalar_lea.vmem [#allocation0], 386
    %v519 = vld [vmem:[%s518] sm:$0x3]
    %s520 = scalar_lea.vmem %s1, 149
    %v521 = vpack.c.bf16 0.0, %v519
    %522 = vst [vmem:[%s520] sm:$0x1] %v521
    %s523 = scalar_lea.vmem [#allocation0], 288
    %v524 = vld [vmem:[%s523] sm:$0x3]
    %s525 = scalar_lea.vmem %s1, 198
    %v526 = vpack.c.bf16 0.0, %v524
    %527 = vst [vmem:[%s525] sm:$0x1] %v526
    %s528 = scalar_lea.vmem [#allocation0], 190
    %v529 = vld [vmem:[%s528] sm:$0x3]
    %s530 = scalar_lea.vmem %s1, 247
    %v531 = vpack.c.bf16 0.0, %v529
    %532 = vst [vmem:[%s530] sm:$0x1] %v531
    %s533 = scalar_lea.vmem [#allocation0], 92
    %v534 = vld [vmem:[%s533] sm:$0x3]
    %s535 = scalar_lea.vmem %s1, 296
    %v536 = vpack.c.bf16 0.0, %v534
    %537 = vst [vmem:[%s535] sm:$0x1] %v536
    %s538 = scalar_lea.vmem [#allocation0], 666
    %v539 = vld [vmem:[%s538] sm:$0x3]
    %s540 = scalar_lea.vmem %s1, 9
    %v541 = vpack.c.bf16 0.0, %v539
    %542 = vst [vmem:[%s540] sm:$0x1] %v541
    %s543 = scalar_lea.vmem [#allocation0], 568
    %v544 = vld [vmem:[%s543] sm:$0x3]
    %s545 = scalar_lea.vmem %s1, 58
    %v546 = vpack.c.bf16 0.0, %v544
    %547 = vst [vmem:[%s545] sm:$0x1] %v546
    %s548 = scalar_lea.vmem [#allocation0], 470
    %v549 = vld [vmem:[%s548] sm:$0x3]
    %s550 = scalar_lea.vmem %s1, 107
    %v551 = vpack.c.bf16 0.0, %v549
    %552 = vst [vmem:[%s550] sm:$0x1] %v551
    %s553 = scalar_lea.vmem [#allocation0], 372
    %v554 = vld [vmem:[%s553] sm:$0x3]
    %s555 = scalar_lea.vmem %s1, 156
    %v556 = vpack.c.bf16 0.0, %v554
    %557 = vst [vmem:[%s555] sm:$0x1] %v556
    %s558 = scalar_lea.vmem [#allocation0], 274
    %v559 = vld [vmem:[%s558] sm:$0x3]
    %s560 = scalar_lea.vmem %s1, 205
    %v561 = vpack.c.bf16 0.0, %v559
    %562 = vst [vmem:[%s560] sm:$0x1] %v561
    %s563 = scalar_lea.vmem [#allocation0], 176
    %v564 = vld [vmem:[%s563] sm:$0x3]
    %s565 = scalar_lea.vmem %s1, 254
    %v566 = vpack.c.bf16 0.0, %v564
    %567 = vst [vmem:[%s565] sm:$0x1] %v566
    %s568 = scalar_lea.vmem [#allocation0], 78
    %v569 = vld [vmem:[%s568] sm:$0x3]
    %s570 = scalar_lea.vmem %s1, 303
    %v571 = vpack.c.bf16 0.0, %v569
    %572 = vst [vmem:[%s570] sm:$0x1] %v571
    %s573 = scalar_lea.vmem [#allocation0], 652
    %v574 = vld [vmem:[%s573] sm:$0x3]
    %s575 = scalar_lea.vmem %s1, 16
    %v576 = vpack.c.bf16 0.0, %v574
    %577 = vst [vmem:[%s575] sm:$0x1] %v576
    %s578 = scalar_lea.vmem [#allocation0], 554
    %v579 = vld [vmem:[%s578] sm:$0x3]
    %s580 = scalar_lea.vmem %s1, 65
    %v581 = vpack.c.bf16 0.0, %v579
    %582 = vst [vmem:[%s580] sm:$0x1] %v581
    %s583 = scalar_lea.vmem [#allocation0], 456
    %v584 = vld [vmem:[%s583] sm:$0x3]
    %s585 = scalar_lea.vmem %s1, 114
    %v586 = vpack.c.bf16 0.0, %v584
    %587 = vst [vmem:[%s585] sm:$0x1] %v586
    %s588 = scalar_lea.vmem [#allocation0], 358
    %v589 = vld [vmem:[%s588] sm:$0x3]
    %s590 = scalar_lea.vmem %s1, 163
    %v591 = vpack.c.bf16 0.0, %v589
    %592 = vst [vmem:[%s590] sm:$0x1] %v591
    %s593 = scalar_lea.vmem [#allocation0], 260
    %v594 = vld [vmem:[%s593] sm:$0x3]
    %s595 = scalar_lea.vmem %s1, 212
    %v596 = vpack.c.bf16 0.0, %v594
    %597 = vst [vmem:[%s595] sm:$0x1] %v596
    %s598 = scalar_lea.vmem [#allocation0], 162
    %v599 = vld [vmem:[%s598] sm:$0x3]
    %s600 = scalar_lea.vmem %s1, 261
    %v601 = vpack.c.bf16 0.0, %v599
    %602 = vst [vmem:[%s600] sm:$0x1] %v601
    %s603 = scalar_lea.vmem [#allocation0], 64
    %v604 = vld [vmem:[%s603] sm:$0x3]
    %s605 = scalar_lea.vmem %s1, 310
    %v606 = vpack.c.bf16 0.0, %v604
    %607 = vst [vmem:[%s605] sm:$0x1] %v606
    %s608 = scalar_lea.vmem [#allocation0], 638
    %v609 = vld [vmem:[%s608] sm:$0x3]
    %s610 = scalar_lea.vmem %s1, 23
    %v611 = vpack.c.bf16 0.0, %v609
    %612 = vst [vmem:[%s610] sm:$0x1] %v611
    %s613 = scalar_lea.vmem [#allocation0], 540
    %v614 = vld [vmem:[%s613] sm:$0x3]
    %s615 = scalar_lea.vmem %s1, 72
    %v616 = vpack.c.bf16 0.0, %v614
    %617 = vst [vmem:[%s615] sm:$0x1] %v616
    %s618 = scalar_lea.vmem [#allocation0], 442
    %v619 = vld [vmem:[%s618] sm:$0x3]
    %s620 = scalar_lea.vmem %s1, 121
    %v621 = vpack.c.bf16 0.0, %v619
    %622 = vst [vmem:[%s620] sm:$0x1] %v621
    %s623 = scalar_lea.vmem [#allocation0], 344
    %v624 = vld [vmem:[%s623] sm:$0x3]
    %s625 = scalar_lea.vmem %s1, 170
    %v626 = vpack.c.bf16 0.0, %v624
    %627 = vst [vmem:[%s625] sm:$0x1] %v626
    %s628 = scalar_lea.vmem [#allocation0], 246
    %v629 = vld [vmem:[%s628] sm:$0x3]
    %s630 = scalar_lea.vmem %s1, 219
    %v631 = vpack.c.bf16 0.0, %v629
    %632 = vst [vmem:[%s630] sm:$0x1] %v631
    %s633 = scalar_lea.vmem [#allocation0], 148
    %v634 = vld [vmem:[%s633] sm:$0x3]
    %s635 = scalar_lea.vmem %s1, 268
    %v636 = vpack.c.bf16 0.0, %v634
    %637 = vst [vmem:[%s635] sm:$0x1] %v636
    %s638 = scalar_lea.vmem [#allocation0], 50
    %v639 = vld [vmem:[%s638] sm:$0x3]
    %s640 = scalar_lea.vmem %s1, 317
    %v641 = vpack.c.bf16 0.0, %v639
    %642 = vst [vmem:[%s640] sm:$0x1] %v641
    %s643 = scalar_lea.vmem [#allocation0], 624
    %v644 = vld [vmem:[%s643] sm:$0x3]
    %s645 = scalar_lea.vmem %s1, 30
    %v646 = vpack.c.bf16 0.0, %v644
    %647 = vst [vmem:[%s645] sm:$0x1] %v646
    %s648 = scalar_lea.vmem [#allocation0], 526
    %v649 = vld [vmem:[%s648] sm:$0x3]
    %s650 = scalar_lea.vmem %s1, 79
    %v651 = vpack.c.bf16 0.0, %v649
    %652 = vst [vmem:[%s650] sm:$0x1] %v651
    %s653 = scalar_lea.vmem [#allocation0], 428
    %v654 = vld [vmem:[%s653] sm:$0x3]
    %s655 = scalar_lea.vmem %s1, 128
    %v656 = vpack.c.bf16 0.0, %v654
    %657 = vst [vmem:[%s655] sm:$0x1] %v656
    %s658 = scalar_lea.vmem [#allocation0], 330
    %v659 = vld [vmem:[%s658] sm:$0x3]
    %s660 = scalar_lea.vmem %s1, 177
    %v661 = vpack.c.bf16 0.0, %v659
    %662 = vst [vmem:[%s660] sm:$0x1] %v661
    %s663 = scalar_lea.vmem [#allocation0], 232
    %v664 = vld [vmem:[%s663] sm:$0x3]
    %s665 = scalar_lea.vmem %s1, 226
    %v666 = vpack.c.bf16 0.0, %v664
    %667 = vst [vmem:[%s665] sm:$0x1] %v666
    %s668 = scalar_lea.vmem [#allocation0], 134
    %v669 = vld [vmem:[%s668] sm:$0x3]
    %s670 = scalar_lea.vmem %s1, 275
    %v671 = vpack.c.bf16 0.0, %v669
    %672 = vst [vmem:[%s670] sm:$0x1] %v671
    %s673 = scalar_lea.vmem [#allocation0], 36
    %v674 = vld [vmem:[%s673] sm:$0x3]
    %s675 = scalar_lea.vmem %s1, 324
    %v676 = vpack.c.bf16 0.0, %v674
    %677 = vst [vmem:[%s675] sm:$0x1] %v676
    %s678 = scalar_lea.vmem [#allocation0], 610
    %v679 = vld [vmem:[%s678] sm:$0x3]
    %s680 = scalar_lea.vmem %s1, 37
    %v681 = vpack.c.bf16 0.0, %v679
    %682 = vst [vmem:[%s680] sm:$0x1] %v681
    %s683 = scalar_lea.vmem [#allocation0], 512
    %v684 = vld [vmem:[%s683] sm:$0x3]
    %s685 = scalar_lea.vmem %s1, 86
    %v686 = vpack.c.bf16 0.0, %v684
    %687 = vst [vmem:[%s685] sm:$0x1] %v686
    %s688 = scalar_lea.vmem [#allocation0], 414
    %v689 = vld [vmem:[%s688] sm:$0x3]
    %s690 = scalar_lea.vmem %s1, 135
    %v691 = vpack.c.bf16 0.0, %v689
    %692 = vst [vmem:[%s690] sm:$0x1] %v691
    %s693 = scalar_lea.vmem [#allocation0], 316
    %v694 = vld [vmem:[%s693] sm:$0x3]
    %s695 = scalar_lea.vmem %s1, 184
    %v696 = vpack.c.bf16 0.0, %v694
    %697 = vst [vmem:[%s695] sm:$0x1] %v696
    %s698 = scalar_lea.vmem [#allocation0], 218
    %v699 = vld [vmem:[%s698] sm:$0x3]
    %s700 = scalar_lea.vmem %s1, 233
    %v701 = vpack.c.bf16 0.0, %v699
    %702 = vst [vmem:[%s700] sm:$0x1] %v701
    %s703 = scalar_lea.vmem [#allocation0], 120
    %v704 = vld [vmem:[%s703] sm:$0x3]
    %s705 = scalar_lea.vmem %s1, 282
    %v706 = vpack.c.bf16 0.0, %v704
    %707 = vst [vmem:[%s705] sm:$0x1] %v706
    %s708 = scalar_lea.vmem [#allocation0], 22
    %v709 = vld [vmem:[%s708] sm:$0x3]
    %s710 = scalar_lea.vmem %s1, 331
    %v711 = vpack.c.bf16 0.0, %v709
    %712 = vst [vmem:[%s710] sm:$0x1] %v711
    %s713 = scalar_lea.vmem [#allocation0], 596
    %v714 = vld [vmem:[%s713] sm:$0x3]
    %s715 = scalar_lea.vmem %s1, 44
    %v716 = vpack.c.bf16 0.0, %v714
    %717 = vst [vmem:[%s715] sm:$0x1] %v716
    %s718 = scalar_lea.vmem [#allocation0], 498
    %v719 = vld [vmem:[%s718] sm:$0x3]
    %s720 = scalar_lea.vmem %s1, 93
    %v721 = vpack.c.bf16 0.0, %v719
    %722 = vst [vmem:[%s720] sm:$0x1] %v721
    %s723 = scalar_lea.vmem [#allocation0], 400
    %v724 = vld [vmem:[%s723] sm:$0x3]
    %s725 = scalar_lea.vmem %s1, 142
    %v726 = vpack.c.bf16 0.0, %v724
    %727 = vst [vmem:[%s725] sm:$0x1] %v726
    %s728 = scalar_lea.vmem [#allocation0], 302
    %v729 = vld [vmem:[%s728] sm:$0x3]
    %s730 = scalar_lea.vmem %s1, 191
    %v731 = vpack.c.bf16 0.0, %v729
    %732 = vst [vmem:[%s730] sm:$0x1] %v731
    %s733 = scalar_lea.vmem [#allocation0], 204
    %v734 = vld [vmem:[%s733] sm:$0x3]
    %s735 = scalar_lea.vmem %s1, 240
    %v736 = vpack.c.bf16 0.0, %v734
    %737 = vst [vmem:[%s735] sm:$0x1] %v736
    %s738 = scalar_lea.vmem [#allocation0], 106
    %v739 = vld [vmem:[%s738] sm:$0x3]
    %s740 = scalar_lea.vmem %s1, 289
    %v741 = vpack.c.bf16 0.0, %v739
    %742 = vst [vmem:[%s740] sm:$0x1] %v741
    %s743 = scalar_lea.vmem [#allocation0], 8
    %v744 = vld [vmem:[%s743] sm:$0x3]
    %s745 = scalar_lea.vmem %s1, 338
    %v746 = vpack.c.bf16 0.0, %v744
    %747 = vst [vmem:[%s745] sm:$0x1] %v746
    %s748 = scalar_lea.vmem [#allocation0], 678
    %v749 = vld [vmem:[%s748] sm:$0x3]
    %s750 = scalar_lea.vmem %s1, 3
    %v751 = vpack.c.bf16 0.0, %v749
    %752 = vst [vmem:[%s750] sm:$0x1] %v751
    %s753 = scalar_lea.vmem [#allocation0], 580
    %v754 = vld [vmem:[%s753] sm:$0x3]
    %s755 = scalar_lea.vmem %s1, 52
    %v756 = vpack.c.bf16 0.0, %v754
    %757 = vst [vmem:[%s755] sm:$0x1] %v756
    %s758 = scalar_lea.vmem [#allocation0], 482
    %v759 = vld [vmem:[%s758] sm:$0x3]
    %s760 = scalar_lea.vmem %s1, 101
    %v761 = vpack.c.bf16 0.0, %v759
    %762 = vst [vmem:[%s760] sm:$0x1] %v761
    %s763 = scalar_lea.vmem [#allocation0], 384
    %v764 = vld [vmem:[%s763] sm:$0x3]
    %s765 = scalar_lea.vmem %s1, 150
    %v766 = vpack.c.bf16 0.0, %v764
    %767 = vst [vmem:[%s765] sm:$0x1] %v766
    %s768 = scalar_lea.vmem [#allocation0], 286
    %v769 = vld [vmem:[%s768] sm:$0x3]
    %s770 = scalar_lea.vmem %s1, 199
    %v771 = vpack.c.bf16 0.0, %v769
    %772 = vst [vmem:[%s770] sm:$0x1] %v771
    %s773 = scalar_lea.vmem [#allocation0], 188
    %v774 = vld [vmem:[%s773] sm:$0x3]
    %s775 = scalar_lea.vmem %s1, 248
    %v776 = vpack.c.bf16 0.0, %v774
    %777 = vst [vmem:[%s775] sm:$0x1] %v776
    %s778 = scalar_lea.vmem [#allocation0], 90
    %v779 = vld [vmem:[%s778] sm:$0x3]
    %s780 = scalar_lea.vmem %s1, 297
    %v781 = vpack.c.bf16 0.0, %v779
    %782 = vst [vmem:[%s780] sm:$0x1] %v781
    %s783 = scalar_lea.vmem [#allocation0], 664
    %v784 = vld [vmem:[%s783] sm:$0x3]
    %s785 = scalar_lea.vmem %s1, 10
    %v786 = vpack.c.bf16 0.0, %v784
    %787 = vst [vmem:[%s785] sm:$0x1] %v786
    %s788 = scalar_lea.vmem [#allocation0], 566
    %v789 = vld [vmem:[%s788] sm:$0x3]
    %s790 = scalar_lea.vmem %s1, 59
    %v791 = vpack.c.bf16 0.0, %v789
    %792 = vst [vmem:[%s790] sm:$0x1] %v791
    %s793 = scalar_lea.vmem [#allocation0], 468
    %v794 = vld [vmem:[%s793] sm:$0x3]
    %s795 = scalar_lea.vmem %s1, 108
    %v796 = vpack.c.bf16 0.0, %v794
    %797 = vst [vmem:[%s795] sm:$0x1] %v796
    %s798 = scalar_lea.vmem [#allocation0], 370
    %v799 = vld [vmem:[%s798] sm:$0x3]
    %s800 = scalar_lea.vmem %s1, 157
    %v801 = vpack.c.bf16 0.0, %v799
    %802 = vst [vmem:[%s800] sm:$0x1] %v801
    %s803 = scalar_lea.vmem [#allocation0], 272
    %v804 = vld [vmem:[%s803] sm:$0x3]
    %s805 = scalar_lea.vmem %s1, 206
    %v806 = vpack.c.bf16 0.0, %v804
    %807 = vst [vmem:[%s805] sm:$0x1] %v806
    %s808 = scalar_lea.vmem [#allocation0], 174
    %v809 = vld [vmem:[%s808] sm:$0x3]
    %s810 = scalar_lea.vmem %s1, 255
    %v811 = vpack.c.bf16 0.0, %v809
    %812 = vst [vmem:[%s810] sm:$0x1] %v811
    %s813 = scalar_lea.vmem [#allocation0], 76
    %v814 = vld [vmem:[%s813] sm:$0x3]
    %s815 = scalar_lea.vmem %s1, 304
    %v816 = vpack.c.bf16 0.0, %v814
    %817 = vst [vmem:[%s815] sm:$0x1] %v816
    %s818 = scalar_lea.vmem [#allocation0], 650
    %v819 = vld [vmem:[%s818] sm:$0x3]
    %s820 = scalar_lea.vmem %s1, 17
    %v821 = vpack.c.bf16 0.0, %v819
    %822 = vst [vmem:[%s820] sm:$0x1] %v821
    %s823 = scalar_lea.vmem [#allocation0], 552
    %v824 = vld [vmem:[%s823] sm:$0x3]
    %s825 = scalar_lea.vmem %s1, 66
    %v826 = vpack.c.bf16 0.0, %v824
    %827 = vst [vmem:[%s825] sm:$0x1] %v826
    %s828 = scalar_lea.vmem [#allocation0], 454
    %v829 = vld [vmem:[%s828] sm:$0x3]
    %s830 = scalar_lea.vmem %s1, 115
    %v831 = vpack.c.bf16 0.0, %v829
    %832 = vst [vmem:[%s830] sm:$0x1] %v831
    %s833 = scalar_lea.vmem [#allocation0], 356
    %v834 = vld [vmem:[%s833] sm:$0x3]
    %s835 = scalar_lea.vmem %s1, 164
    %v836 = vpack.c.bf16 0.0, %v834
    %837 = vst [vmem:[%s835] sm:$0x1] %v836
    %s838 = scalar_lea.vmem [#allocation0], 258
    %v839 = vld [vmem:[%s838] sm:$0x3]
    %s840 = scalar_lea.vmem %s1, 213
    %v841 = vpack.c.bf16 0.0, %v839
    %842 = vst [vmem:[%s840] sm:$0x1] %v841
    %s843 = scalar_lea.vmem [#allocation0], 160
    %v844 = vld [vmem:[%s843] sm:$0x3]
    %s845 = scalar_lea.vmem %s1, 262
    %v846 = vpack.c.bf16 0.0, %v844
    %847 = vst [vmem:[%s845] sm:$0x1] %v846
    %s848 = scalar_lea.vmem [#allocation0], 62
    %v849 = vld [vmem:[%s848] sm:$0x3]
    %s850 = scalar_lea.vmem %s1, 311
    %v851 = vpack.c.bf16 0.0, %v849
    %852 = vst [vmem:[%s850] sm:$0x1] %v851
    %s853 = scalar_lea.vmem [#allocation0], 636
    %v854 = vld [vmem:[%s853] sm:$0x3]
    %s855 = scalar_lea.vmem %s1, 24
    %v856 = vpack.c.bf16 0.0, %v854
    %857 = vst [vmem:[%s855] sm:$0x1] %v856
    %s858 = scalar_lea.vmem [#allocation0], 538
    %v859 = vld [vmem:[%s858] sm:$0x3]
    %s860 = scalar_lea.vmem %s1, 73
    %v861 = vpack.c.bf16 0.0, %v859
    %862 = vst [vmem:[%s860] sm:$0x1] %v861
    %s863 = scalar_lea.vmem [#allocation0], 440
    %v864 = vld [vmem:[%s863] sm:$0x3]
    %s865 = scalar_lea.vmem %s1, 122
    %v866 = vpack.c.bf16 0.0, %v864
    %867 = vst [vmem:[%s865] sm:$0x1] %v866
    %s868 = scalar_lea.vmem [#allocation0], 342
    %v869 = vld [vmem:[%s868] sm:$0x3]
    %s870 = scalar_lea.vmem %s1, 171
    %v871 = vpack.c.bf16 0.0, %v869
    %872 = vst [vmem:[%s870] sm:$0x1] %v871
    %s873 = scalar_lea.vmem [#allocation0], 244
    %v874 = vld [vmem:[%s873] sm:$0x3]
    %s875 = scalar_lea.vmem %s1, 220
    %v876 = vpack.c.bf16 0.0, %v874
    %877 = vst [vmem:[%s875] sm:$0x1] %v876
    %s878 = scalar_lea.vmem [#allocation0], 146
    %v879 = vld [vmem:[%s878] sm:$0x3]
    %s880 = scalar_lea.vmem %s1, 269
    %v881 = vpack.c.bf16 0.0, %v879
    %882 = vst [vmem:[%s880] sm:$0x1] %v881
    %s883 = scalar_lea.vmem [#allocation0], 48
    %v884 = vld [vmem:[%s883] sm:$0x3]
    %s885 = scalar_lea.vmem %s1, 318
    %v886 = vpack.c.bf16 0.0, %v884
    %887 = vst [vmem:[%s885] sm:$0x1] %v886
    %s888 = scalar_lea.vmem [#allocation0], 622
    %v889 = vld [vmem:[%s888] sm:$0x3]
    %s890 = scalar_lea.vmem %s1, 31
    %v891 = vpack.c.bf16 0.0, %v889
    %892 = vst [vmem:[%s890] sm:$0x1] %v891
    %s893 = scalar_lea.vmem [#allocation0], 524
    %v894 = vld [vmem:[%s893] sm:$0x3]
    %s895 = scalar_lea.vmem %s1, 80
    %v896 = vpack.c.bf16 0.0, %v894
    %897 = vst [vmem:[%s895] sm:$0x1] %v896
    %s898 = scalar_lea.vmem [#allocation0], 426
    %v899 = vld [vmem:[%s898] sm:$0x3]
    %s900 = scalar_lea.vmem %s1, 129
    %v901 = vpack.c.bf16 0.0, %v899
    %902 = vst [vmem:[%s900] sm:$0x1] %v901
    %s903 = scalar_lea.vmem [#allocation0], 328
    %v904 = vld [vmem:[%s903] sm:$0x3]
    %s905 = scalar_lea.vmem %s1, 178
    %v906 = vpack.c.bf16 0.0, %v904
    %907 = vst [vmem:[%s905] sm:$0x1] %v906
    %s908 = scalar_lea.vmem [#allocation0], 230
    %v909 = vld [vmem:[%s908] sm:$0x3]
    %s910 = scalar_lea.vmem %s1, 227
    %v911 = vpack.c.bf16 0.0, %v909
    %912 = vst [vmem:[%s910] sm:$0x1] %v911
    %s913 = scalar_lea.vmem [#allocation0], 132
    %v914 = vld [vmem:[%s913] sm:$0x3]
    %s915 = scalar_lea.vmem %s1, 276
    %v916 = vpack.c.bf16 0.0, %v914
    %917 = vst [vmem:[%s915] sm:$0x1] %v916
    %s918 = scalar_lea.vmem [#allocation0], 34
    %v919 = vld [vmem:[%s918] sm:$0x3]
    %s920 = scalar_lea.vmem %s1, 325
    %v921 = vpack.c.bf16 0.0, %v919
    %922 = vst [vmem:[%s920] sm:$0x1] %v921
    %s923 = scalar_lea.vmem [#allocation0], 608
    %v924 = vld [vmem:[%s923] sm:$0x3]
    %s925 = scalar_lea.vmem %s1, 38
    %v926 = vpack.c.bf16 0.0, %v924
    %927 = vst [vmem:[%s925] sm:$0x1] %v926
    %s928 = scalar_lea.vmem [#allocation0], 510
    %v929 = vld [vmem:[%s928] sm:$0x3]
    %s930 = scalar_lea.vmem %s1, 87
    %v931 = vpack.c.bf16 0.0, %v929
    %932 = vst [vmem:[%s930] sm:$0x1] %v931
    %s933 = scalar_lea.vmem [#allocation0], 412
    %v934 = vld [vmem:[%s933] sm:$0x3]
    %s935 = scalar_lea.vmem %s1, 136
    %v936 = vpack.c.bf16 0.0, %v934
    %937 = vst [vmem:[%s935] sm:$0x1] %v936
    %s938 = scalar_lea.vmem [#allocation0], 314
    %v939 = vld [vmem:[%s938] sm:$0x3]
    %s940 = scalar_lea.vmem %s1, 185
    %v941 = vpack.c.bf16 0.0, %v939
    %942 = vst [vmem:[%s940] sm:$0x1] %v941
    %s943 = scalar_lea.vmem [#allocation0], 216
    %v944 = vld [vmem:[%s943] sm:$0x3]
    %s945 = scalar_lea.vmem %s1, 234
    %v946 = vpack.c.bf16 0.0, %v944
    %947 = vst [vmem:[%s945] sm:$0x1] %v946
    %s948 = scalar_lea.vmem [#allocation0], 118
    %v949 = vld [vmem:[%s948] sm:$0x3]
    %s950 = scalar_lea.vmem %s1, 283
    %v951 = vpack.c.bf16 0.0, %v949
    %952 = vst [vmem:[%s950] sm:$0x1] %v951
    %s953 = scalar_lea.vmem [#allocation0], 20
    %v954 = vld [vmem:[%s953] sm:$0x3]
    %s955 = scalar_lea.vmem %s1, 332
    %v956 = vpack.c.bf16 0.0, %v954
    %957 = vst [vmem:[%s955] sm:$0x1] %v956
    %s958 = scalar_lea.vmem [#allocation0], 594
    %v959 = vld [vmem:[%s958] sm:$0x3]
    %s960 = scalar_lea.vmem %s1, 45
    %v961 = vpack.c.bf16 0.0, %v959
    %962 = vst [vmem:[%s960] sm:$0x1] %v961
    %s963 = scalar_lea.vmem [#allocation0], 496
    %v964 = vld [vmem:[%s963] sm:$0x3]
    %s965 = scalar_lea.vmem %s1, 94
    %v966 = vpack.c.bf16 0.0, %v964
    %967 = vst [vmem:[%s965] sm:$0x1] %v966
    %s968 = scalar_lea.vmem [#allocation0], 398
    %v969 = vld [vmem:[%s968] sm:$0x3]
    %s970 = scalar_lea.vmem %s1, 143
    %v971 = vpack.c.bf16 0.0, %v969
    %972 = vst [vmem:[%s970] sm:$0x1] %v971
    %s973 = scalar_lea.vmem [#allocation0], 300
    %v974 = vld [vmem:[%s973] sm:$0x3]
    %s975 = scalar_lea.vmem %s1, 192
    %v976 = vpack.c.bf16 0.0, %v974
    %977 = vst [vmem:[%s975] sm:$0x1] %v976
    %s978 = scalar_lea.vmem [#allocation0], 202
    %v979 = vld [vmem:[%s978] sm:$0x3]
    %s980 = scalar_lea.vmem %s1, 241
    %v981 = vpack.c.bf16 0.0, %v979
    %982 = vst [vmem:[%s980] sm:$0x1] %v981
    %s983 = scalar_lea.vmem [#allocation0], 104
    %v984 = vld [vmem:[%s983] sm:$0x3]
    %s985 = scalar_lea.vmem %s1, 290
    %v986 = vpack.c.bf16 0.0, %v984
    %987 = vst [vmem:[%s985] sm:$0x1] %v986
    %s988 = scalar_lea.vmem [#allocation0], 6
    %v989 = vld [vmem:[%s988] sm:$0x3]
    %s990 = scalar_lea.vmem %s1, 339
    %v991 = vpack.c.bf16 0.0, %v989
    %992 = vst [vmem:[%s990] sm:$0x1] %v991
    %s993 = scalar_lea.vmem [#allocation0], 676
    %v994 = vld [vmem:[%s993] sm:$0x3]
    %s995 = scalar_lea.vmem %s1, 4
    %v996 = vpack.c.bf16 0.0, %v994
    %997 = vst [vmem:[%s995] sm:$0x1] %v996
    %s998 = scalar_lea.vmem [#allocation0], 578
    %v999 = vld [vmem:[%s998] sm:$0x3]
    %s1000 = scalar_lea.vmem %s1, 53
    %v1001 = vpack.c.bf16 0.0, %v999
    %1002 = vst [vmem:[%s1000] sm:$0x1] %v1001
    %s1003 = scalar_lea.vmem [#allocation0], 480
    %v1004 = vld [vmem:[%s1003] sm:$0x3]
    %s1005 = scalar_lea.vmem %s1, 102
    %v1006 = vpack.c.bf16 0.0, %v1004
    %1007 = vst [vmem:[%s1005] sm:$0x1] %v1006
    %s1008 = scalar_lea.vmem [#allocation0], 382
    %v1009 = vld [vmem:[%s1008] sm:$0x3]
    %s1010 = scalar_lea.vmem %s1, 151
    %v1011 = vpack.c.bf16 0.0, %v1009
    %1012 = vst [vmem:[%s1010] sm:$0x1] %v1011
    %s1013 = scalar_lea.vmem [#allocation0], 284
    %v1014 = vld [vmem:[%s1013] sm:$0x3]
    %s1015 = scalar_lea.vmem %s1, 200
    %v1016 = vpack.c.bf16 0.0, %v1014
    %1017 = vst [vmem:[%s1015] sm:$0x1] %v1016
    %s1018 = scalar_lea.vmem [#allocation0], 186
    %v1019 = vld [vmem:[%s1018] sm:$0x3]
    %s1020 = scalar_lea.vmem %s1, 249
    %v1021 = vpack.c.bf16 0.0, %v1019
    %1022 = vst [vmem:[%s1020] sm:$0x1] %v1021
    %s1023 = scalar_lea.vmem [#allocation0], 88
    %v1024 = vld [vmem:[%s1023] sm:$0x3]
    %s1025 = scalar_lea.vmem %s1, 298
    %v1026 = vpack.c.bf16 0.0, %v1024
    %1027 = vst [vmem:[%s1025] sm:$0x1] %v1026
    %s1028 = scalar_lea.vmem [#allocation0], 662
    %v1029 = vld [vmem:[%s1028] sm:$0x3]
    %s1030 = scalar_lea.vmem %s1, 11
    %v1031 = vpack.c.bf16 0.0, %v1029
    %1032 = vst [vmem:[%s1030] sm:$0x1] %v1031
    %s1033 = scalar_lea.vmem [#allocation0], 564
    %v1034 = vld [vmem:[%s1033] sm:$0x3]
    %s1035 = scalar_lea.vmem %s1, 60
    %v1036 = vpack.c.bf16 0.0, %v1034
    %1037 = vst [vmem:[%s1035] sm:$0x1] %v1036
    %s1038 = scalar_lea.vmem [#allocation0], 466
    %v1039 = vld [vmem:[%s1038] sm:$0x3]
    %s1040 = scalar_lea.vmem %s1, 109
    %v1041 = vpack.c.bf16 0.0, %v1039
    %1042 = vst [vmem:[%s1040] sm:$0x1] %v1041
    %s1043 = scalar_lea.vmem [#allocation0], 368
    %v1044 = vld [vmem:[%s1043] sm:$0x3]
    %s1045 = scalar_lea.vmem %s1, 158
    %v1046 = vpack.c.bf16 0.0, %v1044
    %1047 = vst [vmem:[%s1045] sm:$0x1] %v1046
    %s1048 = scalar_lea.vmem [#allocation0], 270
    %v1049 = vld [vmem:[%s1048] sm:$0x3]
    %s1050 = scalar_lea.vmem %s1, 207
    %v1051 = vpack.c.bf16 0.0, %v1049
    %1052 = vst [vmem:[%s1050] sm:$0x1] %v1051
    %s1053 = scalar_lea.vmem [#allocation0], 172
    %v1054 = vld [vmem:[%s1053] sm:$0x3]
    %s1055 = scalar_lea.vmem %s1, 256
    %v1056 = vpack.c.bf16 0.0, %v1054
    %1057 = vst [vmem:[%s1055] sm:$0x1] %v1056
    %s1058 = scalar_lea.vmem [#allocation0], 74
    %v1059 = vld [vmem:[%s1058] sm:$0x3]
    %s1060 = scalar_lea.vmem %s1, 305
    %v1061 = vpack.c.bf16 0.0, %v1059
    %1062 = vst [vmem:[%s1060] sm:$0x1] %v1061
    %s1063 = scalar_lea.vmem [#allocation0], 648
    %v1064 = vld [vmem:[%s1063] sm:$0x3]
    %s1065 = scalar_lea.vmem %s1, 18
    %v1066 = vpack.c.bf16 0.0, %v1064
    %1067 = vst [vmem:[%s1065] sm:$0x1] %v1066
    %s1068 = scalar_lea.vmem [#allocation0], 550
    %v1069 = vld [vmem:[%s1068] sm:$0x3]
    %s1070 = scalar_lea.vmem %s1, 67
    %v1071 = vpack.c.bf16 0.0, %v1069
    %1072 = vst [vmem:[%s1070] sm:$0x1] %v1071
    %s1073 = scalar_lea.vmem [#allocation0], 452
    %v1074 = vld [vmem:[%s1073] sm:$0x3]
    %s1075 = scalar_lea.vmem %s1, 116
    %v1076 = vpack.c.bf16 0.0, %v1074
    %1077 = vst [vmem:[%s1075] sm:$0x1] %v1076
    %s1078 = scalar_lea.vmem [#allocation0], 354
    %v1079 = vld [vmem:[%s1078] sm:$0x3]
    %s1080 = scalar_lea.vmem %s1, 165
    %v1081 = vpack.c.bf16 0.0, %v1079
    %1082 = vst [vmem:[%s1080] sm:$0x1] %v1081
    %s1083 = scalar_lea.vmem [#allocation0], 256
    %v1084 = vld [vmem:[%s1083] sm:$0x3]
    %s1085 = scalar_lea.vmem %s1, 214
    %v1086 = vpack.c.bf16 0.0, %v1084
    %1087 = vst [vmem:[%s1085] sm:$0x1] %v1086
    %s1088 = scalar_lea.vmem [#allocation0], 158
    %v1089 = vld [vmem:[%s1088] sm:$0x3]
    %s1090 = scalar_lea.vmem %s1, 263
    %v1091 = vpack.c.bf16 0.0, %v1089
    %1092 = vst [vmem:[%s1090] sm:$0x1] %v1091
    %s1093 = scalar_lea.vmem [#allocation0], 60
    %v1094 = vld [vmem:[%s1093] sm:$0x3]
    %s1095 = scalar_lea.vmem %s1, 312
    %v1096 = vpack.c.bf16 0.0, %v1094
    %1097 = vst [vmem:[%s1095] sm:$0x1] %v1096
    %s1098 = scalar_lea.vmem [#allocation0], 634
    %v1099 = vld [vmem:[%s1098] sm:$0x3]
    %s1100 = scalar_lea.vmem %s1, 25
    %v1101 = vpack.c.bf16 0.0, %v1099
    %1102 = vst [vmem:[%s1100] sm:$0x1] %v1101
    %s1103 = scalar_lea.vmem [#allocation0], 536
    %v1104 = vld [vmem:[%s1103] sm:$0x3]
    %s1105 = scalar_lea.vmem %s1, 74
    %v1106 = vpack.c.bf16 0.0, %v1104
    %1107 = vst [vmem:[%s1105] sm:$0x1] %v1106
    %s1108 = scalar_lea.vmem [#allocation0], 438
    %v1109 = vld [vmem:[%s1108] sm:$0x3]
    %s1110 = scalar_lea.vmem %s1, 123
    %v1111 = vpack.c.bf16 0.0, %v1109
    %1112 = vst [vmem:[%s1110] sm:$0x1] %v1111
    %s1113 = scalar_lea.vmem [#allocation0], 340
    %v1114 = vld [vmem:[%s1113] sm:$0x3]
    %s1115 = scalar_lea.vmem %s1, 172
    %v1116 = vpack.c.bf16 0.0, %v1114
    %1117 = vst [vmem:[%s1115] sm:$0x1] %v1116
    %s1118 = scalar_lea.vmem [#allocation0], 242
    %v1119 = vld [vmem:[%s1118] sm:$0x3]
    %s1120 = scalar_lea.vmem %s1, 221
    %v1121 = vpack.c.bf16 0.0, %v1119
    %1122 = vst [vmem:[%s1120] sm:$0x1] %v1121
    %s1123 = scalar_lea.vmem [#allocation0], 144
    %v1124 = vld [vmem:[%s1123] sm:$0x3]
    %s1125 = scalar_lea.vmem %s1, 270
    %v1126 = vpack.c.bf16 0.0, %v1124
    %1127 = vst [vmem:[%s1125] sm:$0x1] %v1126
    %s1128 = scalar_lea.vmem [#allocation0], 46
    %v1129 = vld [vmem:[%s1128] sm:$0x3]
    %s1130 = scalar_lea.vmem %s1, 319
    %v1131 = vpack.c.bf16 0.0, %v1129
    %1132 = vst [vmem:[%s1130] sm:$0x1] %v1131
    %s1133 = scalar_lea.vmem [#allocation0], 620
    %v1134 = vld [vmem:[%s1133] sm:$0x3]
    %s1135 = scalar_lea.vmem %s1, 32
    %v1136 = vpack.c.bf16 0.0, %v1134
    %1137 = vst [vmem:[%s1135] sm:$0x1] %v1136
    %s1138 = scalar_lea.vmem [#allocation0], 522
    %v1139 = vld [vmem:[%s1138] sm:$0x3]
    %s1140 = scalar_lea.vmem %s1, 81
    %v1141 = vpack.c.bf16 0.0, %v1139
    %1142 = vst [vmem:[%s1140] sm:$0x1] %v1141
    %s1143 = scalar_lea.vmem [#allocation0], 424
    %v1144 = vld [vmem:[%s1143] sm:$0x3]
    %s1145 = scalar_lea.vmem %s1, 130
    %v1146 = vpack.c.bf16 0.0, %v1144
    %1147 = vst [vmem:[%s1145] sm:$0x1] %v1146
    %s1148 = scalar_lea.vmem [#allocation0], 326
    %v1149 = vld [vmem:[%s1148] sm:$0x3]
    %s1150 = scalar_lea.vmem %s1, 179
    %v1151 = vpack.c.bf16 0.0, %v1149
    %1152 = vst [vmem:[%s1150] sm:$0x1] %v1151
    %s1153 = scalar_lea.vmem [#allocation0], 228
    %v1154 = vld [vmem:[%s1153] sm:$0x3]
    %s1155 = scalar_lea.vmem %s1, 228
    %v1156 = vpack.c.bf16 0.0, %v1154
    %1157 = vst [vmem:[%s1155] sm:$0x1] %v1156
    %s1158 = scalar_lea.vmem [#allocation0], 130
    %v1159 = vld [vmem:[%s1158] sm:$0x3]
    %s1160 = scalar_lea.vmem %s1, 277
    %v1161 = vpack.c.bf16 0.0, %v1159
    %1162 = vst [vmem:[%s1160] sm:$0x1] %v1161
    %s1163 = scalar_lea.vmem [#allocation0], 32
    %v1164 = vld [vmem:[%s1163] sm:$0x3]
    %s1165 = scalar_lea.vmem %s1, 326
    %v1166 = vpack.c.bf16 0.0, %v1164
    %1167 = vst [vmem:[%s1165] sm:$0x1] %v1166
    %s1168 = scalar_lea.vmem [#allocation0], 606
    %v1169 = vld [vmem:[%s1168] sm:$0x3]
    %s1170 = scalar_lea.vmem %s1, 39
    %v1171 = vpack.c.bf16 0.0, %v1169
    %1172 = vst [vmem:[%s1170] sm:$0x1] %v1171
    %s1173 = scalar_lea.vmem [#allocation0], 508
    %v1174 = vld [vmem:[%s1173] sm:$0x3]
    %s1175 = scalar_lea.vmem %s1, 88
    %v1176 = vpack.c.bf16 0.0, %v1174
    %1177 = vst [vmem:[%s1175] sm:$0x1] %v1176
    %s1178 = scalar_lea.vmem [#allocation0], 410
    %v1179 = vld [vmem:[%s1178] sm:$0x3]
    %s1180 = scalar_lea.vmem %s1, 137
    %v1181 = vpack.c.bf16 0.0, %v1179
    %1182 = vst [vmem:[%s1180] sm:$0x1] %v1181
    %s1183 = scalar_lea.vmem [#allocation0], 312
    %v1184 = vld [vmem:[%s1183] sm:$0x3]
    %s1185 = scalar_lea.vmem %s1, 186
    %v1186 = vpack.c.bf16 0.0, %v1184
    %1187 = vst [vmem:[%s1185] sm:$0x1] %v1186
    %s1188 = scalar_lea.vmem [#allocation0], 214
    %v1189 = vld [vmem:[%s1188] sm:$0x3]
    %s1190 = scalar_lea.vmem %s1, 235
    %v1191 = vpack.c.bf16 0.0, %v1189
    %1192 = vst [vmem:[%s1190] sm:$0x1] %v1191
    %s1193 = scalar_lea.vmem [#allocation0], 116
    %v1194 = vld [vmem:[%s1193] sm:$0x3]
    %s1195 = scalar_lea.vmem %s1, 284
    %v1196 = vpack.c.bf16 0.0, %v1194
    %1197 = vst [vmem:[%s1195] sm:$0x1] %v1196
    %s1198 = scalar_lea.vmem [#allocation0], 18
    %v1199 = vld [vmem:[%s1198] sm:$0x3]
    %s1200 = scalar_lea.vmem %s1, 333
    %v1201 = vpack.c.bf16 0.0, %v1199
    %1202 = vst [vmem:[%s1200] sm:$0x1] %v1201
    %s1203 = scalar_lea.vmem [#allocation0], 592
    %v1204 = vld [vmem:[%s1203] sm:$0x3]
    %s1205 = scalar_lea.vmem %s1, 46
    %v1206 = vpack.c.bf16 0.0, %v1204
    %1207 = vst [vmem:[%s1205] sm:$0x1] %v1206
    %s1208 = scalar_lea.vmem [#allocation0], 494
    %v1209 = vld [vmem:[%s1208] sm:$0x3]
    %s1210 = scalar_lea.vmem %s1, 95
    %v1211 = vpack.c.bf16 0.0, %v1209
    %1212 = vst [vmem:[%s1210] sm:$0x1] %v1211
    %s1213 = scalar_lea.vmem [#allocation0], 396
    %v1214 = vld [vmem:[%s1213] sm:$0x3]
    %s1215 = scalar_lea.vmem %s1, 144
    %v1216 = vpack.c.bf16 0.0, %v1214
    %1217 = vst [vmem:[%s1215] sm:$0x1] %v1216
    %s1218 = scalar_lea.vmem [#allocation0], 298
    %v1219 = vld [vmem:[%s1218] sm:$0x3]
    %s1220 = scalar_lea.vmem %s1, 193
    %v1221 = vpack.c.bf16 0.0, %v1219
    %1222 = vst [vmem:[%s1220] sm:$0x1] %v1221
    %s1223 = scalar_lea.vmem [#allocation0], 200
    %v1224 = vld [vmem:[%s1223] sm:$0x3]
    %s1225 = scalar_lea.vmem %s1, 242
    %v1226 = vpack.c.bf16 0.0, %v1224
    %1227 = vst [vmem:[%s1225] sm:$0x1] %v1226
    %s1228 = scalar_lea.vmem [#allocation0], 102
    %v1229 = vld [vmem:[%s1228] sm:$0x3]
    %s1230 = scalar_lea.vmem %s1, 291
    %v1231 = vpack.c.bf16 0.0, %v1229
    %1232 = vst [vmem:[%s1230] sm:$0x1] %v1231
    %s1233 = scalar_lea.vmem [#allocation0], 4
    %v1234 = vld [vmem:[%s1233] sm:$0x3]
    %s1235 = scalar_lea.vmem %s1, 340
    %v1236 = vpack.c.bf16 0.0, %v1234
    %1237 = vst [vmem:[%s1235] sm:$0x1] %v1236
    %s1238 = scalar_lea.vmem [#allocation0], 674
    %v1239 = vld [vmem:[%s1238] sm:$0x3]
    %s1240 = scalar_lea.vmem %s1, 5
    %v1241 = vpack.c.bf16 0.0, %v1239
    %1242 = vst [vmem:[%s1240] sm:$0x1] %v1241
    %s1243 = scalar_lea.vmem [#allocation0], 576
    %v1244 = vld [vmem:[%s1243] sm:$0x3]
    %s1245 = scalar_lea.vmem %s1, 54
    %v1246 = vpack.c.bf16 0.0, %v1244
    %1247 = vst [vmem:[%s1245] sm:$0x1] %v1246
    %s1248 = scalar_lea.vmem [#allocation0], 478
    %v1249 = vld [vmem:[%s1248] sm:$0x3]
    %s1250 = scalar_lea.vmem %s1, 103
    %v1251 = vpack.c.bf16 0.0, %v1249
    %1252 = vst [vmem:[%s1250] sm:$0x1] %v1251
    %s1253 = scalar_lea.vmem [#allocation0], 380
    %v1254 = vld [vmem:[%s1253] sm:$0x3]
    %s1255 = scalar_lea.vmem %s1, 152
    %v1256 = vpack.c.bf16 0.0, %v1254
    %1257 = vst [vmem:[%s1255] sm:$0x1] %v1256
    %s1258 = scalar_lea.vmem [#allocation0], 282
    %v1259 = vld [vmem:[%s1258] sm:$0x3]
    %s1260 = scalar_lea.vmem %s1, 201
    %v1261 = vpack.c.bf16 0.0, %v1259
    %1262 = vst [vmem:[%s1260] sm:$0x1] %v1261
    %s1263 = scalar_lea.vmem [#allocation0], 184
    %v1264 = vld [vmem:[%s1263] sm:$0x3]
    %s1265 = scalar_lea.vmem %s1, 250
    %v1266 = vpack.c.bf16 0.0, %v1264
    %1267 = vst [vmem:[%s1265] sm:$0x1] %v1266
    %s1268 = scalar_lea.vmem [#allocation0], 86
    %v1269 = vld [vmem:[%s1268] sm:$0x3]
    %s1270 = scalar_lea.vmem %s1, 299
    %v1271 = vpack.c.bf16 0.0, %v1269
    %1272 = vst [vmem:[%s1270] sm:$0x1] %v1271
    %s1273 = scalar_lea.vmem [#allocation0], 660
    %v1274 = vld [vmem:[%s1273] sm:$0x3]
    %s1275 = scalar_lea.vmem %s1, 12
    %v1276 = vpack.c.bf16 0.0, %v1274
    %1277 = vst [vmem:[%s1275] sm:$0x1] %v1276
    %s1278 = scalar_lea.vmem [#allocation0], 562
    %v1279 = vld [vmem:[%s1278] sm:$0x3]
    %s1280 = scalar_lea.vmem %s1, 61
    %v1281 = vpack.c.bf16 0.0, %v1279
    %1282 = vst [vmem:[%s1280] sm:$0x1] %v1281
    %s1283 = scalar_lea.vmem [#allocation0], 464
    %v1284 = vld [vmem:[%s1283] sm:$0x3]
    %s1285 = scalar_lea.vmem %s1, 110
    %v1286 = vpack.c.bf16 0.0, %v1284
    %1287 = vst [vmem:[%s1285] sm:$0x1] %v1286
    %s1288 = scalar_lea.vmem [#allocation0], 366
    %v1289 = vld [vmem:[%s1288] sm:$0x3]
    %s1290 = scalar_lea.vmem %s1, 159
    %v1291 = vpack.c.bf16 0.0, %v1289
    %1292 = vst [vmem:[%s1290] sm:$0x1] %v1291
    %s1293 = scalar_lea.vmem [#allocation0], 268
    %v1294 = vld [vmem:[%s1293] sm:$0x3]
    %s1295 = scalar_lea.vmem %s1, 208
    %v1296 = vpack.c.bf16 0.0, %v1294
    %1297 = vst [vmem:[%s1295] sm:$0x1] %v1296
    %s1298 = scalar_lea.vmem [#allocation0], 170
    %v1299 = vld [vmem:[%s1298] sm:$0x3]
    %s1300 = scalar_lea.vmem %s1, 257
    %v1301 = vpack.c.bf16 0.0, %v1299
    %1302 = vst [vmem:[%s1300] sm:$0x1] %v1301
    %s1303 = scalar_lea.vmem [#allocation0], 72
    %v1304 = vld [vmem:[%s1303] sm:$0x3]
    %s1305 = scalar_lea.vmem %s1, 306
    %v1306 = vpack.c.bf16 0.0, %v1304
    %1307 = vst [vmem:[%s1305] sm:$0x1] %v1306
    %s1308 = scalar_lea.vmem [#allocation0], 646
    %v1309 = vld [vmem:[%s1308] sm:$0x3]
    %s1310 = scalar_lea.vmem %s1, 19
    %v1311 = vpack.c.bf16 0.0, %v1309
    %1312 = vst [vmem:[%s1310] sm:$0x1] %v1311
    %s1313 = scalar_lea.vmem [#allocation0], 548
    %v1314 = vld [vmem:[%s1313] sm:$0x3]
    %s1315 = scalar_lea.vmem %s1, 68
    %v1316 = vpack.c.bf16 0.0, %v1314
    %1317 = vst [vmem:[%s1315] sm:$0x1] %v1316
    %s1318 = scalar_lea.vmem [#allocation0], 450
    %v1319 = vld [vmem:[%s1318] sm:$0x3]
    %s1320 = scalar_lea.vmem %s1, 117
    %v1321 = vpack.c.bf16 0.0, %v1319
    %1322 = vst [vmem:[%s1320] sm:$0x1] %v1321
    %s1323 = scalar_lea.vmem [#allocation0], 352
    %v1324 = vld [vmem:[%s1323] sm:$0x3]
    %s1325 = scalar_lea.vmem %s1, 166
    %v1326 = vpack.c.bf16 0.0, %v1324
    %1327 = vst [vmem:[%s1325] sm:$0x1] %v1326
    %s1328 = scalar_lea.vmem [#allocation0], 254
    %v1329 = vld [vmem:[%s1328] sm:$0x3]
    %s1330 = scalar_lea.vmem %s1, 215
    %v1331 = vpack.c.bf16 0.0, %v1329
    %1332 = vst [vmem:[%s1330] sm:$0x1] %v1331
    %s1333 = scalar_lea.vmem [#allocation0], 156
    %v1334 = vld [vmem:[%s1333] sm:$0x3]
    %s1335 = scalar_lea.vmem %s1, 264
    %v1336 = vpack.c.bf16 0.0, %v1334
    %1337 = vst [vmem:[%s1335] sm:$0x1] %v1336
    %s1338 = scalar_lea.vmem [#allocation0], 58
    %v1339 = vld [vmem:[%s1338] sm:$0x3]
    %s1340 = scalar_lea.vmem %s1, 313
    %v1341 = vpack.c.bf16 0.0, %v1339
    %1342 = vst [vmem:[%s1340] sm:$0x1] %v1341
    %s1343 = scalar_lea.vmem [#allocation0], 632
    %v1344 = vld [vmem:[%s1343] sm:$0x3]
    %s1345 = scalar_lea.vmem %s1, 26
    %v1346 = vpack.c.bf16 0.0, %v1344
    %1347 = vst [vmem:[%s1345] sm:$0x1] %v1346
    %s1348 = scalar_lea.vmem [#allocation0], 534
    %v1349 = vld [vmem:[%s1348] sm:$0x3]
    %s1350 = scalar_lea.vmem %s1, 75
    %v1351 = vpack.c.bf16 0.0, %v1349
    %1352 = vst [vmem:[%s1350] sm:$0x1] %v1351
    %s1353 = scalar_lea.vmem [#allocation0], 436
    %v1354 = vld [vmem:[%s1353] sm:$0x3]
    %s1355 = scalar_lea.vmem %s1, 124
    %v1356 = vpack.c.bf16 0.0, %v1354
    %1357 = vst [vmem:[%s1355] sm:$0x1] %v1356
    %s1358 = scalar_lea.vmem [#allocation0], 338
    %v1359 = vld [vmem:[%s1358] sm:$0x3]
    %s1360 = scalar_lea.vmem %s1, 173
    %v1361 = vpack.c.bf16 0.0, %v1359
    %1362 = vst [vmem:[%s1360] sm:$0x1] %v1361
    %s1363 = scalar_lea.vmem [#allocation0], 240
    %v1364 = vld [vmem:[%s1363] sm:$0x3]
    %s1365 = scalar_lea.vmem %s1, 222
    %v1366 = vpack.c.bf16 0.0, %v1364
    %1367 = vst [vmem:[%s1365] sm:$0x1] %v1366
    %s1368 = scalar_lea.vmem [#allocation0], 142
    %v1369 = vld [vmem:[%s1368] sm:$0x3]
    %s1370 = scalar_lea.vmem %s1, 271
    %v1371 = vpack.c.bf16 0.0, %v1369
    %1372 = vst [vmem:[%s1370] sm:$0x1] %v1371
    %s1373 = scalar_lea.vmem [#allocation0], 44
    %v1374 = vld [vmem:[%s1373] sm:$0x3]
    %s1375 = scalar_lea.vmem %s1, 320
    %v1376 = vpack.c.bf16 0.0, %v1374
    %1377 = vst [vmem:[%s1375] sm:$0x1] %v1376
    %s1378 = scalar_lea.vmem [#allocation0], 618
    %v1379 = vld [vmem:[%s1378] sm:$0x3]
    %s1380 = scalar_lea.vmem %s1, 33
    %v1381 = vpack.c.bf16 0.0, %v1379
    %1382 = vst [vmem:[%s1380] sm:$0x1] %v1381
    %s1383 = scalar_lea.vmem [#allocation0], 520
    %v1384 = vld [vmem:[%s1383] sm:$0x3]
    %s1385 = scalar_lea.vmem %s1, 82
    %v1386 = vpack.c.bf16 0.0, %v1384
    %1387 = vst [vmem:[%s1385] sm:$0x1] %v1386
    %s1388 = scalar_lea.vmem [#allocation0], 422
    %v1389 = vld [vmem:[%s1388] sm:$0x3]
    %s1390 = scalar_lea.vmem %s1, 131
    %v1391 = vpack.c.bf16 0.0, %v1389
    %1392 = vst [vmem:[%s1390] sm:$0x1] %v1391
    %s1393 = scalar_lea.vmem [#allocation0], 324
    %v1394 = vld [vmem:[%s1393] sm:$0x3]
    %s1395 = scalar_lea.vmem %s1, 180
    %v1396 = vpack.c.bf16 0.0, %v1394
    %1397 = vst [vmem:[%s1395] sm:$0x1] %v1396
    %s1398 = scalar_lea.vmem [#allocation0], 226
    %v1399 = vld [vmem:[%s1398] sm:$0x3]
    %s1400 = scalar_lea.vmem %s1, 229
    %v1401 = vpack.c.bf16 0.0, %v1399
    %1402 = vst [vmem:[%s1400] sm:$0x1] %v1401
    %s1403 = scalar_lea.vmem [#allocation0], 128
    %v1404 = vld [vmem:[%s1403] sm:$0x3]
    %s1405 = scalar_lea.vmem %s1, 278
    %v1406 = vpack.c.bf16 0.0, %v1404
    %1407 = vst [vmem:[%s1405] sm:$0x1] %v1406
    %s1408 = scalar_lea.vmem [#allocation0], 30
    %v1409 = vld [vmem:[%s1408] sm:$0x3]
    %s1410 = scalar_lea.vmem %s1, 327
    %v1411 = vpack.c.bf16 0.0, %v1409
    %1412 = vst [vmem:[%s1410] sm:$0x1] %v1411
    %s1413 = scalar_lea.vmem [#allocation0], 604
    %v1414 = vld [vmem:[%s1413] sm:$0x3]
    %s1415 = scalar_lea.vmem %s1, 40
    %v1416 = vpack.c.bf16 0.0, %v1414
    %1417 = vst [vmem:[%s1415] sm:$0x1] %v1416
    %s1418 = scalar_lea.vmem [#allocation0], 506
    %v1419 = vld [vmem:[%s1418] sm:$0x3]
    %s1420 = scalar_lea.vmem %s1, 89
    %v1421 = vpack.c.bf16 0.0, %v1419
    %1422 = vst [vmem:[%s1420] sm:$0x1] %v1421
    %s1423 = scalar_lea.vmem [#allocation0], 408
    %v1424 = vld [vmem:[%s1423] sm:$0x3]
    %s1425 = scalar_lea.vmem %s1, 138
    %v1426 = vpack.c.bf16 0.0, %v1424
    %1427 = vst [vmem:[%s1425] sm:$0x1] %v1426
    %s1428 = scalar_lea.vmem [#allocation0], 310
    %v1429 = vld [vmem:[%s1428] sm:$0x3]
    %s1430 = scalar_lea.vmem %s1, 187
    %v1431 = vpack.c.bf16 0.0, %v1429
    %1432 = vst [vmem:[%s1430] sm:$0x1] %v1431
    %s1433 = scalar_lea.vmem [#allocation0], 212
    %v1434 = vld [vmem:[%s1433] sm:$0x3]
    %s1435 = scalar_lea.vmem %s1, 236
    %v1436 = vpack.c.bf16 0.0, %v1434
    %1437 = vst [vmem:[%s1435] sm:$0x1] %v1436
    %s1438 = scalar_lea.vmem [#allocation0], 114
    %v1439 = vld [vmem:[%s1438] sm:$0x3]
    %s1440 = scalar_lea.vmem %s1, 285
    %v1441 = vpack.c.bf16 0.0, %v1439
    %1442 = vst [vmem:[%s1440] sm:$0x1] %v1441
    %s1443 = scalar_lea.vmem [#allocation0], 16
    %v1444 = vld [vmem:[%s1443] sm:$0x3]
    %s1445 = scalar_lea.vmem %s1, 334
    %v1446 = vpack.c.bf16 0.0, %v1444
    %1447 = vst [vmem:[%s1445] sm:$0x1] %v1446
    %s1448 = scalar_lea.vmem [#allocation0], 590
    %v1449 = vld [vmem:[%s1448] sm:$0x3]
    %s1450 = scalar_lea.vmem %s1, 47
    %v1451 = vpack.c.bf16 0.0, %v1449
    %1452 = vst [vmem:[%s1450] sm:$0x1] %v1451
    %s1453 = scalar_lea.vmem [#allocation0], 492
    %v1454 = vld [vmem:[%s1453] sm:$0x3]
    %s1455 = scalar_lea.vmem %s1, 96
    %v1456 = vpack.c.bf16 0.0, %v1454
    %1457 = vst [vmem:[%s1455] sm:$0x1] %v1456
    %s1458 = scalar_lea.vmem [#allocation0], 394
    %v1459 = vld [vmem:[%s1458] sm:$0x3]
    %s1460 = scalar_lea.vmem %s1, 145
    %v1461 = vpack.c.bf16 0.0, %v1459
    %1462 = vst [vmem:[%s1460] sm:$0x1] %v1461
    %s1463 = scalar_lea.vmem [#allocation0], 296
    %v1464 = vld [vmem:[%s1463] sm:$0x3]
    %s1465 = scalar_lea.vmem %s1, 194
    %v1466 = vpack.c.bf16 0.0, %v1464
    %1467 = vst [vmem:[%s1465] sm:$0x1] %v1466
    %s1468 = scalar_lea.vmem [#allocation0], 198
    %v1469 = vld [vmem:[%s1468] sm:$0x3]
    %s1470 = scalar_lea.vmem %s1, 243
    %v1471 = vpack.c.bf16 0.0, %v1469
    %1472 = vst [vmem:[%s1470] sm:$0x1] %v1471
    %s1473 = scalar_lea.vmem [#allocation0], 100
    %v1474 = vld [vmem:[%s1473] sm:$0x3]
    %s1475 = scalar_lea.vmem %s1, 292
    %v1476 = vpack.c.bf16 0.0, %v1474
    %1477 = vst [vmem:[%s1475] sm:$0x1] %v1476
    %s1478 = scalar_lea.vmem [#allocation0], 2
    %v1479 = vld [vmem:[%s1478] sm:$0x3]
    %s1480 = scalar_lea.vmem %s1, 341
    %v1481 = vpack.c.bf16 0.0, %v1479
    %1482 = vst [vmem:[%s1480] sm:$0x1] %v1481
    %s1483 = scalar_lea.vmem [#allocation0], 672
    %v1484 = vld [vmem:[%s1483] sm:$0x3]
    %s1485 = scalar_lea.vmem %s1, 6
    %v1486 = vpack.c.bf16 0.0, %v1484
    %1487 = vst [vmem:[%s1485] sm:$0x1] %v1486
    %s1488 = scalar_lea.vmem [#allocation0], 574
    %v1489 = vld [vmem:[%s1488] sm:$0x3]
    %s1490 = scalar_lea.vmem %s1, 55
    %v1491 = vpack.c.bf16 0.0, %v1489
    %1492 = vst [vmem:[%s1490] sm:$0x1] %v1491
    %s1493 = scalar_lea.vmem [#allocation0], 476
    %v1494 = vld [vmem:[%s1493] sm:$0x3]
    %s1495 = scalar_lea.vmem %s1, 104
    %v1496 = vpack.c.bf16 0.0, %v1494
    %1497 = vst [vmem:[%s1495] sm:$0x1] %v1496
    %s1498 = scalar_lea.vmem [#allocation0], 378
    %v1499 = vld [vmem:[%s1498] sm:$0x3]
    %s1500 = scalar_lea.vmem %s1, 153
    %v1501 = vpack.c.bf16 0.0, %v1499
    %1502 = vst [vmem:[%s1500] sm:$0x1] %v1501
    %s1503 = scalar_lea.vmem [#allocation0], 280
    %v1504 = vld [vmem:[%s1503] sm:$0x3]
    %s1505 = scalar_lea.vmem %s1, 202
    %v1506 = vpack.c.bf16 0.0, %v1504
    %1507 = vst [vmem:[%s1505] sm:$0x1] %v1506
    %s1508 = scalar_lea.vmem [#allocation0], 182
    %v1509 = vld [vmem:[%s1508] sm:$0x3]
    %s1510 = scalar_lea.vmem %s1, 251
    %v1511 = vpack.c.bf16 0.0, %v1509
    %1512 = vst [vmem:[%s1510] sm:$0x1] %v1511
    %s1513 = scalar_lea.vmem [#allocation0], 84
    %v1514 = vld [vmem:[%s1513] sm:$0x3]
    %s1515 = scalar_lea.vmem %s1, 300
    %v1516 = vpack.c.bf16 0.0, %v1514
    %1517 = vst [vmem:[%s1515] sm:$0x1] %v1516
    %s1518 = scalar_lea.vmem [#allocation0], 658
    %v1519 = vld [vmem:[%s1518] sm:$0x3]
    %s1520 = scalar_lea.vmem %s1, 13
    %v1521 = vpack.c.bf16 0.0, %v1519
    %1522 = vst [vmem:[%s1520] sm:$0x1] %v1521
    %s1523 = scalar_lea.vmem [#allocation0], 560
    %v1524 = vld [vmem:[%s1523] sm:$0x3]
    %s1525 = scalar_lea.vmem %s1, 62
    %v1526 = vpack.c.bf16 0.0, %v1524
    %1527 = vst [vmem:[%s1525] sm:$0x1] %v1526
    %s1528 = scalar_lea.vmem [#allocation0], 462
    %v1529 = vld [vmem:[%s1528] sm:$0x3]
    %s1530 = scalar_lea.vmem %s1, 111
    %v1531 = vpack.c.bf16 0.0, %v1529
    %1532 = vst [vmem:[%s1530] sm:$0x1] %v1531
    %s1533 = scalar_lea.vmem [#allocation0], 364
    %v1534 = vld [vmem:[%s1533] sm:$0x3]
    %s1535 = scalar_lea.vmem %s1, 160
    %v1536 = vpack.c.bf16 0.0, %v1534
    %1537 = vst [vmem:[%s1535] sm:$0x1] %v1536
    %s1538 = scalar_lea.vmem [#allocation0], 266
    %v1539 = vld [vmem:[%s1538] sm:$0x3]
    %s1540 = scalar_lea.vmem %s1, 209
    %v1541 = vpack.c.bf16 0.0, %v1539
    %1542 = vst [vmem:[%s1540] sm:$0x1] %v1541
    %s1543 = scalar_lea.vmem [#allocation0], 168
    %v1544 = vld [vmem:[%s1543] sm:$0x3]
    %s1545 = scalar_lea.vmem %s1, 258
    %v1546 = vpack.c.bf16 0.0, %v1544
    %1547 = vst [vmem:[%s1545] sm:$0x1] %v1546
    %s1548 = scalar_lea.vmem [#allocation0], 70
    %v1549 = vld [vmem:[%s1548] sm:$0x3]
    %s1550 = scalar_lea.vmem %s1, 307
    %v1551 = vpack.c.bf16 0.0, %v1549
    %1552 = vst [vmem:[%s1550] sm:$0x1] %v1551
    %s1553 = scalar_lea.vmem [#allocation0], 644
    %v1554 = vld [vmem:[%s1553] sm:$0x3]
    %s1555 = scalar_lea.vmem %s1, 20
    %v1556 = vpack.c.bf16 0.0, %v1554
    %1557 = vst [vmem:[%s1555] sm:$0x1] %v1556
    %s1558 = scalar_lea.vmem [#allocation0], 546
    %v1559 = vld [vmem:[%s1558] sm:$0x3]
    %s1560 = scalar_lea.vmem %s1, 69
    %v1561 = vpack.c.bf16 0.0, %v1559
    %1562 = vst [vmem:[%s1560] sm:$0x1] %v1561
    %s1563 = scalar_lea.vmem [#allocation0], 448
    %v1564 = vld [vmem:[%s1563] sm:$0x3]
    %s1565 = scalar_lea.vmem %s1, 118
    %v1566 = vpack.c.bf16 0.0, %v1564
    %1567 = vst [vmem:[%s1565] sm:$0x1] %v1566
    %s1568 = scalar_lea.vmem [#allocation0], 350
    %v1569 = vld [vmem:[%s1568] sm:$0x3]
    %s1570 = scalar_lea.vmem %s1, 167
    %v1571 = vpack.c.bf16 0.0, %v1569
    %1572 = vst [vmem:[%s1570] sm:$0x1] %v1571
    %s1573 = scalar_lea.vmem [#allocation0], 252
    %v1574 = vld [vmem:[%s1573] sm:$0x3]
    %s1575 = scalar_lea.vmem %s1, 216
    %v1576 = vpack.c.bf16 0.0, %v1574
    %1577 = vst [vmem:[%s1575] sm:$0x1] %v1576
    %s1578 = scalar_lea.vmem [#allocation0], 154
    %v1579 = vld [vmem:[%s1578] sm:$0x3]
    %s1580 = scalar_lea.vmem %s1, 265
    %v1581 = vpack.c.bf16 0.0, %v1579
    %1582 = vst [vmem:[%s1580] sm:$0x1] %v1581
    %s1583 = scalar_lea.vmem [#allocation0], 56
    %v1584 = vld [vmem:[%s1583] sm:$0x3]
    %s1585 = scalar_lea.vmem %s1, 314
    %v1586 = vpack.c.bf16 0.0, %v1584
    %1587 = vst [vmem:[%s1585] sm:$0x1] %v1586
    %s1588 = scalar_lea.vmem [#allocation0], 630
    %v1589 = vld [vmem:[%s1588] sm:$0x3]
    %s1590 = scalar_lea.vmem %s1, 27
    %v1591 = vpack.c.bf16 0.0, %v1589
    %1592 = vst [vmem:[%s1590] sm:$0x1] %v1591
    %s1593 = scalar_lea.vmem [#allocation0], 532
    %v1594 = vld [vmem:[%s1593] sm:$0x3]
    %s1595 = scalar_lea.vmem %s1, 76
    %v1596 = vpack.c.bf16 0.0, %v1594
    %1597 = vst [vmem:[%s1595] sm:$0x1] %v1596
    %s1598 = scalar_lea.vmem [#allocation0], 434
    %v1599 = vld [vmem:[%s1598] sm:$0x3]
    %s1600 = scalar_lea.vmem %s1, 125
    %v1601 = vpack.c.bf16 0.0, %v1599
    %1602 = vst [vmem:[%s1600] sm:$0x1] %v1601
    %s1603 = scalar_lea.vmem [#allocation0], 336
    %v1604 = vld [vmem:[%s1603] sm:$0x3]
    %s1605 = scalar_lea.vmem %s1, 174
    %v1606 = vpack.c.bf16 0.0, %v1604
    %1607 = vst [vmem:[%s1605] sm:$0x1] %v1606
    %s1608 = scalar_lea.vmem [#allocation0], 238
    %v1609 = vld [vmem:[%s1608] sm:$0x3]
    %s1610 = scalar_lea.vmem %s1, 223
    %v1611 = vpack.c.bf16 0.0, %v1609
    %1612 = vst [vmem:[%s1610] sm:$0x1] %v1611
    %s1613 = scalar_lea.vmem [#allocation0], 140
    %v1614 = vld [vmem:[%s1613] sm:$0x3]
    %s1615 = scalar_lea.vmem %s1, 272
    %v1616 = vpack.c.bf16 0.0, %v1614
    %1617 = vst [vmem:[%s1615] sm:$0x1] %v1616
    %s1618 = scalar_lea.vmem [#allocation0], 42
    %v1619 = vld [vmem:[%s1618] sm:$0x3]
    %s1620 = scalar_lea.vmem %s1, 321
    %v1621 = vpack.c.bf16 0.0, %v1619
    %1622 = vst [vmem:[%s1620] sm:$0x1] %v1621
    %s1623 = scalar_lea.vmem [#allocation0], 616
    %v1624 = vld [vmem:[%s1623] sm:$0x3]
    %s1625 = scalar_lea.vmem %s1, 34
    %v1626 = vpack.c.bf16 0.0, %v1624
    %1627 = vst [vmem:[%s1625] sm:$0x1] %v1626
    %s1628 = scalar_lea.vmem [#allocation0], 518
    %v1629 = vld [vmem:[%s1628] sm:$0x3]
    %s1630 = scalar_lea.vmem %s1, 83
    %v1631 = vpack.c.bf16 0.0, %v1629
    %1632 = vst [vmem:[%s1630] sm:$0x1] %v1631
    %s1633 = scalar_lea.vmem [#allocation0], 420
    %v1634 = vld [vmem:[%s1633] sm:$0x3]
    %s1635 = scalar_lea.vmem %s1, 132
    %v1636 = vpack.c.bf16 0.0, %v1634
    %1637 = vst [vmem:[%s1635] sm:$0x1] %v1636
    %s1638 = scalar_lea.vmem [#allocation0], 322
    %v1639 = vld [vmem:[%s1638] sm:$0x3]
    %s1640 = scalar_lea.vmem %s1, 181
    %v1641 = vpack.c.bf16 0.0, %v1639
    %1642 = vst [vmem:[%s1640] sm:$0x1] %v1641
    %s1643 = scalar_lea.vmem [#allocation0], 224
    %v1644 = vld [vmem:[%s1643] sm:$0x3]
    %s1645 = scalar_lea.vmem %s1, 230
    %v1646 = vpack.c.bf16 0.0, %v1644
    %1647 = vst [vmem:[%s1645] sm:$0x1] %v1646
    %s1648 = scalar_lea.vmem [#allocation0], 126
    %v1649 = vld [vmem:[%s1648] sm:$0x3]
    %s1650 = scalar_lea.vmem %s1, 279
    %v1651 = vpack.c.bf16 0.0, %v1649
    %1652 = vst [vmem:[%s1650] sm:$0x1] %v1651
    %s1653 = scalar_lea.vmem [#allocation0], 28
    %v1654 = vld [vmem:[%s1653] sm:$0x3]
    %s1655 = scalar_lea.vmem %s1, 328
    %v1656 = vpack.c.bf16 0.0, %v1654
    %1657 = vst [vmem:[%s1655] sm:$0x1] %v1656
    %s1658 = scalar_lea.vmem [#allocation0], 602
    %v1659 = vld [vmem:[%s1658] sm:$0x3]
    %s1660 = scalar_lea.vmem %s1, 41
    %v1661 = vpack.c.bf16 0.0, %v1659
    %1662 = vst [vmem:[%s1660] sm:$0x1] %v1661
    %s1663 = scalar_lea.vmem [#allocation0], 504
    %v1664 = vld [vmem:[%s1663] sm:$0x3]
    %s1665 = scalar_lea.vmem %s1, 90
    %v1666 = vpack.c.bf16 0.0, %v1664
    %1667 = vst [vmem:[%s1665] sm:$0x1] %v1666
    %s1668 = scalar_lea.vmem [#allocation0], 406
    %v1669 = vld [vmem:[%s1668] sm:$0x3]
    %s1670 = scalar_lea.vmem %s1, 139
    %v1671 = vpack.c.bf16 0.0, %v1669
    %1672 = vst [vmem:[%s1670] sm:$0x1] %v1671
    %s1673 = scalar_lea.vmem [#allocation0], 308
    %v1674 = vld [vmem:[%s1673] sm:$0x3]
    %s1675 = scalar_lea.vmem %s1, 188
    %v1676 = vpack.c.bf16 0.0, %v1674
    %1677 = vst [vmem:[%s1675] sm:$0x1] %v1676
    %s1678 = scalar_lea.vmem [#allocation0], 210
    %v1679 = vld [vmem:[%s1678] sm:$0x3]
    %s1680 = scalar_lea.vmem %s1, 237
    %v1681 = vpack.c.bf16 0.0, %v1679
    %1682 = vst [vmem:[%s1680] sm:$0x1] %v1681
    %s1683 = scalar_lea.vmem [#allocation0], 112
    %v1684 = vld [vmem:[%s1683] sm:$0x3]
    %s1685 = scalar_lea.vmem %s1, 286
    %v1686 = vpack.c.bf16 0.0, %v1684
    %1687 = vst [vmem:[%s1685] sm:$0x1] %v1686
    %s1688 = scalar_lea.vmem [#allocation0], 14
    %v1689 = vld [vmem:[%s1688] sm:$0x3]
    %s1690 = scalar_lea.vmem %s1, 335
    %v1691 = vpack.c.bf16 0.0, %v1689
    %1692 = vst [vmem:[%s1690] sm:$0x1] %v1691
    %s1693 = scalar_lea.vmem [#allocation0], 588
    %v1694 = vld [vmem:[%s1693] sm:$0x3]
    %s1695 = scalar_lea.vmem %s1, 48
    %v1696 = vpack.c.bf16 0.0, %v1694
    %1697 = vst [vmem:[%s1695] sm:$0x1] %v1696
    %s1698 = scalar_lea.vmem [#allocation0], 490
    %v1699 = vld [vmem:[%s1698] sm:$0x3]
    %s1700 = scalar_lea.vmem %s1, 97
    %v1701 = vpack.c.bf16 0.0, %v1699
    %1702 = vst [vmem:[%s1700] sm:$0x1] %v1701
    %s1703 = scalar_lea.vmem [#allocation0], 392
    %v1704 = vld [vmem:[%s1703] sm:$0x3]
    %s1705 = scalar_lea.vmem %s1, 146
    %v1706 = vpack.c.bf16 0.0, %v1704
    %1707 = vst [vmem:[%s1705] sm:$0x1] %v1706
    %s1708 = scalar_lea.vmem [#allocation0], 294
    %v1709 = vld [vmem:[%s1708] sm:$0x3]
    %s1710 = scalar_lea.vmem %s1, 195
    %v1711 = vpack.c.bf16 0.0, %v1709
    %1712 = vst [vmem:[%s1710] sm:$0x1] %v1711
    %s1713 = scalar_lea.vmem [#allocation0], 196
    %v1714 = vld [vmem:[%s1713] sm:$0x3]
    %s1715 = scalar_lea.vmem %s1, 244
    %v1716 = vpack.c.bf16 0.0, %v1714
    %1717 = vst [vmem:[%s1715] sm:$0x1] %v1716
    %s1718 = scalar_lea.vmem [#allocation0], 98
    %v1719 = vld [vmem:[%s1718] sm:$0x3]
    %s1720 = scalar_lea.vmem %s1, 293
    %v1721 = vpack.c.bf16 0.0, %v1719
    %1722 = vst [vmem:[%s1720] sm:$0x1] %v1721
    %v1723 = vld [vmem:[#allocation0] sm:$0x3]
    %s1724 = scalar_lea.vmem %s1, 342
    %v1725 = vpack.c.bf16 0.0, %v1723
    %1726 = vst [vmem:[%s1724] sm:$0x1] %v1725
    %1727 = vsyncpa [#allocation1], 1

// kernel: reverse
$region0: #{reverse}
  %s0 = inlined_call_operand.vmem [shape: f32[11,11,11,2,8], index: 0, kind: input, shape index: {}]
  %s1 = inlined_call_operand.vmem [shape: bf16[11,11,11,2,8], index: 1, kind: output, shape index: {}]
  %v2 = vlaneseq
  %v3 = vsub.s32 10, %v2
  %4 = vset.pattern.permute.xlu0 %v3
  $region1: #{reverse} parent=0
    #allocation0 [shape = 'u8[991232]{0}', space=vmem, size = 0xf2000, scoped, tag = 'operand span for operand 0']
    #allocation1 [shape = 'u8[495616]{0}', space=vmem, size = 0x79000, scoped, tag = 'operand span for operand 1']
    #allocation2 [shape = 'u8[495616]{0}', space=vmem, size = 0x79000, scoped, tag = 'packed  for operand 1']
    loop: start=0, step=1, limit=4
    $region2: #{reverse} parent=1 // loop_pre_header
      _
    $region3: #{reverse} parent=1 // loop_header
      %s6 = sphi 0, %s10
      %p7 = scmp.ge.s32.totalorder %s6, 4
      %s13 = sphi 0, %s46
      %s14 = sphi 0, %s42
      %s15 = sphi 0, %s38
      %s16 = sphi 0, %s34
      %s17 = sphi 0, %s30
      %s18 = sphi 0, %s13
      %s19 = sphi 0, %s14
      %s20 = sphi 0, %s15
      %s21 = sphi 0, %s16
      %s22 = sphi 0, %s17
      %s23 = sphi 0, %s18
      %s24 = sphi 0, %s19
      %s25 = sphi 0, %s20
      %s26 = sphi 0, %s21
      %s27 = sphi 0, %s22
    $region4: #{reverse} parent=1 // loop_header_branch
      %9 = sbr.rel (%p7) target = $region8
    $region5: #{reverse} parent=1 // loop_body
      %s11 = ssub.s32 %s6, 1
      %s12 = ssub.s32 %s6, 2
      %s28 = sadd.s32 1, %s17
      %p29 = scmp.ge.s32.totalorder %s28, 1
      %s30 = scalar_select %p29, 0, %s28
      %s31 = sadd.s32 1, %s16
      %s32 = scalar_select %p29, %s31, %s16
      %p33 = scmp.ge.s32.totalorder %s32, 1
      %s34 = scalar_select %p33, 0, %s32
      %s35 = sadd.s32 1, %s15
      %s36 = scalar_select %p33, %s35, %s15
      %p37 = scmp.ge.s32.totalorder %s36, 2
      %s38 = scalar_select %p37, 0, %s36
      %s39 = sadd.s32 1, %s14
      %s40 = scalar_select %p37, %s39, %s14
      %p41 = scmp.ge.s32.totalorder %s40, 1
      %s42 = scalar_select %p41, 0, %s40
      %s43 = sadd.s32 1, %s13
      %s44 = scalar_select %p41, %s43, %s13
      %p45 = scmp.ge.s32.totalorder %s44, 1
      %s46 = scalar_select %p45, 0, %s44
      %p47 = scmp.le.s32.totalorder 1, %s6
      %p48 = scmp.lt.s32.totalorder %s6, 3
      %p49 = pnand %p47, %p48
      %p50 = pneg %p49
      // Predicated region
      $region9: #{reverse} parent=5 // pred_check
        _
      $region10: #{reverse} parent=5 // pred_check_branch
        %52 = sbr.rel (%p49) target = $region12
      $region11: #{reverse} parent=5 // pred_region
        %s53 = ssub.s32 %s6, 1
      $region12: #{reverse} parent=5 // pred_fallthru
        _
      %p54 = scmp.lt.s32.totalorder %s6, 2
      // Predicated region
      $region13: #{reverse} parent=5 // pred_check
        %p55 = pneg %p54
      $region14: #{reverse} parent=5 // pred_check_branch
        %57 = sbr.rel (%p55) target = $region16
      $region15: #{reverse} parent=5 // pred_region
        %s58 = sand.u32 %s6, 1
        %s59 = sand.u32 %s6, 1
        %s60 = smul.addr %s59, 968
        %s61 = scalar_lea.vmem [#allocation0], %s60
        %s62 = ssub.s32 0, %s13
        %s63 = ssub.s32 0, %s14
        %s64 = ssub.s32 0, %s17
        %s65 = smul.u32 11, %s62
        %s66 = smul.u32 11, %s63
        %s67 = sadd.s32 %s64, %s16
        %s68 = sadd.s32 %s67, %s15
        %s69 = smul.addr %s66, 2
        %s70 = sadd.s32 %s68, %s69
        %s71 = smul.addr %s65, 22
        %s72 = sadd.s32 %s70, %s71
        %s73 = smul.addr %s72, 8
        %s74 = scalar_lea.vmem %s0, %s73
        // Predicated region
        $region17: #{reverse} parent=15 // pred_check
          _
        $region18: #{reverse} parent=15 // pred_check_branch
          %76 = sbr.rel (0) target = $region20
        $region19: #{reverse} parent=15 // pred_region
          // Predicated region
          $region21: #{reverse} parent=19 // pred_check
            _
          $region22: #{reverse} parent=19 // pred_check_branch
            %78 = sbr.rel (0) target = $region24
          $region23: #{reverse} parent=19 // pred_region
            // Predicated region
            $region36: #{reverse} parent=23 // pred_check
              _
            $region37: #{reverse} parent=23 // pred_check_branch
              %334 = sbr.rel (0) target = $region39
            $region38: #{reverse} parent=23 // pred_region
              loop: start=0, step=1, limit=1
              $region40: #{reverse} parent=38 // loop_pre_header
                _
              $region41: #{reverse} parent=38 // loop_header
                %s336 = sphi 0, %s340
                %p337 = scmp.ge.s32.totalorder %s336, 1
                %s341 = sphi %s74, %s74
                %s342 = sphi %s61, %s61
              $region42: #{reverse} parent=38 // loop_header_branch
                %339 = sbr.rel (%p337) target = $region46
              $region43: #{reverse} parent=38 // loop_body
                %v343 = vld [vmem:[%s341] sm:$0xff]
                %344 = vst [vmem:[%s342] sm:$0xff] %v343
                %v345 = vld [vmem:[%s341 + $0x10] sm:$0xff]
                %346 = vst [vmem:[%s342 + $0x8] sm:$0xff] %v345
                %v347 = vld [vmem:[%s341 + $0x20] sm:$0xff]
                %348 = vst [vmem:[%s342 + $0x10] sm:$0xff] %v347
                %v349 = vld [vmem:[%s341 + $0x30] sm:$0xff]
                %350 = vst [vmem:[%s342 + $0x18] sm:$0xff] %v349
                %v351 = vld [vmem:[%s341 + $0x40] sm:$0xff]
                %352 = vst [vmem:[%s342 + $0x20] sm:$0xff] %v351
                %v353 = vld [vmem:[%s341 + $0x50] sm:$0xff]
                %354 = vst [vmem:[%s342 + $0x28] sm:$0xff] %v353
                %v355 = vld [vmem:[%s341 + $0x60] sm:$0xff]
                %356 = vst [vmem:[%s342 + $0x30] sm:$0xff] %v355
                %v357 = vld [vmem:[%s341 + $0x70] sm:$0xff]
                %358 = vst [vmem:[%s342 + $0x38] sm:$0xff] %v357
                %v359 = vld [vmem:[%s341 + $0x80] sm:$0xff]
                %360 = vst [vmem:[%s342 + $0x40] sm:$0xff] %v359
                %v361 = vld [vmem:[%s341 + $0x90] sm:$0xff]
                %362 = vst [vmem:[%s342 + $0x48] sm:$0xff] %v361
                %v363 = vld [vmem:[%s341 + $0xa0] sm:$0xff]
                %364 = vst [vmem:[%s342 + $0x50] sm:$0xff] %v363
                %v365 = vld [vmem:[%s341 + $0xb0] sm:$0xff]
                %366 = vst [vmem:[%s342 + $0x58] sm:$0xff] %v365
                %v367 = vld [vmem:[%s341 + $0xc0] sm:$0xff]
                %368 = vst [vmem:[%s342 + $0x60] sm:$0xff] %v367
                %v369 = vld [vmem:[%s341 + $0xd0] sm:$0xff]
                %370 = vst [vmem:[%s342 + $0x68] sm:$0xff] %v369
                %v371 = vld [vmem:[%s341 + $0xe0] sm:$0xff]
                %372 = vst [vmem:[%s342 + $0x70] sm:$0xff] %v371
                %v373 = vld [vmem:[%s341 + $0xf0] sm:$0xff]
                %374 = vst [vmem:[%s342 + $0x78] sm:$0xff] %v373
                %v375 = vld [vmem:[%s341 + $0x100] sm:$0xff]
                %376 = vst [vmem:[%s342 + $0x80] sm:$0xff] %v375
                %v377 = vld [vmem:[%s341 + $0x110] sm:$0xff]
                %378 = vst [vmem:[%s342 + $0x88] sm:$0xff] %v377
                %v379 = vld [vmem:[%s341 + $0x120] sm:$0xff]
                %380 = vst [vmem:[%s342 + $0x90] sm:$0xff] %v379
                %v381 = vld [vmem:[%s341 + $0x130] sm:$0xff]
                %382 = vst [vmem:[%s342 + $0x98] sm:$0xff] %v381
                %v383 = vld [vmem:[%s341 + $0x140] sm:$0xff]
                %384 = vst [vmem:[%s342 + $0xa0] sm:$0xff] %v383
                %v385 = vld [vmem:[%s341 + $0x150] sm:$0xff]
                %386 = vst [vmem:[%s342 + $0xa8] sm:$0xff] %v385
                %v387 = vld [vmem:[%s341 + $0x160] sm:$0xff]
                %388 = vst [vmem:[%s342 + $0xb0] sm:$0xff] %v387
                %v389 = vld [vmem:[%s341 + $0x170] sm:$0xff]
                %390 = vst [vmem:[%s342 + $0xb8] sm:$0xff] %v389
                %v391 = vld [vmem:[%s341 + $0x180] sm:$0xff]
                %392 = vst [vmem:[%s342 + $0xc0] sm:$0xff] %v391
                %v393 = vld [vmem:[%s341 + $0x190] sm:$0xff]
                %394 = vst [vmem:[%s342 + $0xc8] sm:$0xff] %v393
                %v395 = vld [vmem:[%s341 + $0x1a0] sm:$0xff]
                %396 = vst [vmem:[%s342 + $0xd0] sm:$0xff] %v395
                %v397 = vld [vmem:[%s341 + $0x1b0] sm:$0xff]
                %398 = vst [vmem:[%s342 + $0xd8] sm:$0xff] %v397
                %v399 = vld [vmem:[%s341 + $0x1c0] sm:$0xff]
                %400 = vst [vmem:[%s342 + $0xe0] sm:$0xff] %v399
                %v401 = vld [vmem:[%s341 + $0x1d0] sm:$0xff]
                %402 = vst [vmem:[%s342 + $0xe8] sm:$0xff] %v401
                %v403 = vld [vmem:[%s341 + $0x1e0] sm:$0xff]
                %404 = vst [vmem:[%s342 + $0xf0] sm:$0xff] %v403
                %v405 = vld [vmem:[%s341 + $0x1f0] sm:$0xff]
                %406 = vst [vmem:[%s342 + $0xf8] sm:$0xff] %v405
                %v407 = vld [vmem:[%s341 + $0x200] sm:$0xff]
                %408 = vst [vmem:[%s342 + $0x100] sm:$0xff] %v407
                %v409 = vld [vmem:[%s341 + $0x210] sm:$0xff]
                %410 = vst [vmem:[%s342 + $0x108] sm:$0xff] %v409
                %v411 = vld [vmem:[%s341 + $0x220] sm:$0xff]
                %412 = vst [vmem:[%s342 + $0x110] sm:$0xff] %v411
                %v413 = vld [vmem:[%s341 + $0x230] sm:$0xff]
                %414 = vst [vmem:[%s342 + $0x118] sm:$0xff] %v413
                %v415 = vld [vmem:[%s341 + $0x240] sm:$0xff]
                %416 = vst [vmem:[%s342 + $0x120] sm:$0xff] %v415
                %v417 = vld [vmem:[%s341 + $0x250] sm:$0xff]
                %418 = vst [vmem:[%s342 + $0x128] sm:$0xff] %v417
                %v419 = vld [vmem:[%s341 + $0x260] sm:$0xff]
                %420 = vst [vmem:[%s342 + $0x130] sm:$0xff] %v419
                %v421 = vld [vmem:[%s341 + $0x270] sm:$0xff]
                %422 = vst [vmem:[%s342 + $0x138] sm:$0xff] %v421
                %v423 = vld [vmem:[%s341 + $0x280] sm:$0xff]
                %424 = vst [vmem:[%s342 + $0x140] sm:$0xff] %v423
                %v425 = vld [vmem:[%s341 + $0x290] sm:$0xff]
                %426 = vst [vmem:[%s342 + $0x148] sm:$0xff] %v425
                %v427 = vld [vmem:[%s341 + $0x2a0] sm:$0xff]
                %428 = vst [vmem:[%s342 + $0x150] sm:$0xff] %v427
                %v429 = vld [vmem:[%s341 + $0x2b0] sm:$0xff]
                %430 = vst [vmem:[%s342 + $0x158] sm:$0xff] %v429
                %v431 = vld [vmem:[%s341 + $0x2c0] sm:$0xff]
                %432 = vst [vmem:[%s342 + $0x160] sm:$0xff] %v431
                %v433 = vld [vmem:[%s341 + $0x2d0] sm:$0xff]
                %434 = vst [vmem:[%s342 + $0x168] sm:$0xff] %v433
                %v435 = vld [vmem:[%s341 + $0x2e0] sm:$0xff]
                %436 = vst [vmem:[%s342 + $0x170] sm:$0xff] %v435
                %v437 = vld [vmem:[%s341 + $0x2f0] sm:$0xff]
                %438 = vst [vmem:[%s342 + $0x178] sm:$0xff] %v437
                %v439 = vld [vmem:[%s341 + $0x300] sm:$0xff]
                %440 = vst [vmem:[%s342 + $0x180] sm:$0xff] %v439
                %v441 = vld [vmem:[%s341 + $0x310] sm:$0xff]
                %442 = vst [vmem:[%s342 + $0x188] sm:$0xff] %v441
                %v443 = vld [vmem:[%s341 + $0x320] sm:$0xff]
                %444 = vst [vmem:[%s342 + $0x190] sm:$0xff] %v443
                %v445 = vld [vmem:[%s341 + $0x330] sm:$0xff]
                %446 = vst [vmem:[%s342 + $0x198] sm:$0xff] %v445
                %v447 = vld [vmem:[%s341 + $0x340] sm:$0xff]
                %448 = vst [vmem:[%s342 + $0x1a0] sm:$0xff] %v447
                %v449 = vld [vmem:[%s341 + $0x350] sm:$0xff]
                %450 = vst [vmem:[%s342 + $0x1a8] sm:$0xff] %v449
                %v451 = vld [vmem:[%s341 + $0x360] sm:$0xff]
                %452 = vst [vmem:[%s342 + $0x1b0] sm:$0xff] %v451
                %v453 = vld [vmem:[%s341 + $0x370] sm:$0xff]
                %454 = vst [vmem:[%s342 + $0x1b8] sm:$0xff] %v453
                %v455 = vld [vmem:[%s341 + $0x380] sm:$0xff]
                %456 = vst [vmem:[%s342 + $0x1c0] sm:$0xff] %v455
                %v457 = vld [vmem:[%s341 + $0x390] sm:$0xff]
                %458 = vst [vmem:[%s342 + $0x1c8] sm:$0xff] %v457
                %v459 = vld [vmem:[%s341 + $0x3a0] sm:$0xff]
                %460 = vst [vmem:[%s342 + $0x1d0] sm:$0xff] %v459
                %v461 = vld [vmem:[%s341 + $0x3b0] sm:$0xff]
                %462 = vst [vmem:[%s342 + $0x1d8] sm:$0xff] %v461
                %v463 = vld [vmem:[%s341 + $0x3c0] sm:$0xff]
                %464 = vst [vmem:[%s342 + $0x1e0] sm:$0xff] %v463
                %v465 = vld [vmem:[%s341 + $0x3d0] sm:$0xff]
                %466 = vst [vmem:[%s342 + $0x1e8] sm:$0xff] %v465
                %v467 = vld [vmem:[%s341 + $0x3e0] sm:$0xff]
                %468 = vst [vmem:[%s342 + $0x1f0] sm:$0xff] %v467
                %v469 = vld [vmem:[%s341 + $0x3f0] sm:$0xff]
                %470 = vst [vmem:[%s342 + $0x1f8] sm:$0xff] %v469
                %v471 = vld [vmem:[%s341 + $0x400] sm:$0xff]
                %472 = vst [vmem:[%s342 + $0x200] sm:$0xff] %v471
                %v473 = vld [vmem:[%s341 + $0x410] sm:$0xff]
                %474 = vst [vmem:[%s342 + $0x208] sm:$0xff] %v473
                %v475 = vld [vmem:[%s341 + $0x420] sm:$0xff]
                %476 = vst [vmem:[%s342 + $0x210] sm:$0xff] %v475
                %v477 = vld [vmem:[%s341 + $0x430] sm:$0xff]
                %478 = vst [vmem:[%s342 + $0x218] sm:$0xff] %v477
                %v479 = vld [vmem:[%s341 + $0x440] sm:$0xff]
                %480 = vst [vmem:[%s342 + $0x220] sm:$0xff] %v479
                %v481 = vld [vmem:[%s341 + $0x450] sm:$0xff]
                %482 = vst [vmem:[%s342 + $0x228] sm:$0xff] %v481
                %v483 = vld [vmem:[%s341 + $0x460] sm:$0xff]
                %484 = vst [vmem:[%s342 + $0x230] sm:$0xff] %v483
                %v485 = vld [vmem:[%s341 + $0x470] sm:$0xff]
                %486 = vst [vmem:[%s342 + $0x238] sm:$0xff] %v485
                %v487 = vld [vmem:[%s341 + $0x480] sm:$0xff]
                %488 = vst [vmem:[%s342 + $0x240] sm:$0xff] %v487
                %v489 = vld [vmem:[%s341 + $0x490] sm:$0xff]
                %490 = vst [vmem:[%s342 + $0x248] sm:$0xff] %v489
                %v491 = vld [vmem:[%s341 + $0x4a0] sm:$0xff]
                %492 = vst [vmem:[%s342 + $0x250] sm:$0xff] %v491
                %v493 = vld [vmem:[%s341 + $0x4b0] sm:$0xff]
                %494 = vst [vmem:[%s342 + $0x258] sm:$0xff] %v493
                %v495 = vld [vmem:[%s341 + $0x4c0] sm:$0xff]
                %496 = vst [vmem:[%s342 + $0x260] sm:$0xff] %v495
                %v497 = vld [vmem:[%s341 + $0x4d0] sm:$0xff]
                %498 = vst [vmem:[%s342 + $0x268] sm:$0xff] %v497
                %v499 = vld [vmem:[%s341 + $0x4e0] sm:$0xff]
                %500 = vst [vmem:[%s342 + $0x270] sm:$0xff] %v499
                %v501 = vld [vmem:[%s341 + $0x4f0] sm:$0xff]
                %502 = vst [vmem:[%s342 + $0x278] sm:$0xff] %v501
                %v503 = vld [vmem:[%s341 + $0x500] sm:$0xff]
                %504 = vst [vmem:[%s342 + $0x280] sm:$0xff] %v503
                %v505 = vld [vmem:[%s341 + $0x510] sm:$0xff]
                %506 = vst [vmem:[%s342 + $0x288] sm:$0xff] %v505
                %v507 = vld [vmem:[%s341 + $0x520] sm:$0xff]
                %508 = vst [vmem:[%s342 + $0x290] sm:$0xff] %v507
                %v509 = vld [vmem:[%s341 + $0x530] sm:$0xff]
                %510 = vst [vmem:[%s342 + $0x298] sm:$0xff] %v509
                %v511 = vld [vmem:[%s341 + $0x540] sm:$0xff]
                %512 = vst [vmem:[%s342 + $0x2a0] sm:$0xff] %v511
                %v513 = vld [vmem:[%s341 + $0x550] sm:$0xff]
                %514 = vst [vmem:[%s342 + $0x2a8] sm:$0xff] %v513
                %v515 = vld [vmem:[%s341 + $0x560] sm:$0xff]
                %516 = vst [vmem:[%s342 + $0x2b0] sm:$0xff] %v515
                %v517 = vld [vmem:[%s341 + $0x570] sm:$0xff]
                %518 = vst [vmem:[%s342 + $0x2b8] sm:$0xff] %v517
                %v519 = vld [vmem:[%s341 + $0x580] sm:$0xff]
                %520 = vst [vmem:[%s342 + $0x2c0] sm:$0xff] %v519
                %v521 = vld [vmem:[%s341 + $0x590] sm:$0xff]
                %522 = vst [vmem:[%s342 + $0x2c8] sm:$0xff] %v521
                %v523 = vld [vmem:[%s341 + $0x5a0] sm:$0xff]
                %524 = vst [vmem:[%s342 + $0x2d0] sm:$0xff] %v523
                %v525 = vld [vmem:[%s341 + $0x5b0] sm:$0xff]
                %526 = vst [vmem:[%s342 + $0x2d8] sm:$0xff] %v525
                %v527 = vld [vmem:[%s341 + $0x5c0] sm:$0xff]
                %528 = vst [vmem:[%s342 + $0x2e0] sm:$0xff] %v527
                %v529 = vld [vmem:[%s341 + $0x5d0] sm:$0xff]
                %530 = vst [vmem:[%s342 + $0x2e8] sm:$0xff] %v529
                %v531 = vld [vmem:[%s341 + $0x5e0] sm:$0xff]
                %532 = vst [vmem:[%s342 + $0x2f0] sm:$0xff] %v531
                %v533 = vld [vmem:[%s341 + $0x5f0] sm:$0xff]
                %534 = vst [vmem:[%s342 + $0x2f8] sm:$0xff] %v533
                %v535 = vld [vmem:[%s341 + $0x600] sm:$0xff]
                %536 = vst [vmem:[%s342 + $0x300] sm:$0xff] %v535
                %v537 = vld [vmem:[%s341 + $0x610] sm:$0xff]
                %538 = vst [vmem:[%s342 + $0x308] sm:$0xff] %v537
                %v539 = vld [vmem:[%s341 + $0x620] sm:$0xff]
                %540 = vst [vmem:[%s342 + $0x310] sm:$0xff] %v539
                %v541 = vld [vmem:[%s341 + $0x630] sm:$0xff]
                %542 = vst [vmem:[%s342 + $0x318] sm:$0xff] %v541
                %v543 = vld [vmem:[%s341 + $0x640] sm:$0xff]
                %544 = vst [vmem:[%s342 + $0x320] sm:$0xff] %v543
                %v545 = vld [vmem:[%s341 + $0x650] sm:$0xff]
                %546 = vst [vmem:[%s342 + $0x328] sm:$0xff] %v545
                %v547 = vld [vmem:[%s341 + $0x660] sm:$0xff]
                %548 = vst [vmem:[%s342 + $0x330] sm:$0xff] %v547
                %v549 = vld [vmem:[%s341 + $0x670] sm:$0xff]
                %550 = vst [vmem:[%s342 + $0x338] sm:$0xff] %v549
                %v551 = vld [vmem:[%s341 + $0x680] sm:$0xff]
                %552 = vst [vmem:[%s342 + $0x340] sm:$0xff] %v551
                %v553 = vld [vmem:[%s341 + $0x690] sm:$0xff]
                %554 = vst [vmem:[%s342 + $0x348] sm:$0xff] %v553
                %v555 = vld [vmem:[%s341 + $0x6a0] sm:$0xff]
                %556 = vst [vmem:[%s342 + $0x350] sm:$0xff] %v555
                %v557 = vld [vmem:[%s341 + $0x6b0] sm:$0xff]
                %558 = vst [vmem:[%s342 + $0x358] sm:$0xff] %v557
                %v559 = vld [vmem:[%s341 + $0x6c0] sm:$0xff]
                %560 = vst [vmem:[%s342 + $0x360] sm:$0xff] %v559
                %v561 = vld [vmem:[%s341 + $0x6d0] sm:$0xff]
                %562 = vst [vmem:[%s342 + $0x368] sm:$0xff] %v561
                %v563 = vld [vmem:[%s341 + $0x6e0] sm:$0xff]
                %564 = vst [vmem:[%s342 + $0x370] sm:$0xff] %v563
                %v565 = vld [vmem:[%s341 + $0x6f0] sm:$0xff]
                %566 = vst [vmem:[%s342 + $0x378] sm:$0xff] %v565
                %v567 = vld [vmem:[%s341 + $0x700] sm:$0xff]
                %568 = vst [vmem:[%s342 + $0x380] sm:$0xff] %v567
                %v569 = vld [vmem:[%s341 + $0x710] sm:$0xff]
                %570 = vst [vmem:[%s342 + $0x388] sm:$0xff] %v569
                %v571 = vld [vmem:[%s341 + $0x720] sm:$0xff]
                %572 = vst [vmem:[%s342 + $0x390] sm:$0xff] %v571
                %v573 = vld [vmem:[%s341 + $0x730] sm:$0xff]
                %574 = vst [vmem:[%s342 + $0x398] sm:$0xff] %v573
                %v575 = vld [vmem:[%s341 + $0x740] sm:$0xff]
                %576 = vst [vmem:[%s342 + $0x3a0] sm:$0xff] %v575
                %v577 = vld [vmem:[%s341 + $0x750] sm:$0xff]
                %578 = vst [vmem:[%s342 + $0x3a8] sm:$0xff] %v577
                %v579 = vld [vmem:[%s341 + $0x760] sm:$0xff]
                %580 = vst [vmem:[%s342 + $0x3b0] sm:$0xff] %v579
                %v581 = vld [vmem:[%s341 + $0x770] sm:$0xff]
                %582 = vst [vmem:[%s342 + $0x3b8] sm:$0xff] %v581
                %v583 = vld [vmem:[%s341 + $0x780] sm:$0xff]
                %584 = vst [vmem:[%s342 + $0x3c0] sm:$0xff] %v583
              $region44: #{reverse} parent=38 // loop_footer
                %s340 = sadd.s32 1, %s336
              $region45: #{reverse} parent=38 // loop_footer_branch
                %335 = sbr.rel target = $region41
              $region46: #{reverse} parent=38 // loop_exit
                _
            $region39: #{reverse} parent=23 // pred_fallthru
              _
            // Predicated region
            $region47: #{reverse} parent=23 // pred_check
              _
            $region48: #{reverse} parent=23 // pred_check_branch
              %586 = sbr.rel target = $region50
            $region49: #{reverse} parent=23 // pred_region
              _
            $region50: #{reverse} parent=23 // pred_fallthru
              _
          $region24: #{reverse} parent=19 // pred_fallthru
            _
          // Predicated region
          $region25: #{reverse} parent=19 // pred_check
            _
          $region26: #{reverse} parent=19 // pred_check_branch
            %80 = sbr.rel target = $region28
          $region27: #{reverse} parent=19 // pred_region
            %s82 = ssub.s32 256, 1
            loop: start=0, step=1, limit=1
            $region29: #{reverse} parent=27 // loop_pre_header
              _
            $region30: #{reverse} parent=27 // loop_header
              %s84 = sphi 0, %s88
              %p85 = scmp.ge.s32.totalorder %s84, 1
              %s89 = sphi %s74, %s74
              %s90 = sphi %s61, %s61
            $region31: #{reverse} parent=27 // loop_header_branch
              %87 = sbr.rel (%p85) target = $region35
            $region32: #{reverse} parent=27 // loop_body
              %v91 = vld [vmem:[%s89] sm:%s82]
              %92 = vst [vmem:[%s90] sm:%s82] %v91
              %v93 = vld [vmem:[%s89 + $0x10] sm:%s82]
              %94 = vst [vmem:[%s90 + $0x8] sm:%s82] %v93
              %v95 = vld [vmem:[%s89 + $0x20] sm:%s82]
              %96 = vst [vmem:[%s90 + $0x10] sm:%s82] %v95
              %v97 = vld [vmem:[%s89 + $0x30] sm:%s82]
              %98 = vst [vmem:[%s90 + $0x18] sm:%s82] %v97
              %v99 = vld [vmem:[%s89 + $0x40] sm:%s82]
              %100 = vst [vmem:[%s90 + $0x20] sm:%s82] %v99
              %v101 = vld [vmem:[%s89 + $0x50] sm:%s82]
              %102 = vst [vmem:[%s90 + $0x28] sm:%s82] %v101
              %v103 = vld [vmem:[%s89 + $0x60] sm:%s82]
              %104 = vst [vmem:[%s90 + $0x30] sm:%s82] %v103
              %v105 = vld [vmem:[%s89 + $0x70] sm:%s82]
              %106 = vst [vmem:[%s90 + $0x38] sm:%s82] %v105
              %v107 = vld [vmem:[%s89 + $0x80] sm:%s82]
              %108 = vst [vmem:[%s90 + $0x40] sm:%s82] %v107
              %v109 = vld [vmem:[%s89 + $0x90] sm:%s82]
              %110 = vst [vmem:[%s90 + $0x48] sm:%s82] %v109
              %v111 = vld [vmem:[%s89 + $0xa0] sm:%s82]
              %112 = vst [vmem:[%s90 + $0x50] sm:%s82] %v111
              %v113 = vld [vmem:[%s89 + $0xb0] sm:%s82]
              %114 = vst [vmem:[%s90 + $0x58] sm:%s82] %v113
              %v115 = vld [vmem:[%s89 + $0xc0] sm:%s82]
              %116 = vst [vmem:[%s90 + $0x60] sm:%s82] %v115
              %v117 = vld [vmem:[%s89 + $0xd0] sm:%s82]
              %118 = vst [vmem:[%s90 + $0x68] sm:%s82] %v117
              %v119 = vld [vmem:[%s89 + $0xe0] sm:%s82]
              %120 = vst [vmem:[%s90 + $0x70] sm:%s82] %v119
              %v121 = vld [vmem:[%s89 + $0xf0] sm:%s82]
              %122 = vst [vmem:[%s90 + $0x78] sm:%s82] %v121
              %v123 = vld [vmem:[%s89 + $0x100] sm:%s82]
              %124 = vst [vmem:[%s90 + $0x80] sm:%s82] %v123
              %v125 = vld [vmem:[%s89 + $0x110] sm:%s82]
              %126 = vst [vmem:[%s90 + $0x88] sm:%s82] %v125
              %v127 = vld [vmem:[%s89 + $0x120] sm:%s82]
              %128 = vst [vmem:[%s90 + $0x90] sm:%s82] %v127
              %v129 = vld [vmem:[%s89 + $0x130] sm:%s82]
              %130 = vst [vmem:[%s90 + $0x98] sm:%s82] %v129
              %v131 = vld [vmem:[%s89 + $0x140] sm:%s82]
              %132 = vst [vmem:[%s90 + $0xa0] sm:%s82] %v131
              %v133 = vld [vmem:[%s89 + $0x150] sm:%s82]
              %134 = vst [vmem:[%s90 + $0xa8] sm:%s82] %v133
              %v135 = vld [vmem:[%s89 + $0x160] sm:%s82]
              %136 = vst [vmem:[%s90 + $0xb0] sm:%s82] %v135
              %v137 = vld [vmem:[%s89 + $0x170] sm:%s82]
              %138 = vst [vmem:[%s90 + $0xb8] sm:%s82] %v137
              %v139 = vld [vmem:[%s89 + $0x180] sm:%s82]
              %140 = vst [vmem:[%s90 + $0xc0] sm:%s82] %v139
              %v141 = vld [vmem:[%s89 + $0x190] sm:%s82]
              %142 = vst [vmem:[%s90 + $0xc8] sm:%s82] %v141
              %v143 = vld [vmem:[%s89 + $0x1a0] sm:%s82]
              %144 = vst [vmem:[%s90 + $0xd0] sm:%s82] %v143
              %v145 = vld [vmem:[%s89 + $0x1b0] sm:%s82]
              %146 = vst [vmem:[%s90 + $0xd8] sm:%s82] %v145
              %v147 = vld [vmem:[%s89 + $0x1c0] sm:%s82]
              %148 = vst [vmem:[%s90 + $0xe0] sm:%s82] %v147
              %v149 = vld [vmem:[%s89 + $0x1d0] sm:%s82]
              %150 = vst [vmem:[%s90 + $0xe8] sm:%s82] %v149
              %v151 = vld [vmem:[%s89 + $0x1e0] sm:%s82]
              %152 = vst [vmem:[%s90 + $0xf0] sm:%s82] %v151
              %v153 = vld [vmem:[%s89 + $0x1f0] sm:%s82]
              %154 = vst [vmem:[%s90 + $0xf8] sm:%s82] %v153
              %v155 = vld [vmem:[%s89 + $0x200] sm:%s82]
              %156 = vst [vmem:[%s90 + $0x100] sm:%s82] %v155
              %v157 = vld [vmem:[%s89 + $0x210] sm:%s82]
              %158 = vst [vmem:[%s90 + $0x108] sm:%s82] %v157
              %v159 = vld [vmem:[%s89 + $0x220] sm:%s82]
              %160 = vst [vmem:[%s90 + $0x110] sm:%s82] %v159
              %v161 = vld [vmem:[%s89 + $0x230] sm:%s82]
              %162 = vst [vmem:[%s90 + $0x118] sm:%s82] %v161
              %v163 = vld [vmem:[%s89 + $0x240] sm:%s82]
              %164 = vst [vmem:[%s90 + $0x120] sm:%s82] %v163
              %v165 = vld [vmem:[%s89 + $0x250] sm:%s82]
              %166 = vst [vmem:[%s90 + $0x128] sm:%s82] %v165
              %v167 = vld [vmem:[%s89 + $0x260] sm:%s82]
              %168 = vst [vmem:[%s90 + $0x130] sm:%s82] %v167
              %v169 = vld [vmem:[%s89 + $0x270] sm:%s82]
              %170 = vst [vmem:[%s90 + $0x138] sm:%s82] %v169
              %v171 = vld [vmem:[%s89 + $0x280] sm:%s82]
              %172 = vst [vmem:[%s90 + $0x140] sm:%s82] %v171
              %v173 = vld [vmem:[%s89 + $0x290] sm:%s82]
              %174 = vst [vmem:[%s90 + $0x148] sm:%s82] %v173
              %v175 = vld [vmem:[%s89 + $0x2a0] sm:%s82]
              %176 = vst [vmem:[%s90 + $0x150] sm:%s82] %v175
              %v177 = vld [vmem:[%s89 + $0x2b0] sm:%s82]
              %178 = vst [vmem:[%s90 + $0x158] sm:%s82] %v177
              %v179 = vld [vmem:[%s89 + $0x2c0] sm:%s82]
              %180 = vst [vmem:[%s90 + $0x160] sm:%s82] %v179
              %v181 = vld [vmem:[%s89 + $0x2d0] sm:%s82]
              %182 = vst [vmem:[%s90 + $0x168] sm:%s82] %v181
              %v183 = vld [vmem:[%s89 + $0x2e0] sm:%s82]
              %184 = vst [vmem:[%s90 + $0x170] sm:%s82] %v183
              %v185 = vld [vmem:[%s89 + $0x2f0] sm:%s82]
              %186 = vst [vmem:[%s90 + $0x178] sm:%s82] %v185
              %v187 = vld [vmem:[%s89 + $0x300] sm:%s82]
              %188 = vst [vmem:[%s90 + $0x180] sm:%s82] %v187
              %v189 = vld [vmem:[%s89 + $0x310] sm:%s82]
              %190 = vst [vmem:[%s90 + $0x188] sm:%s82] %v189
              %v191 = vld [vmem:[%s89 + $0x320] sm:%s82]
              %192 = vst [vmem:[%s90 + $0x190] sm:%s82] %v191
              %v193 = vld [vmem:[%s89 + $0x330] sm:%s82]
              %194 = vst [vmem:[%s90 + $0x198] sm:%s82] %v193
              %v195 = vld [vmem:[%s89 + $0x340] sm:%s82]
              %196 = vst [vmem:[%s90 + $0x1a0] sm:%s82] %v195
              %v197 = vld [vmem:[%s89 + $0x350] sm:%s82]
              %198 = vst [vmem:[%s90 + $0x1a8] sm:%s82] %v197
              %v199 = vld [vmem:[%s89 + $0x360] sm:%s82]
              %200 = vst [vmem:[%s90 + $0x1b0] sm:%s82] %v199
              %v201 = vld [vmem:[%s89 + $0x370] sm:%s82]
              %202 = vst [vmem:[%s90 + $0x1b8] sm:%s82] %v201
              %v203 = vld [vmem:[%s89 + $0x380] sm:%s82]
              %204 = vst [vmem:[%s90 + $0x1c0] sm:%s82] %v203
              %v205 = vld [vmem:[%s89 + $0x390] sm:%s82]
              %206 = vst [vmem:[%s90 + $0x1c8] sm:%s82] %v205
              %v207 = vld [vmem:[%s89 + $0x3a0] sm:%s82]
              %208 = vst [vmem:[%s90 + $0x1d0] sm:%s82] %v207
              %v209 = vld [vmem:[%s89 + $0x3b0] sm:%s82]
              %210 = vst [vmem:[%s90 + $0x1d8] sm:%s82] %v209
              %v211 = vld [vmem:[%s89 + $0x3c0] sm:%s82]
              %212 = vst [vmem:[%s90 + $0x1e0] sm:%s82] %v211
              %v213 = vld [vmem:[%s89 + $0x3d0] sm:%s82]
              %214 = vst [vmem:[%s90 + $0x1e8] sm:%s82] %v213
              %v215 = vld [vmem:[%s89 + $0x3e0] sm:%s82]
              %216 = vst [vmem:[%s90 + $0x1f0] sm:%s82] %v215
              %v217 = vld [vmem:[%s89 + $0x3f0] sm:%s82]
              %218 = vst [vmem:[%s90 + $0x1f8] sm:%s82] %v217
              %v219 = vld [vmem:[%s89 + $0x400] sm:%s82]
              %220 = vst [vmem:[%s90 + $0x200] sm:%s82] %v219
              %v221 = vld [vmem:[%s89 + $0x410] sm:%s82]
              %222 = vst [vmem:[%s90 + $0x208] sm:%s82] %v221
              %v223 = vld [vmem:[%s89 + $0x420] sm:%s82]
              %224 = vst [vmem:[%s90 + $0x210] sm:%s82] %v223
              %v225 = vld [vmem:[%s89 + $0x430] sm:%s82]
              %226 = vst [vmem:[%s90 + $0x218] sm:%s82] %v225
              %v227 = vld [vmem:[%s89 + $0x440] sm:%s82]
              %228 = vst [vmem:[%s90 + $0x220] sm:%s82] %v227
              %v229 = vld [vmem:[%s89 + $0x450] sm:%s82]
              %230 = vst [vmem:[%s90 + $0x228] sm:%s82] %v229
              %v231 = vld [vmem:[%s89 + $0x460] sm:%s82]
              %232 = vst [vmem:[%s90 + $0x230] sm:%s82] %v231
              %v233 = vld [vmem:[%s89 + $0x470] sm:%s82]
              %234 = vst [vmem:[%s90 + $0x238] sm:%s82] %v233
              %v235 = vld [vmem:[%s89 + $0x480] sm:%s82]
              %236 = vst [vmem:[%s90 + $0x240] sm:%s82] %v235
              %v237 = vld [vmem:[%s89 + $0x490] sm:%s82]
              %238 = vst [vmem:[%s90 + $0x248] sm:%s82] %v237
              %v239 = vld [vmem:[%s89 + $0x4a0] sm:%s82]
              %240 = vst [vmem:[%s90 + $0x250] sm:%s82] %v239
              %v241 = vld [vmem:[%s89 + $0x4b0] sm:%s82]
              %242 = vst [vmem:[%s90 + $0x258] sm:%s82] %v241
              %v243 = vld [vmem:[%s89 + $0x4c0] sm:%s82]
              %244 = vst [vmem:[%s90 + $0x260] sm:%s82] %v243
              %v245 = vld [vmem:[%s89 + $0x4d0] sm:%s82]
              %246 = vst [vmem:[%s90 + $0x268] sm:%s82] %v245
              %v247 = vld [vmem:[%s89 + $0x4e0] sm:%s82]
              %248 = vst [vmem:[%s90 + $0x270] sm:%s82] %v247
              %v249 = vld [vmem:[%s89 + $0x4f0] sm:%s82]
              %250 = vst [vmem:[%s90 + $0x278] sm:%s82] %v249
              %v251 = vld [vmem:[%s89 + $0x500] sm:%s82]
              %252 = vst [vmem:[%s90 + $0x280] sm:%s82] %v251
              %v253 = vld [vmem:[%s89 + $0x510] sm:%s82]
              %254 = vst [vmem:[%s90 + $0x288] sm:%s82] %v253
              %v255 = vld [vmem:[%s89 + $0x520] sm:%s82]
              %256 = vst [vmem:[%s90 + $0x290] sm:%s82] %v255
              %v257 = vld [vmem:[%s89 + $0x530] sm:%s82]
              %258 = vst [vmem:[%s90 + $0x298] sm:%s82] %v257
              %v259 = vld [vmem:[%s89 + $0x540] sm:%s82]
              %260 = vst [vmem:[%s90 + $0x2a0] sm:%s82] %v259
              %v261 = vld [vmem:[%s89 + $0x550] sm:%s82]
              %262 = vst [vmem:[%s90 + $0x2a8] sm:%s82] %v261
              %v263 = vld [vmem:[%s89 + $0x560] sm:%s82]
              %264 = vst [vmem:[%s90 + $0x2b0] sm:%s82] %v263
              %v265 = vld [vmem:[%s89 + $0x570] sm:%s82]
              %266 = vst [vmem:[%s90 + $0x2b8] sm:%s82] %v265
              %v267 = vld [vmem:[%s89 + $0x580] sm:%s82]
              %268 = vst [vmem:[%s90 + $0x2c0] sm:%s82] %v267
              %v269 = vld [vmem:[%s89 + $0x590] sm:%s82]
              %270 = vst [vmem:[%s90 + $0x2c8] sm:%s82] %v269
              %v271 = vld [vmem:[%s89 + $0x5a0] sm:%s82]
              %272 = vst [vmem:[%s90 + $0x2d0] sm:%s82] %v271
              %v273 = vld [vmem:[%s89 + $0x5b0] sm:%s82]
              %274 = vst [vmem:[%s90 + $0x2d8] sm:%s82] %v273
              %v275 = vld [vmem:[%s89 + $0x5c0] sm:%s82]
              %276 = vst [vmem:[%s90 + $0x2e0] sm:%s82] %v275
              %v277 = vld [vmem:[%s89 + $0x5d0] sm:%s82]
              %278 = vst [vmem:[%s90 + $0x2e8] sm:%s82] %v277
              %v279 = vld [vmem:[%s89 + $0x5e0] sm:%s82]
              %280 = vst [vmem:[%s90 + $0x2f0] sm:%s82] %v279
              %v281 = vld [vmem:[%s89 + $0x5f0] sm:%s82]
              %282 = vst [vmem:[%s90 + $0x2f8] sm:%s82] %v281
              %v283 = vld [vmem:[%s89 + $0x600] sm:%s82]
              %284 = vst [vmem:[%s90 + $0x300] sm:%s82] %v283
              %v285 = vld [vmem:[%s89 + $0x610] sm:%s82]
              %286 = vst [vmem:[%s90 + $0x308] sm:%s82] %v285
              %v287 = vld [vmem:[%s89 + $0x620] sm:%s82]
              %288 = vst [vmem:[%s90 + $0x310] sm:%s82] %v287
              %v289 = vld [vmem:[%s89 + $0x630] sm:%s82]
              %290 = vst [vmem:[%s90 + $0x318] sm:%s82] %v289
              %v291 = vld [vmem:[%s89 + $0x640] sm:%s82]
              %292 = vst [vmem:[%s90 + $0x320] sm:%s82] %v291
              %v293 = vld [vmem:[%s89 + $0x650] sm:%s82]
              %294 = vst [vmem:[%s90 + $0x328] sm:%s82] %v293
              %v295 = vld [vmem:[%s89 + $0x660] sm:%s82]
              %296 = vst [vmem:[%s90 + $0x330] sm:%s82] %v295
              %v297 = vld [vmem:[%s89 + $0x670] sm:%s82]
              %298 = vst [vmem:[%s90 + $0x338] sm:%s82] %v297
              %v299 = vld [vmem:[%s89 + $0x680] sm:%s82]
              %300 = vst [vmem:[%s90 + $0x340] sm:%s82] %v299
              %v301 = vld [vmem:[%s89 + $0x690] sm:%s82]
              %302 = vst [vmem:[%s90 + $0x348] sm:%s82] %v301
              %v303 = vld [vmem:[%s89 + $0x6a0] sm:%s82]
              %304 = vst [vmem:[%s90 + $0x350] sm:%s82] %v303
              %v305 = vld [vmem:[%s89 + $0x6b0] sm:%s82]
              %306 = vst [vmem:[%s90 + $0x358] sm:%s82] %v305
              %v307 = vld [vmem:[%s89 + $0x6c0] sm:%s82]
              %308 = vst [vmem:[%s90 + $0x360] sm:%s82] %v307
              %v309 = vld [vmem:[%s89 + $0x6d0] sm:%s82]
              %310 = vst [vmem:[%s90 + $0x368] sm:%s82] %v309
              %v311 = vld [vmem:[%s89 + $0x6e0] sm:%s82]
              %312 = vst [vmem:[%s90 + $0x370] sm:%s82] %v311
              %v313 = vld [vmem:[%s89 + $0x6f0] sm:%s82]
              %314 = vst [vmem:[%s90 + $0x378] sm:%s82] %v313
              %v315 = vld [vmem:[%s89 + $0x700] sm:%s82]
              %316 = vst [vmem:[%s90 + $0x380] sm:%s82] %v315
              %v317 = vld [vmem:[%s89 + $0x710] sm:%s82]
              %318 = vst [vmem:[%s90 + $0x388] sm:%s82] %v317
              %v319 = vld [vmem:[%s89 + $0x720] sm:%s82]
              %320 = vst [vmem:[%s90 + $0x390] sm:%s82] %v319
              %v321 = vld [vmem:[%s89 + $0x730] sm:%s82]
              %322 = vst [vmem:[%s90 + $0x398] sm:%s82] %v321
              %v323 = vld [vmem:[%s89 + $0x740] sm:%s82]
              %324 = vst [vmem:[%s90 + $0x3a0] sm:%s82] %v323
              %v325 = vld [vmem:[%s89 + $0x750] sm:%s82]
              %326 = vst [vmem:[%s90 + $0x3a8] sm:%s82] %v325
              %v327 = vld [vmem:[%s89 + $0x760] sm:%s82]
              %328 = vst [vmem:[%s90 + $0x3b0] sm:%s82] %v327
              %v329 = vld [vmem:[%s89 + $0x770] sm:%s82]
              %330 = vst [vmem:[%s90 + $0x3b8] sm:%s82] %v329
              %v331 = vld [vmem:[%s89 + $0x780] sm:%s82]
              %332 = vst [vmem:[%s90 + $0x3c0] sm:%s82] %v331
            $region33: #{reverse} parent=27 // loop_footer
              %s88 = sadd.s32 1, %s84
            $region34: #{reverse} parent=27 // loop_footer_branch
              %83 = sbr.rel target = $region30
            $region35: #{reverse} parent=27 // loop_exit
              _
          $region28: #{reverse} parent=19 // pred_fallthru
            _
        $region20: #{reverse} parent=15 // pred_fallthru
          _
        %587 = vnop
      $region16: #{reverse} parent=5 // pred_fallthru
        _
      %p588 = scmp.le.s32.totalorder 1, %s6
      %p589 = scmp.lt.s32.totalorder %s6, 3
      %p590 = pnand %p588, %p589
      %p591 = pneg %p590
      // Predicated region
      $region51: #{reverse} parent=5 // pred_check
        _
      $region52: #{reverse} parent=5 // pred_check_branch
        %593 = sbr.rel (%p590) target = $region54
      $region53: #{reverse} parent=5 // pred_region
        %s594 = ssub.s32 %s6, 1
        %s595 = sand.u32 %s11, 1
        %s596 = sand.u32 %s11, 1
        %s597 = smul.addr %s596, 968
        %s598 = scalar_lea.vmem [#allocation0], %s597
        %s599 = sand.u32 %s11, 1
        %s600 = sand.u32 %s11, 1
        %s601 = smul.addr %s600, 968
        %s602 = scalar_lea.vmem [#allocation0], %s601
        %s603 = sand.u32 %s11, 1
        %s604 = sand.u32 %s11, 1
        %s605 = smul.addr %s604, 484
        %s606 = scalar_lea.vmem [#allocation2], %s605
        %s607 = ssub.s32 0, %s18
        %s608 = ssub.s32 0, %s19
        %s609 = ssub.s32 0, %s22
        %s610 = smul.u32 11, %s607
        %s611 = smul.u32 11, %s608
        %s612 = smul.u32 11, %s18
        %s613 = smul.u32 11, %s19
        %s614 = scalar_lea.vmem %s598, 960 [#allocation0]
        %v615 = vld [vmem:[%s614] sm:$0xff]
        %616 = vperm.xlu0 %4, %v615
        %v617 = vpop.permute.xlu0 %616
        %618 = vst [vmem:[#allocation1] sm:$0xff] %v617
        %s619 = scalar_lea.vmem [#allocation1], 8
        %s620 = scalar_lea.vmem %s598, 952 [#allocation0]
        %v621 = vld [vmem:[%s620] sm:$0xff]
        %622 = vperm.xlu0 %4, %v621
        %v623 = vpop.permute.xlu0 %622
        %624 = vst [vmem:[%s619] sm:$0xff] %v623
        %s625 = scalar_lea.vmem [#allocation1], 16
        %s626 = scalar_lea.vmem %s598, 944 [#allocation0]
        %v627 = vld [vmem:[%s626] sm:$0xff]
        %628 = vperm.xlu0 %4, %v627
        %v629 = vpop.permute.xlu0 %628
        %630 = vst [vmem:[%s625] sm:$0xff] %v629
        %s631 = scalar_lea.vmem [#allocation1], 24
        %s632 = scalar_lea.vmem %s598, 936 [#allocation0]
        %v633 = vld [vmem:[%s632] sm:$0xff]
        %634 = vperm.xlu0 %4, %v633
        %v635 = vpop.permute.xlu0 %634
        %636 = vst [vmem:[%s631] sm:$0xff] %v635
        %s637 = scalar_lea.vmem [#allocation1], 32
        %s638 = scalar_lea.vmem %s598, 928 [#allocation0]
        %v639 = vld [vmem:[%s638] sm:$0xff]
        %640 = vperm.xlu0 %4, %v639
        %v641 = vpop.permute.xlu0 %640
        %642 = vst [vmem:[%s637] sm:$0xff] %v641
        %s643 = scalar_lea.vmem [#allocation1], 40
        %s644 = scalar_lea.vmem %s598, 920 [#allocation0]
        %v645 = vld [vmem:[%s644] sm:$0xff]
        %646 = vperm.xlu0 %4, %v645
        %v647 = vpop.permute.xlu0 %646
        %648 = vst [vmem:[%s643] sm:$0xff] %v647
        %s649 = scalar_lea.vmem [#allocation1], 48
        %s650 = scalar_lea.vmem %s598, 912 [#allocation0]
        %v651 = vld [vmem:[%s650] sm:$0xff]
        %652 = vperm.xlu0 %4, %v651
        %v653 = vpop.permute.xlu0 %652
        %654 = vst [vmem:[%s649] sm:$0xff] %v653
        %s655 = scalar_lea.vmem [#allocation1], 56
        %s656 = scalar_lea.vmem %s598, 904 [#allocation0]
        %v657 = vld [vmem:[%s656] sm:$0xff]
        %658 = vperm.xlu0 %4, %v657
        %v659 = vpop.permute.xlu0 %658
        %660 = vst [vmem:[%s655] sm:$0xff] %v659
        %s661 = scalar_lea.vmem [#allocation1], 64
        %s662 = scalar_lea.vmem %s598, 896 [#allocation0]
        %v663 = vld [vmem:[%s662] sm:$0xff]
        %664 = vperm.xlu0 %4, %v663
        %v665 = vpop.permute.xlu0 %664
        %666 = vst [vmem:[%s661] sm:$0xff] %v665
        %s667 = scalar_lea.vmem [#allocation1], 72
        %s668 = scalar_lea.vmem %s598, 888 [#allocation0]
        %v669 = vld [vmem:[%s668] sm:$0xff]
        %670 = vperm.xlu0 %4, %v669
        %v671 = vpop.permute.xlu0 %670
        %672 = vst [vmem:[%s667] sm:$0xff] %v671
        %s673 = scalar_lea.vmem [#allocation1], 80
        %s674 = scalar_lea.vmem %s598, 880 [#allocation0]
        %v675 = vld [vmem:[%s674] sm:$0xff]
        %676 = vperm.xlu0 %4, %v675
        %v677 = vpop.permute.xlu0 %676
        %678 = vst [vmem:[%s673] sm:$0xff] %v677
        %s679 = scalar_lea.vmem [#allocation1], 88
        %s680 = scalar_lea.vmem %s598, 872 [#allocation0]
        %v681 = vld [vmem:[%s680] sm:$0xff]
        %682 = vperm.xlu0 %4, %v681
        %v683 = vpop.permute.xlu0 %682
        %684 = vst [vmem:[%s679] sm:$0xff] %v683
        %s685 = scalar_lea.vmem [#allocation1], 96
        %s686 = scalar_lea.vmem %s598, 864 [#allocation0]
        %v687 = vld [vmem:[%s686] sm:$0xff]
        %688 = vperm.xlu0 %4, %v687
        %v689 = vpop.permute.xlu0 %688
        %690 = vst [vmem:[%s685] sm:$0xff] %v689
        %s691 = scalar_lea.vmem [#allocation1], 104
        %s692 = scalar_lea.vmem %s598, 856 [#allocation0]
        %v693 = vld [vmem:[%s692] sm:$0xff]
        %694 = vperm.xlu0 %4, %v693
        %v695 = vpop.permute.xlu0 %694
        %696 = vst [vmem:[%s691] sm:$0xff] %v695
        %s697 = scalar_lea.vmem [#allocation1], 112
        %s698 = scalar_lea.vmem %s598, 848 [#allocation0]
        %v699 = vld [vmem:[%s698] sm:$0xff]
        %700 = vperm.xlu0 %4, %v699
        %v701 = vpop.permute.xlu0 %700
        %702 = vst [vmem:[%s697] sm:$0xff] %v701
        %s703 = scalar_lea.vmem [#allocation1], 120
        %s704 = scalar_lea.vmem %s598, 840 [#allocation0]
        %v705 = vld [vmem:[%s704] sm:$0xff]
        %706 = vperm.xlu0 %4, %v705
        %v707 = vpop.permute.xlu0 %706
        %708 = vst [vmem:[%s703] sm:$0xff] %v707
        %s709 = scalar_lea.vmem [#allocation1], 128
        %s710 = scalar_lea.vmem %s598, 832 [#allocation0]
        %v711 = vld [vmem:[%s710] sm:$0xff]
        %712 = vperm.xlu0 %4, %v711
        %v713 = vpop.permute.xlu0 %712
        %714 = vst [vmem:[%s709] sm:$0xff] %v713
        %s715 = scalar_lea.vmem [#allocation1], 136
        %s716 = scalar_lea.vmem %s598, 824 [#allocation0]
        %v717 = vld [vmem:[%s716] sm:$0xff]
        %718 = vperm.xlu0 %4, %v717
        %v719 = vpop.permute.xlu0 %718
        %720 = vst [vmem:[%s715] sm:$0xff] %v719
        %s721 = scalar_lea.vmem [#allocation1], 144
        %s722 = scalar_lea.vmem %s598, 816 [#allocation0]
        %v723 = vld [vmem:[%s722] sm:$0xff]
        %724 = vperm.xlu0 %4, %v723
        %v725 = vpop.permute.xlu0 %724
        %726 = vst [vmem:[%s721] sm:$0xff] %v725
        %s727 = scalar_lea.vmem [#allocation1], 152
        %s728 = scalar_lea.vmem %s598, 808 [#allocation0]
        %v729 = vld [vmem:[%s728] sm:$0xff]
        %730 = vperm.xlu0 %4, %v729
        %v731 = vpop.permute.xlu0 %730
        %732 = vst [vmem:[%s727] sm:$0xff] %v731
        %s733 = scalar_lea.vmem [#allocation1], 160
        %s734 = scalar_lea.vmem %s598, 800 [#allocation0]
        %v735 = vld [vmem:[%s734] sm:$0xff]
        %736 = vperm.xlu0 %4, %v735
        %v737 = vpop.permute.xlu0 %736
        %738 = vst [vmem:[%s733] sm:$0xff] %v737
        %s739 = scalar_lea.vmem [#allocation1], 168
        %s740 = scalar_lea.vmem %s598, 792 [#allocation0]
        %v741 = vld [vmem:[%s740] sm:$0xff]
        %742 = vperm.xlu0 %4, %v741
        %v743 = vpop.permute.xlu0 %742
        %744 = vst [vmem:[%s739] sm:$0xff] %v743
        %s745 = scalar_lea.vmem [#allocation1], 176
        %s746 = scalar_lea.vmem %s598, 784 [#allocation0]
        %v747 = vld [vmem:[%s746] sm:$0xff]
        %748 = vperm.xlu0 %4, %v747
        %v749 = vpop.permute.xlu0 %748
        %750 = vst [vmem:[%s745] sm:$0xff] %v749
        %s751 = scalar_lea.vmem [#allocation1], 184
        %s752 = scalar_lea.vmem %s598, 776 [#allocation0]
        %v753 = vld [vmem:[%s752] sm:$0xff]
        %754 = vperm.xlu0 %4, %v753
        %v755 = vpop.permute.xlu0 %754
        %756 = vst [vmem:[%s751] sm:$0xff] %v755
        %s757 = scalar_lea.vmem [#allocation1], 192
        %s758 = scalar_lea.vmem %s598, 768 [#allocation0]
        %v759 = vld [vmem:[%s758] sm:$0xff]
        %760 = vperm.xlu0 %4, %v759
        %v761 = vpop.permute.xlu0 %760
        %762 = vst [vmem:[%s757] sm:$0xff] %v761
        %s763 = scalar_lea.vmem [#allocation1], 200
        %s764 = scalar_lea.vmem %s598, 760 [#allocation0]
        %v765 = vld [vmem:[%s764] sm:$0xff]
        %766 = vperm.xlu0 %4, %v765
        %v767 = vpop.permute.xlu0 %766
        %768 = vst [vmem:[%s763] sm:$0xff] %v767
        %s769 = scalar_lea.vmem [#allocation1], 208
        %s770 = scalar_lea.vmem %s598, 752 [#allocation0]
        %v771 = vld [vmem:[%s770] sm:$0xff]
        %772 = vperm.xlu0 %4, %v771
        %v773 = vpop.permute.xlu0 %772
        %774 = vst [vmem:[%s769] sm:$0xff] %v773
        %s775 = scalar_lea.vmem [#allocation1], 216
        %s776 = scalar_lea.vmem %s598, 744 [#allocation0]
        %v777 = vld [vmem:[%s776] sm:$0xff]
        %778 = vperm.xlu0 %4, %v777
        %v779 = vpop.permute.xlu0 %778
        %780 = vst [vmem:[%s775] sm:$0xff] %v779
        %s781 = scalar_lea.vmem [#allocation1], 224
        %s782 = scalar_lea.vmem %s598, 736 [#allocation0]
        %v783 = vld [vmem:[%s782] sm:$0xff]
        %784 = vperm.xlu0 %4, %v783
        %v785 = vpop.permute.xlu0 %784
        %786 = vst [vmem:[%s781] sm:$0xff] %v785
        %s787 = scalar_lea.vmem [#allocation1], 232
        %s788 = scalar_lea.vmem %s598, 728 [#allocation0]
        %v789 = vld [vmem:[%s788] sm:$0xff]
        %790 = vperm.xlu0 %4, %v789
        %v791 = vpop.permute.xlu0 %790
        %792 = vst [vmem:[%s787] sm:$0xff] %v791
        %s793 = scalar_lea.vmem [#allocation1], 240
        %s794 = scalar_lea.vmem %s598, 720 [#allocation0]
        %v795 = vld [vmem:[%s794] sm:$0xff]
        %796 = vperm.xlu0 %4, %v795
        %v797 = vpop.permute.xlu0 %796
        %798 = vst [vmem:[%s793] sm:$0xff] %v797
        %s799 = scalar_lea.vmem [#allocation1], 248
        %s800 = scalar_lea.vmem %s598, 712 [#allocation0]
        %v801 = vld [vmem:[%s800] sm:$0xff]
        %802 = vperm.xlu0 %4, %v801
        %v803 = vpop.permute.xlu0 %802
        %804 = vst [vmem:[%s799] sm:$0xff] %v803
        %s805 = scalar_lea.vmem [#allocation1], 256
        %s806 = scalar_lea.vmem %s598, 704 [#allocation0]
        %v807 = vld [vmem:[%s806] sm:$0xff]
        %808 = vperm.xlu0 %4, %v807
        %v809 = vpop.permute.xlu0 %808
        %810 = vst [vmem:[%s805] sm:$0xff] %v809
        %s811 = scalar_lea.vmem [#allocation1], 264
        %s812 = scalar_lea.vmem %s598, 696 [#allocation0]
        %v813 = vld [vmem:[%s812] sm:$0xff]
        %814 = vperm.xlu0 %4, %v813
        %v815 = vpop.permute.xlu0 %814
        %816 = vst [vmem:[%s811] sm:$0xff] %v815
        %s817 = scalar_lea.vmem [#allocation1], 272
        %s818 = scalar_lea.vmem %s598, 688 [#allocation0]
        %v819 = vld [vmem:[%s818] sm:$0xff]
        %820 = vperm.xlu0 %4, %v819
        %v821 = vpop.permute.xlu0 %820
        %822 = vst [vmem:[%s817] sm:$0xff] %v821
        %s823 = scalar_lea.vmem [#allocation1], 280
        %s824 = scalar_lea.vmem %s598, 680 [#allocation0]
        %v825 = vld [vmem:[%s824] sm:$0xff]
        %826 = vperm.xlu0 %4, %v825
        %v827 = vpop.permute.xlu0 %826
        %828 = vst [vmem:[%s823] sm:$0xff] %v827
        %s829 = scalar_lea.vmem [#allocation1], 288
        %s830 = scalar_lea.vmem %s598, 672 [#allocation0]
        %v831 = vld [vmem:[%s830] sm:$0xff]
        %832 = vperm.xlu0 %4, %v831
        %v833 = vpop.permute.xlu0 %832
        %834 = vst [vmem:[%s829] sm:$0xff] %v833
        %s835 = scalar_lea.vmem [#allocation1], 296
        %s836 = scalar_lea.vmem %s598, 664 [#allocation0]
        %v837 = vld [vmem:[%s836] sm:$0xff]
        %838 = vperm.xlu0 %4, %v837
        %v839 = vpop.permute.xlu0 %838
        %840 = vst [vmem:[%s835] sm:$0xff] %v839
        %s841 = scalar_lea.vmem [#allocation1], 304
        %s842 = scalar_lea.vmem %s598, 656 [#allocation0]
        %v843 = vld [vmem:[%s842] sm:$0xff]
        %844 = vperm.xlu0 %4, %v843
        %v845 = vpop.permute.xlu0 %844
        %846 = vst [vmem:[%s841] sm:$0xff] %v845
        %s847 = scalar_lea.vmem [#allocation1], 312
        %s848 = scalar_lea.vmem %s598, 648 [#allocation0]
        %v849 = vld [vmem:[%s848] sm:$0xff]
        %850 = vperm.xlu0 %4, %v849
        %v851 = vpop.permute.xlu0 %850
        %852 = vst [vmem:[%s847] sm:$0xff] %v851
        %s853 = scalar_lea.vmem [#allocation1], 320
        %s854 = scalar_lea.vmem %s598, 640 [#allocation0]
        %v855 = vld [vmem:[%s854] sm:$0xff]
        %856 = vperm.xlu0 %4, %v855
        %v857 = vpop.permute.xlu0 %856
        %858 = vst [vmem:[%s853] sm:$0xff] %v857
        %s859 = scalar_lea.vmem [#allocation1], 328
        %s860 = scalar_lea.vmem %s598, 632 [#allocation0]
        %v861 = vld [vmem:[%s860] sm:$0xff]
        %862 = vperm.xlu0 %4, %v861
        %v863 = vpop.permute.xlu0 %862
        %864 = vst [vmem:[%s859] sm:$0xff] %v863
        %s865 = scalar_lea.vmem [#allocation1], 336
        %s866 = scalar_lea.vmem %s598, 624 [#allocation0]
        %v867 = vld [vmem:[%s866] sm:$0xff]
        %868 = vperm.xlu0 %4, %v867
        %v869 = vpop.permute.xlu0 %868
        %870 = vst [vmem:[%s865] sm:$0xff] %v869
        %s871 = scalar_lea.vmem [#allocation1], 344
        %s872 = scalar_lea.vmem %s598, 616 [#allocation0]
        %v873 = vld [vmem:[%s872] sm:$0xff]
        %874 = vperm.xlu0 %4, %v873
        %v875 = vpop.permute.xlu0 %874
        %876 = vst [vmem:[%s871] sm:$0xff] %v875
        %s877 = scalar_lea.vmem [#allocation1], 352
        %s878 = scalar_lea.vmem %s598, 608 [#allocation0]
        %v879 = vld [vmem:[%s878] sm:$0xff]
        %880 = vperm.xlu0 %4, %v879
        %v881 = vpop.permute.xlu0 %880
        %882 = vst [vmem:[%s877] sm:$0xff] %v881
        %s883 = scalar_lea.vmem [#allocation1], 360
        %s884 = scalar_lea.vmem %s598, 600 [#allocation0]
        %v885 = vld [vmem:[%s884] sm:$0xff]
        %886 = vperm.xlu0 %4, %v885
        %v887 = vpop.permute.xlu0 %886
        %888 = vst [vmem:[%s883] sm:$0xff] %v887
        %s889 = scalar_lea.vmem [#allocation1], 368
        %s890 = scalar_lea.vmem %s598, 592 [#allocation0]
        %v891 = vld [vmem:[%s890] sm:$0xff]
        %892 = vperm.xlu0 %4, %v891
        %v893 = vpop.permute.xlu0 %892
        %894 = vst [vmem:[%s889] sm:$0xff] %v893
        %s895 = scalar_lea.vmem [#allocation1], 376
        %s896 = scalar_lea.vmem %s598, 584 [#allocation0]
        %v897 = vld [vmem:[%s896] sm:$0xff]
        %898 = vperm.xlu0 %4, %v897
        %v899 = vpop.permute.xlu0 %898
        %900 = vst [vmem:[%s895] sm:$0xff] %v899
        %s901 = scalar_lea.vmem [#allocation1], 384
        %s902 = scalar_lea.vmem %s598, 576 [#allocation0]
        %v903 = vld [vmem:[%s902] sm:$0xff]
        %904 = vperm.xlu0 %4, %v903
        %v905 = vpop.permute.xlu0 %904
        %906 = vst [vmem:[%s901] sm:$0xff] %v905
        %s907 = scalar_lea.vmem [#allocation1], 392
        %s908 = scalar_lea.vmem %s598, 568 [#allocation0]
        %v909 = vld [vmem:[%s908] sm:$0xff]
        %910 = vperm.xlu0 %4, %v909
        %v911 = vpop.permute.xlu0 %910
        %912 = vst [vmem:[%s907] sm:$0xff] %v911
        %s913 = scalar_lea.vmem [#allocation1], 400
        %s914 = scalar_lea.vmem %s598, 560 [#allocation0]
        %v915 = vld [vmem:[%s914] sm:$0xff]
        %916 = vperm.xlu0 %4, %v915
        %v917 = vpop.permute.xlu0 %916
        %918 = vst [vmem:[%s913] sm:$0xff] %v917
        %s919 = scalar_lea.vmem [#allocation1], 408
        %s920 = scalar_lea.vmem %s598, 552 [#allocation0]
        %v921 = vld [vmem:[%s920] sm:$0xff]
        %922 = vperm.xlu0 %4, %v921
        %v923 = vpop.permute.xlu0 %922
        %924 = vst [vmem:[%s919] sm:$0xff] %v923
        %s925 = scalar_lea.vmem [#allocation1], 416
        %s926 = scalar_lea.vmem %s598, 544 [#allocation0]
        %v927 = vld [vmem:[%s926] sm:$0xff]
        %928 = vperm.xlu0 %4, %v927
        %v929 = vpop.permute.xlu0 %928
        %930 = vst [vmem:[%s925] sm:$0xff] %v929
        %s931 = scalar_lea.vmem [#allocation1], 424
        %s932 = scalar_lea.vmem %s598, 536 [#allocation0]
        %v933 = vld [vmem:[%s932] sm:$0xff]
        %934 = vperm.xlu0 %4, %v933
        %v935 = vpop.permute.xlu0 %934
        %936 = vst [vmem:[%s931] sm:$0xff] %v935
        %s937 = scalar_lea.vmem [#allocation1], 432
        %s938 = scalar_lea.vmem %s598, 528 [#allocation0]
        %v939 = vld [vmem:[%s938] sm:$0xff]
        %940 = vperm.xlu0 %4, %v939
        %v941 = vpop.permute.xlu0 %940
        %942 = vst [vmem:[%s937] sm:$0xff] %v941
        %s943 = scalar_lea.vmem [#allocation1], 440
        %s944 = scalar_lea.vmem %s598, 520 [#allocation0]
        %v945 = vld [vmem:[%s944] sm:$0xff]
        %946 = vperm.xlu0 %4, %v945
        %v947 = vpop.permute.xlu0 %946
        %948 = vst [vmem:[%s943] sm:$0xff] %v947
        %s949 = scalar_lea.vmem [#allocation1], 448
        %s950 = scalar_lea.vmem %s598, 512 [#allocation0]
        %v951 = vld [vmem:[%s950] sm:$0xff]
        %952 = vperm.xlu0 %4, %v951
        %v953 = vpop.permute.xlu0 %952
        %954 = vst [vmem:[%s949] sm:$0xff] %v953
        %s955 = scalar_lea.vmem [#allocation1], 456
        %s956 = scalar_lea.vmem %s598, 504 [#allocation0]
        %v957 = vld [vmem:[%s956] sm:$0xff]
        %958 = vperm.xlu0 %4, %v957
        %v959 = vpop.permute.xlu0 %958
        %960 = vst [vmem:[%s955] sm:$0xff] %v959
        %s961 = scalar_lea.vmem [#allocation1], 464
        %s962 = scalar_lea.vmem %s598, 496 [#allocation0]
        %v963 = vld [vmem:[%s962] sm:$0xff]
        %964 = vperm.xlu0 %4, %v963
        %v965 = vpop.permute.xlu0 %964
        %966 = vst [vmem:[%s961] sm:$0xff] %v965
        %s967 = scalar_lea.vmem [#allocation1], 472
        %s968 = scalar_lea.vmem %s598, 488 [#allocation0]
        %v969 = vld [vmem:[%s968] sm:$0xff]
        %970 = vperm.xlu0 %4, %v969
        %v971 = vpop.permute.xlu0 %970
        %972 = vst [vmem:[%s967] sm:$0xff] %v971
        %s973 = scalar_lea.vmem [#allocation1], 480
        %s974 = scalar_lea.vmem %s598, 480 [#allocation0]
        %v975 = vld [vmem:[%s974] sm:$0xff]
        %976 = vperm.xlu0 %4, %v975
        %v977 = vpop.permute.xlu0 %976
        %978 = vst [vmem:[%s973] sm:$0xff] %v977
        %s979 = scalar_lea.vmem [#allocation1], 488
        %s980 = scalar_lea.vmem %s598, 472 [#allocation0]
        %v981 = vld [vmem:[%s980] sm:$0xff]
        %982 = vperm.xlu0 %4, %v981
        %v983 = vpop.permute.xlu0 %982
        %984 = vst [vmem:[%s979] sm:$0xff] %v983
        %s985 = scalar_lea.vmem [#allocation1], 496
        %s986 = scalar_lea.vmem %s598, 464 [#allocation0]
        %v987 = vld [vmem:[%s986] sm:$0xff]
        %988 = vperm.xlu0 %4, %v987
        %v989 = vpop.permute.xlu0 %988
        %990 = vst [vmem:[%s985] sm:$0xff] %v989
        %s991 = scalar_lea.vmem [#allocation1], 504
        %s992 = scalar_lea.vmem %s598, 456 [#allocation0]
        %v993 = vld [vmem:[%s992] sm:$0xff]
        %994 = vperm.xlu0 %4, %v993
        %v995 = vpop.permute.xlu0 %994
        %996 = vst [vmem:[%s991] sm:$0xff] %v995
        %s997 = scalar_lea.vmem [#allocation1], 512
        %s998 = scalar_lea.vmem %s598, 448 [#allocation0]
        %v999 = vld [vmem:[%s998] sm:$0xff]
        %1000 = vperm.xlu0 %4, %v999
        %v1001 = vpop.permute.xlu0 %1000
        %1002 = vst [vmem:[%s997] sm:$0xff] %v1001
        %s1003 = scalar_lea.vmem [#allocation1], 520
        %s1004 = scalar_lea.vmem %s598, 440 [#allocation0]
        %v1005 = vld [vmem:[%s1004] sm:$0xff]
        %1006 = vperm.xlu0 %4, %v1005
        %v1007 = vpop.permute.xlu0 %1006
        %1008 = vst [vmem:[%s1003] sm:$0xff] %v1007
        %s1009 = scalar_lea.vmem [#allocation1], 528
        %s1010 = scalar_lea.vmem %s598, 432 [#allocation0]
        %v1011 = vld [vmem:[%s1010] sm:$0xff]
        %1012 = vperm.xlu0 %4, %v1011
        %v1013 = vpop.permute.xlu0 %1012
        %1014 = vst [vmem:[%s1009] sm:$0xff] %v1013
        %s1015 = scalar_lea.vmem [#allocation1], 536
        %s1016 = scalar_lea.vmem %s598, 424 [#allocation0]
        %v1017 = vld [vmem:[%s1016] sm:$0xff]
        %1018 = vperm.xlu0 %4, %v1017
        %v1019 = vpop.permute.xlu0 %1018
        %1020 = vst [vmem:[%s1015] sm:$0xff] %v1019
        %s1021 = scalar_lea.vmem [#allocation1], 544
        %s1022 = scalar_lea.vmem %s598, 416 [#allocation0]
        %v1023 = vld [vmem:[%s1022] sm:$0xff]
        %1024 = vperm.xlu0 %4, %v1023
        %v1025 = vpop.permute.xlu0 %1024
        %1026 = vst [vmem:[%s1021] sm:$0xff] %v1025
        %s1027 = scalar_lea.vmem [#allocation1], 552
        %s1028 = scalar_lea.vmem %s598, 408 [#allocation0]
        %v1029 = vld [vmem:[%s1028] sm:$0xff]
        %1030 = vperm.xlu0 %4, %v1029
        %v1031 = vpop.permute.xlu0 %1030
        %1032 = vst [vmem:[%s1027] sm:$0xff] %v1031
        %s1033 = scalar_lea.vmem [#allocation1], 560
        %s1034 = scalar_lea.vmem %s598, 400 [#allocation0]
        %v1035 = vld [vmem:[%s1034] sm:$0xff]
        %1036 = vperm.xlu0 %4, %v1035
        %v1037 = vpop.permute.xlu0 %1036
        %1038 = vst [vmem:[%s1033] sm:$0xff] %v1037
        %s1039 = scalar_lea.vmem [#allocation1], 568
        %s1040 = scalar_lea.vmem %s598, 392 [#allocation0]
        %v1041 = vld [vmem:[%s1040] sm:$0xff]
        %1042 = vperm.xlu0 %4, %v1041
        %v1043 = vpop.permute.xlu0 %1042
        %1044 = vst [vmem:[%s1039] sm:$0xff] %v1043
        %s1045 = scalar_lea.vmem [#allocation1], 576
        %s1046 = scalar_lea.vmem %s598, 384 [#allocation0]
        %v1047 = vld [vmem:[%s1046] sm:$0xff]
        %1048 = vperm.xlu0 %4, %v1047
        %v1049 = vpop.permute.xlu0 %1048
        %1050 = vst [vmem:[%s1045] sm:$0xff] %v1049
        %s1051 = scalar_lea.vmem [#allocation1], 584
        %s1052 = scalar_lea.vmem %s598, 376 [#allocation0]
        %v1053 = vld [vmem:[%s1052] sm:$0xff]
        %1054 = vperm.xlu0 %4, %v1053
        %v1055 = vpop.permute.xlu0 %1054
        %1056 = vst [vmem:[%s1051] sm:$0xff] %v1055
        %s1057 = scalar_lea.vmem [#allocation1], 592
        %s1058 = scalar_lea.vmem %s598, 368 [#allocation0]
        %v1059 = vld [vmem:[%s1058] sm:$0xff]
        %1060 = vperm.xlu0 %4, %v1059
        %v1061 = vpop.permute.xlu0 %1060
        %1062 = vst [vmem:[%s1057] sm:$0xff] %v1061
        %s1063 = scalar_lea.vmem [#allocation1], 600
        %s1064 = scalar_lea.vmem %s598, 360 [#allocation0]
        %v1065 = vld [vmem:[%s1064] sm:$0xff]
        %1066 = vperm.xlu0 %4, %v1065
        %v1067 = vpop.permute.xlu0 %1066
        %1068 = vst [vmem:[%s1063] sm:$0xff] %v1067
        %s1069 = scalar_lea.vmem [#allocation1], 608
        %s1070 = scalar_lea.vmem %s598, 352 [#allocation0]
        %v1071 = vld [vmem:[%s1070] sm:$0xff]
        %1072 = vperm.xlu0 %4, %v1071
        %v1073 = vpop.permute.xlu0 %1072
        %1074 = vst [vmem:[%s1069] sm:$0xff] %v1073
        %s1075 = scalar_lea.vmem [#allocation1], 616
        %s1076 = scalar_lea.vmem %s598, 344 [#allocation0]
        %v1077 = vld [vmem:[%s1076] sm:$0xff]
        %1078 = vperm.xlu0 %4, %v1077
        %v1079 = vpop.permute.xlu0 %1078
        %1080 = vst [vmem:[%s1075] sm:$0xff] %v1079
        %s1081 = scalar_lea.vmem [#allocation1], 624
        %s1082 = scalar_lea.vmem %s598, 336 [#allocation0]
        %v1083 = vld [vmem:[%s1082] sm:$0xff]
        %1084 = vperm.xlu0 %4, %v1083
        %v1085 = vpop.permute.xlu0 %1084
        %1086 = vst [vmem:[%s1081] sm:$0xff] %v1085
        %s1087 = scalar_lea.vmem [#allocation1], 632
        %s1088 = scalar_lea.vmem %s598, 328 [#allocation0]
        %v1089 = vld [vmem:[%s1088] sm:$0xff]
        %1090 = vperm.xlu0 %4, %v1089
        %v1091 = vpop.permute.xlu0 %1090
        %1092 = vst [vmem:[%s1087] sm:$0xff] %v1091
        %s1093 = scalar_lea.vmem [#allocation1], 640
        %s1094 = scalar_lea.vmem %s598, 320 [#allocation0]
        %v1095 = vld [vmem:[%s1094] sm:$0xff]
        %1096 = vperm.xlu0 %4, %v1095
        %v1097 = vpop.permute.xlu0 %1096
        %1098 = vst [vmem:[%s1093] sm:$0xff] %v1097
        %s1099 = scalar_lea.vmem [#allocation1], 648
        %s1100 = scalar_lea.vmem %s598, 312 [#allocation0]
        %v1101 = vld [vmem:[%s1100] sm:$0xff]
        %1102 = vperm.xlu0 %4, %v1101
        %v1103 = vpop.permute.xlu0 %1102
        %1104 = vst [vmem:[%s1099] sm:$0xff] %v1103
        %s1105 = scalar_lea.vmem [#allocation1], 656
        %s1106 = scalar_lea.vmem %s598, 304 [#allocation0]
        %v1107 = vld [vmem:[%s1106] sm:$0xff]
        %1108 = vperm.xlu0 %4, %v1107
        %v1109 = vpop.permute.xlu0 %1108
        %1110 = vst [vmem:[%s1105] sm:$0xff] %v1109
        %s1111 = scalar_lea.vmem [#allocation1], 664
        %s1112 = scalar_lea.vmem %s598, 296 [#allocation0]
        %v1113 = vld [vmem:[%s1112] sm:$0xff]
        %1114 = vperm.xlu0 %4, %v1113
        %v1115 = vpop.permute.xlu0 %1114
        %1116 = vst [vmem:[%s1111] sm:$0xff] %v1115
        %s1117 = scalar_lea.vmem [#allocation1], 672
        %s1118 = scalar_lea.vmem %s598, 288 [#allocation0]
        %v1119 = vld [vmem:[%s1118] sm:$0xff]
        %1120 = vperm.xlu0 %4, %v1119
        %v1121 = vpop.permute.xlu0 %1120
        %1122 = vst [vmem:[%s1117] sm:$0xff] %v1121
        %s1123 = scalar_lea.vmem [#allocation1], 680
        %s1124 = scalar_lea.vmem %s598, 280 [#allocation0]
        %v1125 = vld [vmem:[%s1124] sm:$0xff]
        %1126 = vperm.xlu0 %4, %v1125
        %v1127 = vpop.permute.xlu0 %1126
        %1128 = vst [vmem:[%s1123] sm:$0xff] %v1127
        %s1129 = scalar_lea.vmem [#allocation1], 688
        %s1130 = scalar_lea.vmem %s598, 272 [#allocation0]
        %v1131 = vld [vmem:[%s1130] sm:$0xff]
        %1132 = vperm.xlu0 %4, %v1131
        %v1133 = vpop.permute.xlu0 %1132
        %1134 = vst [vmem:[%s1129] sm:$0xff] %v1133
        %s1135 = scalar_lea.vmem [#allocation1], 696
        %s1136 = scalar_lea.vmem %s598, 264 [#allocation0]
        %v1137 = vld [vmem:[%s1136] sm:$0xff]
        %1138 = vperm.xlu0 %4, %v1137
        %v1139 = vpop.permute.xlu0 %1138
        %1140 = vst [vmem:[%s1135] sm:$0xff] %v1139
        %s1141 = scalar_lea.vmem [#allocation1], 704
        %s1142 = scalar_lea.vmem %s598, 256 [#allocation0]
        %v1143 = vld [vmem:[%s1142] sm:$0xff]
        %1144 = vperm.xlu0 %4, %v1143
        %v1145 = vpop.permute.xlu0 %1144
        %1146 = vst [vmem:[%s1141] sm:$0xff] %v1145
        %s1147 = scalar_lea.vmem [#allocation1], 712
        %s1148 = scalar_lea.vmem %s598, 248 [#allocation0]
        %v1149 = vld [vmem:[%s1148] sm:$0xff]
        %1150 = vperm.xlu0 %4, %v1149
        %v1151 = vpop.permute.xlu0 %1150
        %1152 = vst [vmem:[%s1147] sm:$0xff] %v1151
        %s1153 = scalar_lea.vmem [#allocation1], 720
        %s1154 = scalar_lea.vmem %s598, 240 [#allocation0]
        %v1155 = vld [vmem:[%s1154] sm:$0xff]
        %1156 = vperm.xlu0 %4, %v1155
        %v1157 = vpop.permute.xlu0 %1156
        %1158 = vst [vmem:[%s1153] sm:$0xff] %v1157
        %s1159 = scalar_lea.vmem [#allocation1], 728
        %s1160 = scalar_lea.vmem %s598, 232 [#allocation0]
        %v1161 = vld [vmem:[%s1160] sm:$0xff]
        %1162 = vperm.xlu0 %4, %v1161
        %v1163 = vpop.permute.xlu0 %1162
        %1164 = vst [vmem:[%s1159] sm:$0xff] %v1163
        %s1165 = scalar_lea.vmem [#allocation1], 736
        %s1166 = scalar_lea.vmem %s598, 224 [#allocation0]
        %v1167 = vld [vmem:[%s1166] sm:$0xff]
        %1168 = vperm.xlu0 %4, %v1167
        %v1169 = vpop.permute.xlu0 %1168
        %1170 = vst [vmem:[%s1165] sm:$0xff] %v1169
        %s1171 = scalar_lea.vmem [#allocation1], 744
        %s1172 = scalar_lea.vmem %s598, 216 [#allocation0]
        %v1173 = vld [vmem:[%s1172] sm:$0xff]
        %1174 = vperm.xlu0 %4, %v1173
        %v1175 = vpop.permute.xlu0 %1174
        %1176 = vst [vmem:[%s1171] sm:$0xff] %v1175
        %s1177 = scalar_lea.vmem [#allocation1], 752
        %s1178 = scalar_lea.vmem %s598, 208 [#allocation0]
        %v1179 = vld [vmem:[%s1178] sm:$0xff]
        %1180 = vperm.xlu0 %4, %v1179
        %v1181 = vpop.permute.xlu0 %1180
        %1182 = vst [vmem:[%s1177] sm:$0xff] %v1181
        %s1183 = scalar_lea.vmem [#allocation1], 760
        %s1184 = scalar_lea.vmem %s598, 200 [#allocation0]
        %v1185 = vld [vmem:[%s1184] sm:$0xff]
        %1186 = vperm.xlu0 %4, %v1185
        %v1187 = vpop.permute.xlu0 %1186
        %1188 = vst [vmem:[%s1183] sm:$0xff] %v1187
        %s1189 = scalar_lea.vmem [#allocation1], 768
        %s1190 = scalar_lea.vmem %s598, 192 [#allocation0]
        %v1191 = vld [vmem:[%s1190] sm:$0xff]
        %1192 = vperm.xlu0 %4, %v1191
        %v1193 = vpop.permute.xlu0 %1192
        %1194 = vst [vmem:[%s1189] sm:$0xff] %v1193
        %s1195 = scalar_lea.vmem [#allocation1], 776
        %s1196 = scalar_lea.vmem %s598, 184 [#allocation0]
        %v1197 = vld [vmem:[%s1196] sm:$0xff]
        %1198 = vperm.xlu0 %4, %v1197
        %v1199 = vpop.permute.xlu0 %1198
        %1200 = vst [vmem:[%s1195] sm:$0xff] %v1199
        %s1201 = scalar_lea.vmem [#allocation1], 784
        %s1202 = scalar_lea.vmem %s598, 176 [#allocation0]
        %v1203 = vld [vmem:[%s1202] sm:$0xff]
        %1204 = vperm.xlu0 %4, %v1203
        %v1205 = vpop.permute.xlu0 %1204
        %1206 = vst [vmem:[%s1201] sm:$0xff] %v1205
        %s1207 = scalar_lea.vmem [#allocation1], 792
        %s1208 = scalar_lea.vmem %s598, 168 [#allocation0]
        %v1209 = vld [vmem:[%s1208] sm:$0xff]
        %1210 = vperm.xlu0 %4, %v1209
        %v1211 = vpop.permute.xlu0 %1210
        %1212 = vst [vmem:[%s1207] sm:$0xff] %v1211
        %s1213 = scalar_lea.vmem [#allocation1], 800
        %s1214 = scalar_lea.vmem %s598, 160 [#allocation0]
        %v1215 = vld [vmem:[%s1214] sm:$0xff]
        %1216 = vperm.xlu0 %4, %v1215
        %v1217 = vpop.permute.xlu0 %1216
        %1218 = vst [vmem:[%s1213] sm:$0xff] %v1217
        %s1219 = scalar_lea.vmem [#allocation1], 808
        %s1220 = scalar_lea.vmem %s598, 152 [#allocation0]
        %v1221 = vld [vmem:[%s1220] sm:$0xff]
        %1222 = vperm.xlu0 %4, %v1221
        %v1223 = vpop.permute.xlu0 %1222
        %1224 = vst [vmem:[%s1219] sm:$0xff] %v1223
        %s1225 = scalar_lea.vmem [#allocation1], 816
        %s1226 = scalar_lea.vmem %s598, 144 [#allocation0]
        %v1227 = vld [vmem:[%s1226] sm:$0xff]
        %1228 = vperm.xlu0 %4, %v1227
        %v1229 = vpop.permute.xlu0 %1228
        %1230 = vst [vmem:[%s1225] sm:$0xff] %v1229
        %s1231 = scalar_lea.vmem [#allocation1], 824
        %s1232 = scalar_lea.vmem %s598, 136 [#allocation0]
        %v1233 = vld [vmem:[%s1232] sm:$0xff]
        %1234 = vperm.xlu0 %4, %v1233
        %v1235 = vpop.permute.xlu0 %1234
        %1236 = vst [vmem:[%s1231] sm:$0xff] %v1235
        %s1237 = scalar_lea.vmem [#allocation1], 832
        %s1238 = scalar_lea.vmem %s598, 128 [#allocation0]
        %v1239 = vld [vmem:[%s1238] sm:$0xff]
        %1240 = vperm.xlu0 %4, %v1239
        %v1241 = vpop.permute.xlu0 %1240
        %1242 = vst [vmem:[%s1237] sm:$0xff] %v1241
        %s1243 = scalar_lea.vmem [#allocation1], 840
        %s1244 = scalar_lea.vmem %s598, 120 [#allocation0]
        %v1245 = vld [vmem:[%s1244] sm:$0xff]
        %1246 = vperm.xlu0 %4, %v1245
        %v1247 = vpop.permute.xlu0 %1246
        %1248 = vst [vmem:[%s1243] sm:$0xff] %v1247
        %s1249 = scalar_lea.vmem [#allocation1], 848
        %s1250 = scalar_lea.vmem %s598, 112 [#allocation0]
        %v1251 = vld [vmem:[%s1250] sm:$0xff]
        %1252 = vperm.xlu0 %4, %v1251
        %v1253 = vpop.permute.xlu0 %1252
        %1254 = vst [vmem:[%s1249] sm:$0xff] %v1253
        %s1255 = scalar_lea.vmem [#allocation1], 856
        %s1256 = scalar_lea.vmem %s598, 104 [#allocation0]
        %v1257 = vld [vmem:[%s1256] sm:$0xff]
        %1258 = vperm.xlu0 %4, %v1257
        %v1259 = vpop.permute.xlu0 %1258
        %1260 = vst [vmem:[%s1255] sm:$0xff] %v1259
        %s1261 = scalar_lea.vmem [#allocation1], 864
        %s1262 = scalar_lea.vmem %s598, 96 [#allocation0]
        %v1263 = vld [vmem:[%s1262] sm:$0xff]
        %1264 = vperm.xlu0 %4, %v1263
        %v1265 = vpop.permute.xlu0 %1264
        %1266 = vst [vmem:[%s1261] sm:$0xff] %v1265
        %s1267 = scalar_lea.vmem [#allocation1], 872
        %s1268 = scalar_lea.vmem %s598, 88 [#allocation0]
        %v1269 = vld [vmem:[%s1268] sm:$0xff]
        %1270 = vperm.xlu0 %4, %v1269
        %v1271 = vpop.permute.xlu0 %1270
        %1272 = vst [vmem:[%s1267] sm:$0xff] %v1271
        %s1273 = scalar_lea.vmem [#allocation1], 880
        %s1274 = scalar_lea.vmem %s598, 80 [#allocation0]
        %v1275 = vld [vmem:[%s1274] sm:$0xff]
        %1276 = vperm.xlu0 %4, %v1275
        %v1277 = vpop.permute.xlu0 %1276
        %1278 = vst [vmem:[%s1273] sm:$0xff] %v1277
        %s1279 = scalar_lea.vmem [#allocation1], 888
        %s1280 = scalar_lea.vmem %s598, 72 [#allocation0]
        %v1281 = vld [vmem:[%s1280] sm:$0xff]
        %1282 = vperm.xlu0 %4, %v1281
        %v1283 = vpop.permute.xlu0 %1282
        %1284 = vst [vmem:[%s1279] sm:$0xff] %v1283
        %s1285 = scalar_lea.vmem [#allocation1], 896
        %s1286 = scalar_lea.vmem %s598, 64 [#allocation0]
        %v1287 = vld [vmem:[%s1286] sm:$0xff]
        %1288 = vperm.xlu0 %4, %v1287
        %v1289 = vpop.permute.xlu0 %1288
        %1290 = vst [vmem:[%s1285] sm:$0xff] %v1289
        %s1291 = scalar_lea.vmem [#allocation1], 904
        %s1292 = scalar_lea.vmem %s598, 56 [#allocation0]
        %v1293 = vld [vmem:[%s1292] sm:$0xff]
        %1294 = vperm.xlu0 %4, %v1293
        %v1295 = vpop.permute.xlu0 %1294
        %1296 = vst [vmem:[%s1291] sm:$0xff] %v1295
        %s1297 = scalar_lea.vmem [#allocation1], 912
        %s1298 = scalar_lea.vmem %s598, 48 [#allocation0]
        %v1299 = vld [vmem:[%s1298] sm:$0xff]
        %1300 = vperm.xlu0 %4, %v1299
        %v1301 = vpop.permute.xlu0 %1300
        %1302 = vst [vmem:[%s1297] sm:$0xff] %v1301
        %s1303 = scalar_lea.vmem [#allocation1], 920
        %s1304 = scalar_lea.vmem %s598, 40 [#allocation0]
        %v1305 = vld [vmem:[%s1304] sm:$0xff]
        %1306 = vperm.xlu0 %4, %v1305
        %v1307 = vpop.permute.xlu0 %1306
        %1308 = vst [vmem:[%s1303] sm:$0xff] %v1307
        %s1309 = scalar_lea.vmem [#allocation1], 928
        %s1310 = scalar_lea.vmem %s598, 32 [#allocation0]
        %v1311 = vld [vmem:[%s1310] sm:$0xff]
        %1312 = vperm.xlu0 %4, %v1311
        %v1313 = vpop.permute.xlu0 %1312
        %1314 = vst [vmem:[%s1309] sm:$0xff] %v1313
        %s1315 = scalar_lea.vmem [#allocation1], 936
        %s1316 = scalar_lea.vmem %s598, 24 [#allocation0]
        %v1317 = vld [vmem:[%s1316] sm:$0xff]
        %1318 = vperm.xlu0 %4, %v1317
        %v1319 = vpop.permute.xlu0 %1318
        %1320 = vst [vmem:[%s1315] sm:$0xff] %v1319
        %s1321 = scalar_lea.vmem [#allocation1], 944
        %s1322 = scalar_lea.vmem %s598, 16 [#allocation0]
        %v1323 = vld [vmem:[%s1322] sm:$0xff]
        %1324 = vperm.xlu0 %4, %v1323
        %v1325 = vpop.permute.xlu0 %1324
        %1326 = vst [vmem:[%s1321] sm:$0xff] %v1325
        %s1327 = scalar_lea.vmem [#allocation1], 952
        %s1328 = scalar_lea.vmem %s598, 8 [#allocation0]
        %v1329 = vld [vmem:[%s1328] sm:$0xff]
        %1330 = vperm.xlu0 %4, %v1329
        %v1331 = vpop.permute.xlu0 %1330
        %1332 = vst [vmem:[%s1327] sm:$0xff] %v1331
        %s1333 = scalar_lea.vmem [#allocation1], 960
        %v1334 = vld [vmem:[%s598] sm:$0xff]
        %1335 = vperm.xlu0 %4, %v1334
        %v1336 = vpop.permute.xlu0 %1335
        %1337 = vst [vmem:[%s1333] sm:$0xff] %v1336
        %s1339 = smul.u32 4, 2
        %s1340 = sshll.u32 1, %s1339
        %s1341 = ssub.s32 %s1340, 1
        %s1342 = sshrl.u32 %s1339, 1
        %v1343 = vld [vmem:[#allocation1] sm:%s1341]
        %v1344 = vpack.c.bf16 0.0, %v1343
        %s1345 = sshll.u32 1, %s1342
        %s1346 = ssub.s32 %s1345, 1
        %1347 = vst [vmem:[%s606] sm:%s1346] %v1344
        %s1348 = scalar_lea.vmem [#allocation1], 8
        %v1349 = vld [vmem:[%s1348] sm:%s1341]
        %v1350 = vpack.c.bf16 0.0, %v1349
        %s1351 = sshll.u32 1, %s1342
        %s1352 = ssub.s32 %s1351, 1
        %s1353 = scalar_lea.vmem %s606, 4 [#allocation2]
        %1354 = vst [vmem:[%s1353] sm:%s1352] %v1350
        %s1355 = scalar_lea.vmem [#allocation1], 16
        %v1356 = vld [vmem:[%s1355] sm:%s1341]
        %v1357 = vpack.c.bf16 0.0, %v1356
        %s1358 = sshll.u32 1, %s1342
        %s1359 = ssub.s32 %s1358, 1
        %s1360 = smul.addr 4, 2
        %s1361 = scalar_lea.vmem %s606, %s1360 [#allocation2]
        %1362 = vst [vmem:[%s1361] sm:%s1359] %v1357
        %s1363 = scalar_lea.vmem [#allocation1], 24
        %v1364 = vld [vmem:[%s1363] sm:%s1341]
        %v1365 = vpack.c.bf16 0.0, %v1364
        %s1366 = sshll.u32 1, %s1342
        %s1367 = ssub.s32 %s1366, 1
        %s1368 = smul.addr 4, 3
        %s1369 = scalar_lea.vmem %s606, %s1368 [#allocation2]
        %1370 = vst [vmem:[%s1369] sm:%s1367] %v1365
        %s1371 = scalar_lea.vmem [#allocation1], 32
        %v1372 = vld [vmem:[%s1371] sm:%s1341]
        %v1373 = vpack.c.bf16 0.0, %v1372
        %s1374 = sshll.u32 1, %s1342
        %s1375 = ssub.s32 %s1374, 1
        %s1376 = smul.addr 4, 4
        %s1377 = scalar_lea.vmem %s606, %s1376 [#allocation2]
        %1378 = vst [vmem:[%s1377] sm:%s1375] %v1373
        %s1379 = scalar_lea.vmem [#allocation1], 40
        %v1380 = vld [vmem:[%s1379] sm:%s1341]
        %v1381 = vpack.c.bf16 0.0, %v1380
        %s1382 = sshll.u32 1, %s1342
        %s1383 = ssub.s32 %s1382, 1
        %s1384 = smul.addr 4, 5
        %s1385 = scalar_lea.vmem %s606, %s1384 [#allocation2]
        %1386 = vst [vmem:[%s1385] sm:%s1383] %v1381
        %s1387 = scalar_lea.vmem [#allocation1], 48
        %v1388 = vld [vmem:[%s1387] sm:%s1341]
        %v1389 = vpack.c.bf16 0.0, %v1388
        %s1390 = sshll.u32 1, %s1342
        %s1391 = ssub.s32 %s1390, 1
        %s1392 = smul.addr 4, 6
        %s1393 = scalar_lea.vmem %s606, %s1392 [#allocation2]
        %1394 = vst [vmem:[%s1393] sm:%s1391] %v1389
        %s1395 = scalar_lea.vmem [#allocation1], 56
        %v1396 = vld [vmem:[%s1395] sm:%s1341]
        %v1397 = vpack.c.bf16 0.0, %v1396
        %s1398 = sshll.u32 1, %s1342
        %s1399 = ssub.s32 %s1398, 1
        %s1400 = smul.addr 4, 7
        %s1401 = scalar_lea.vmem %s606, %s1400 [#allocation2]
        %1402 = vst [vmem:[%s1401] sm:%s1399] %v1397
        %s1403 = scalar_lea.vmem [#allocation1], 64
        %v1404 = vld [vmem:[%s1403] sm:%s1341]
        %v1405 = vpack.c.bf16 0.0, %v1404
        %s1406 = sshll.u32 1, %s1342
        %s1407 = ssub.s32 %s1406, 1
        %s1408 = smul.addr 4, 8
        %s1409 = scalar_lea.vmem %s606, %s1408 [#allocation2]
        %1410 = vst [vmem:[%s1409] sm:%s1407] %v1405
        %s1411 = scalar_lea.vmem [#allocation1], 72
        %v1412 = vld [vmem:[%s1411] sm:%s1341]
        %v1413 = vpack.c.bf16 0.0, %v1412
        %s1414 = sshll.u32 1, %s1342
        %s1415 = ssub.s32 %s1414, 1
        %s1416 = smul.addr 4, 9
        %s1417 = scalar_lea.vmem %s606, %s1416 [#allocation2]
        %1418 = vst [vmem:[%s1417] sm:%s1415] %v1413
        %s1419 = scalar_lea.vmem [#allocation1], 80
        %v1420 = vld [vmem:[%s1419] sm:%s1341]
        %v1421 = vpack.c.bf16 0.0, %v1420
        %s1422 = sshll.u32 1, %s1342
        %s1423 = ssub.s32 %s1422, 1
        %s1424 = smul.addr 4, 10
        %s1425 = scalar_lea.vmem %s606, %s1424 [#allocation2]
        %1426 = vst [vmem:[%s1425] sm:%s1423] %v1421
        %s1427 = scalar_lea.vmem [#allocation1], 88
        %v1428 = vld [vmem:[%s1427] sm:%s1341]
        %v1429 = vpack.c.bf16 0.0, %v1428
        %s1430 = sshll.u32 1, %s1342
        %s1431 = ssub.s32 %s1430, 1
        %s1432 = smul.addr 4, 11
        %s1433 = scalar_lea.vmem %s606, %s1432 [#allocation2]
        %1434 = vst [vmem:[%s1433] sm:%s1431] %v1429
        %s1435 = scalar_lea.vmem [#allocation1], 96
        %v1436 = vld [vmem:[%s1435] sm:%s1341]
        %v1437 = vpack.c.bf16 0.0, %v1436
        %s1438 = sshll.u32 1, %s1342
        %s1439 = ssub.s32 %s1438, 1
        %s1440 = smul.addr 4, 12
        %s1441 = scalar_lea.vmem %s606, %s1440 [#allocation2]
        %1442 = vst [vmem:[%s1441] sm:%s1439] %v1437
        %s1443 = scalar_lea.vmem [#allocation1], 104
        %v1444 = vld [vmem:[%s1443] sm:%s1341]
        %v1445 = vpack.c.bf16 0.0, %v1444
        %s1446 = sshll.u32 1, %s1342
        %s1447 = ssub.s32 %s1446, 1
        %s1448 = smul.addr 4, 13
        %s1449 = scalar_lea.vmem %s606, %s1448 [#allocation2]
        %1450 = vst [vmem:[%s1449] sm:%s1447] %v1445
        %s1451 = scalar_lea.vmem [#allocation1], 112
        %v1452 = vld [vmem:[%s1451] sm:%s1341]
        %v1453 = vpack.c.bf16 0.0, %v1452
        %s1454 = sshll.u32 1, %s1342
        %s1455 = ssub.s32 %s1454, 1
        %s1456 = smul.addr 4, 14
        %s1457 = scalar_lea.vmem %s606, %s1456 [#allocation2]
        %1458 = vst [vmem:[%s1457] sm:%s1455] %v1453
        %s1459 = scalar_lea.vmem [#allocation1], 120
        %v1460 = vld [vmem:[%s1459] sm:%s1341]
        %v1461 = vpack.c.bf16 0.0, %v1460
        %s1462 = sshll.u32 1, %s1342
        %s1463 = ssub.s32 %s1462, 1
        %s1464 = smul.addr 4, 15
        %s1465 = scalar_lea.vmem %s606, %s1464 [#allocation2]
        %1466 = vst [vmem:[%s1465] sm:%s1463] %v1461
        %s1467 = scalar_lea.vmem [#allocation1], 128
        %v1468 = vld [vmem:[%s1467] sm:%s1341]
        %v1469 = vpack.c.bf16 0.0, %v1468
        %s1470 = sshll.u32 1, %s1342
        %s1471 = ssub.s32 %s1470, 1
        %s1472 = smul.addr 4, 16
        %s1473 = scalar_lea.vmem %s606, %s1472 [#allocation2]
        %1474 = vst [vmem:[%s1473] sm:%s1471] %v1469
        %s1475 = scalar_lea.vmem [#allocation1], 136
        %v1476 = vld [vmem:[%s1475] sm:%s1341]
        %v1477 = vpack.c.bf16 0.0, %v1476
        %s1478 = sshll.u32 1, %s1342
        %s1479 = ssub.s32 %s1478, 1
        %s1480 = smul.addr 4, 17
        %s1481 = scalar_lea.vmem %s606, %s1480 [#allocation2]
        %1482 = vst [vmem:[%s1481] sm:%s1479] %v1477
        %s1483 = scalar_lea.vmem [#allocation1], 144
        %v1484 = vld [vmem:[%s1483] sm:%s1341]
        %v1485 = vpack.c.bf16 0.0, %v1484
        %s1486 = sshll.u32 1, %s1342
        %s1487 = ssub.s32 %s1486, 1
        %s1488 = smul.addr 4, 18
        %s1489 = scalar_lea.vmem %s606, %s1488 [#allocation2]
        %1490 = vst [vmem:[%s1489] sm:%s1487] %v1485
        %s1491 = scalar_lea.vmem [#allocation1], 152
        %v1492 = vld [vmem:[%s1491] sm:%s1341]
        %v1493 = vpack.c.bf16 0.0, %v1492
        %s1494 = sshll.u32 1, %s1342
        %s1495 = ssub.s32 %s1494, 1
        %s1496 = smul.addr 4, 19
        %s1497 = scalar_lea.vmem %s606, %s1496 [#allocation2]
        %1498 = vst [vmem:[%s1497] sm:%s1495] %v1493
        %s1499 = scalar_lea.vmem [#allocation1], 160
        %v1500 = vld [vmem:[%s1499] sm:%s1341]
        %v1501 = vpack.c.bf16 0.0, %v1500
        %s1502 = sshll.u32 1, %s1342
        %s1503 = ssub.s32 %s1502, 1
        %s1504 = smul.addr 4, 20
        %s1505 = scalar_lea.vmem %s606, %s1504 [#allocation2]
        %1506 = vst [vmem:[%s1505] sm:%s1503] %v1501
        %s1507 = scalar_lea.vmem [#allocation1], 168
        %v1508 = vld [vmem:[%s1507] sm:%s1341]
        %v1509 = vpack.c.bf16 0.0, %v1508
        %s1510 = sshll.u32 1, %s1342
        %s1511 = ssub.s32 %s1510, 1
        %s1512 = smul.addr 4, 21
        %s1513 = scalar_lea.vmem %s606, %s1512 [#allocation2]
        %1514 = vst [vmem:[%s1513] sm:%s1511] %v1509
        %s1515 = scalar_lea.vmem [#allocation1], 176
        %v1516 = vld [vmem:[%s1515] sm:%s1341]
        %v1517 = vpack.c.bf16 0.0, %v1516
        %s1518 = sshll.u32 1, %s1342
        %s1519 = ssub.s32 %s1518, 1
        %s1520 = smul.addr 4, 22
        %s1521 = scalar_lea.vmem %s606, %s1520 [#allocation2]
        %1522 = vst [vmem:[%s1521] sm:%s1519] %v1517
        %s1523 = scalar_lea.vmem [#allocation1], 184
        %v1524 = vld [vmem:[%s1523] sm:%s1341]
        %v1525 = vpack.c.bf16 0.0, %v1524
        %s1526 = sshll.u32 1, %s1342
        %s1527 = ssub.s32 %s1526, 1
        %s1528 = smul.addr 4, 23
        %s1529 = scalar_lea.vmem %s606, %s1528 [#allocation2]
        %1530 = vst [vmem:[%s1529] sm:%s1527] %v1525
        %s1531 = scalar_lea.vmem [#allocation1], 192
        %v1532 = vld [vmem:[%s1531] sm:%s1341]
        %v1533 = vpack.c.bf16 0.0, %v1532
        %s1534 = sshll.u32 1, %s1342
        %s1535 = ssub.s32 %s1534, 1
        %s1536 = smul.addr 4, 24
        %s1537 = scalar_lea.vmem %s606, %s1536 [#allocation2]
        %1538 = vst [vmem:[%s1537] sm:%s1535] %v1533
        %s1539 = scalar_lea.vmem [#allocation1], 200
        %v1540 = vld [vmem:[%s1539] sm:%s1341]
        %v1541 = vpack.c.bf16 0.0, %v1540
        %s1542 = sshll.u32 1, %s1342
        %s1543 = ssub.s32 %s1542, 1
        %s1544 = smul.addr 4, 25
        %s1545 = scalar_lea.vmem %s606, %s1544 [#allocation2]
        %1546 = vst [vmem:[%s1545] sm:%s1543] %v1541
        %s1547 = scalar_lea.vmem [#allocation1], 208
        %v1548 = vld [vmem:[%s1547] sm:%s1341]
        %v1549 = vpack.c.bf16 0.0, %v1548
        %s1550 = sshll.u32 1, %s1342
        %s1551 = ssub.s32 %s1550, 1
        %s1552 = smul.addr 4, 26
        %s1553 = scalar_lea.vmem %s606, %s1552 [#allocation2]
        %1554 = vst [vmem:[%s1553] sm:%s1551] %v1549
        %s1555 = scalar_lea.vmem [#allocation1], 216
        %v1556 = vld [vmem:[%s1555] sm:%s1341]
        %v1557 = vpack.c.bf16 0.0, %v1556
        %s1558 = sshll.u32 1, %s1342
        %s1559 = ssub.s32 %s1558, 1
        %s1560 = smul.addr 4, 27
        %s1561 = scalar_lea.vmem %s606, %s1560 [#allocation2]
        %1562 = vst [vmem:[%s1561] sm:%s1559] %v1557
        %s1563 = scalar_lea.vmem [#allocation1], 224
        %v1564 = vld [vmem:[%s1563] sm:%s1341]
        %v1565 = vpack.c.bf16 0.0, %v1564
        %s1566 = sshll.u32 1, %s1342
        %s1567 = ssub.s32 %s1566, 1
        %s1568 = smul.addr 4, 28
        %s1569 = scalar_lea.vmem %s606, %s1568 [#allocation2]
        %1570 = vst [vmem:[%s1569] sm:%s1567] %v1565
        %s1571 = scalar_lea.vmem [#allocation1], 232
        %v1572 = vld [vmem:[%s1571] sm:%s1341]
        %v1573 = vpack.c.bf16 0.0, %v1572
        %s1574 = sshll.u32 1, %s1342
        %s1575 = ssub.s32 %s1574, 1
        %s1576 = smul.addr 4, 29
        %s1577 = scalar_lea.vmem %s606, %s1576 [#allocation2]
        %1578 = vst [vmem:[%s1577] sm:%s1575] %v1573
        %s1579 = scalar_lea.vmem [#allocation1], 240
        %v1580 = vld [vmem:[%s1579] sm:%s1341]
        %v1581 = vpack.c.bf16 0.0, %v1580
        %s1582 = sshll.u32 1, %s1342
        %s1583 = ssub.s32 %s1582, 1
        %s1584 = smul.addr 4, 30
        %s1585 = scalar_lea.vmem %s606, %s1584 [#allocation2]
        %1586 = vst [vmem:[%s1585] sm:%s1583] %v1581
        %s1587 = scalar_lea.vmem [#allocation1], 248
        %v1588 = vld [vmem:[%s1587] sm:%s1341]
        %v1589 = vpack.c.bf16 0.0, %v1588
        %s1590 = sshll.u32 1, %s1342
        %s1591 = ssub.s32 %s1590, 1
        %s1592 = smul.addr 4, 31
        %s1593 = scalar_lea.vmem %s606, %s1592 [#allocation2]
        %1594 = vst [vmem:[%s1593] sm:%s1591] %v1589
        %s1595 = scalar_lea.vmem [#allocation1], 256
        %v1596 = vld [vmem:[%s1595] sm:%s1341]
        %v1597 = vpack.c.bf16 0.0, %v1596
        %s1598 = sshll.u32 1, %s1342
        %s1599 = ssub.s32 %s1598, 1
        %s1600 = smul.addr 4, 32
        %s1601 = scalar_lea.vmem %s606, %s1600 [#allocation2]
        %1602 = vst [vmem:[%s1601] sm:%s1599] %v1597
        %s1603 = scalar_lea.vmem [#allocation1], 264
        %v1604 = vld [vmem:[%s1603] sm:%s1341]
        %v1605 = vpack.c.bf16 0.0, %v1604
        %s1606 = sshll.u32 1, %s1342
        %s1607 = ssub.s32 %s1606, 1
        %s1608 = smul.addr 4, 33
        %s1609 = scalar_lea.vmem %s606, %s1608 [#allocation2]
        %1610 = vst [vmem:[%s1609] sm:%s1607] %v1605
        %s1611 = scalar_lea.vmem [#allocation1], 272
        %v1612 = vld [vmem:[%s1611] sm:%s1341]
        %v1613 = vpack.c.bf16 0.0, %v1612
        %s1614 = sshll.u32 1, %s1342
        %s1615 = ssub.s32 %s1614, 1
        %s1616 = smul.addr 4, 34
        %s1617 = scalar_lea.vmem %s606, %s1616 [#allocation2]
        %1618 = vst [vmem:[%s1617] sm:%s1615] %v1613
        %s1619 = scalar_lea.vmem [#allocation1], 280
        %v1620 = vld [vmem:[%s1619] sm:%s1341]
        %v1621 = vpack.c.bf16 0.0, %v1620
        %s1622 = sshll.u32 1, %s1342
        %s1623 = ssub.s32 %s1622, 1
        %s1624 = smul.addr 4, 35
        %s1625 = scalar_lea.vmem %s606, %s1624 [#allocation2]
        %1626 = vst [vmem:[%s1625] sm:%s1623] %v1621
        %s1627 = scalar_lea.vmem [#allocation1], 288
        %v1628 = vld [vmem:[%s1627] sm:%s1341]
        %v1629 = vpack.c.bf16 0.0, %v1628
        %s1630 = sshll.u32 1, %s1342
        %s1631 = ssub.s32 %s1630, 1
        %s1632 = smul.addr 4, 36
        %s1633 = scalar_lea.vmem %s606, %s1632 [#allocation2]
        %1634 = vst [vmem:[%s1633] sm:%s1631] %v1629
        %s1635 = scalar_lea.vmem [#allocation1], 296
        %v1636 = vld [vmem:[%s1635] sm:%s1341]
        %v1637 = vpack.c.bf16 0.0, %v1636
        %s1638 = sshll.u32 1, %s1342
        %s1639 = ssub.s32 %s1638, 1
        %s1640 = smul.addr 4, 37
        %s1641 = scalar_lea.vmem %s606, %s1640 [#allocation2]
        %1642 = vst [vmem:[%s1641] sm:%s1639] %v1637
        %s1643 = scalar_lea.vmem [#allocation1], 304
        %v1644 = vld [vmem:[%s1643] sm:%s1341]
        %v1645 = vpack.c.bf16 0.0, %v1644
        %s1646 = sshll.u32 1, %s1342
        %s1647 = ssub.s32 %s1646, 1
        %s1648 = smul.addr 4, 38
        %s1649 = scalar_lea.vmem %s606, %s1648 [#allocation2]
        %1650 = vst [vmem:[%s1649] sm:%s1647] %v1645
        %s1651 = scalar_lea.vmem [#allocation1], 312
        %v1652 = vld [vmem:[%s1651] sm:%s1341]
        %v1653 = vpack.c.bf16 0.0, %v1652
        %s1654 = sshll.u32 1, %s1342
        %s1655 = ssub.s32 %s1654, 1
        %s1656 = smul.addr 4, 39
        %s1657 = scalar_lea.vmem %s606, %s1656 [#allocation2]
        %1658 = vst [vmem:[%s1657] sm:%s1655] %v1653
        %s1659 = scalar_lea.vmem [#allocation1], 320
        %v1660 = vld [vmem:[%s1659] sm:%s1341]
        %v1661 = vpack.c.bf16 0.0, %v1660
        %s1662 = sshll.u32 1, %s1342
        %s1663 = ssub.s32 %s1662, 1
        %s1664 = smul.addr 4, 40
        %s1665 = scalar_lea.vmem %s606, %s1664 [#allocation2]
        %1666 = vst [vmem:[%s1665] sm:%s1663] %v1661
        %s1667 = scalar_lea.vmem [#allocation1], 328
        %v1668 = vld [vmem:[%s1667] sm:%s1341]
        %v1669 = vpack.c.bf16 0.0, %v1668
        %s1670 = sshll.u32 1, %s1342
        %s1671 = ssub.s32 %s1670, 1
        %s1672 = smul.addr 4, 41
        %s1673 = scalar_lea.vmem %s606, %s1672 [#allocation2]
        %1674 = vst [vmem:[%s1673] sm:%s1671] %v1669
        %s1675 = scalar_lea.vmem [#allocation1], 336
        %v1676 = vld [vmem:[%s1675] sm:%s1341]
        %v1677 = vpack.c.bf16 0.0, %v1676
        %s1678 = sshll.u32 1, %s1342
        %s1679 = ssub.s32 %s1678, 1
        %s1680 = smul.addr 4, 42
        %s1681 = scalar_lea.vmem %s606, %s1680 [#allocation2]
        %1682 = vst [vmem:[%s1681] sm:%s1679] %v1677
        %s1683 = scalar_lea.vmem [#allocation1], 344
        %v1684 = vld [vmem:[%s1683] sm:%s1341]
        %v1685 = vpack.c.bf16 0.0, %v1684
        %s1686 = sshll.u32 1, %s1342
        %s1687 = ssub.s32 %s1686, 1
        %s1688 = smul.addr 4, 43
        %s1689 = scalar_lea.vmem %s606, %s1688 [#allocation2]
        %1690 = vst [vmem:[%s1689] sm:%s1687] %v1685
        %s1691 = scalar_lea.vmem [#allocation1], 352
        %v1692 = vld [vmem:[%s1691] sm:%s1341]
        %v1693 = vpack.c.bf16 0.0, %v1692
        %s1694 = sshll.u32 1, %s1342
        %s1695 = ssub.s32 %s1694, 1
        %s1696 = smul.addr 4, 44
        %s1697 = scalar_lea.vmem %s606, %s1696 [#allocation2]
        %1698 = vst [vmem:[%s1697] sm:%s1695] %v1693
        %s1699 = scalar_lea.vmem [#allocation1], 360
        %v1700 = vld [vmem:[%s1699] sm:%s1341]
        %v1701 = vpack.c.bf16 0.0, %v1700
        %s1702 = sshll.u32 1, %s1342
        %s1703 = ssub.s32 %s1702, 1
        %s1704 = smul.addr 4, 45
        %s1705 = scalar_lea.vmem %s606, %s1704 [#allocation2]
        %1706 = vst [vmem:[%s1705] sm:%s1703] %v1701
        %s1707 = scalar_lea.vmem [#allocation1], 368
        %v1708 = vld [vmem:[%s1707] sm:%s1341]
        %v1709 = vpack.c.bf16 0.0, %v1708
        %s1710 = sshll.u32 1, %s1342
        %s1711 = ssub.s32 %s1710, 1
        %s1712 = smul.addr 4, 46
        %s1713 = scalar_lea.vmem %s606, %s1712 [#allocation2]
        %1714 = vst [vmem:[%s1713] sm:%s1711] %v1709
        %s1715 = scalar_lea.vmem [#allocation1], 376
        %v1716 = vld [vmem:[%s1715] sm:%s1341]
        %v1717 = vpack.c.bf16 0.0, %v1716
        %s1718 = sshll.u32 1, %s1342
        %s1719 = ssub.s32 %s1718, 1
        %s1720 = smul.addr 4, 47
        %s1721 = scalar_lea.vmem %s606, %s1720 [#allocation2]
        %1722 = vst [vmem:[%s1721] sm:%s1719] %v1717
        %s1723 = scalar_lea.vmem [#allocation1], 384
        %v1724 = vld [vmem:[%s1723] sm:%s1341]
        %v1725 = vpack.c.bf16 0.0, %v1724
        %s1726 = sshll.u32 1, %s1342
        %s1727 = ssub.s32 %s1726, 1
        %s1728 = smul.addr 4, 48
        %s1729 = scalar_lea.vmem %s606, %s1728 [#allocation2]
        %1730 = vst [vmem:[%s1729] sm:%s1727] %v1725
        %s1731 = scalar_lea.vmem [#allocation1], 392
        %v1732 = vld [vmem:[%s1731] sm:%s1341]
        %v1733 = vpack.c.bf16 0.0, %v1732
        %s1734 = sshll.u32 1, %s1342
        %s1735 = ssub.s32 %s1734, 1
        %s1736 = smul.addr 4, 49
        %s1737 = scalar_lea.vmem %s606, %s1736 [#allocation2]
        %1738 = vst [vmem:[%s1737] sm:%s1735] %v1733
        %s1739 = scalar_lea.vmem [#allocation1], 400
        %v1740 = vld [vmem:[%s1739] sm:%s1341]
        %v1741 = vpack.c.bf16 0.0, %v1740
        %s1742 = sshll.u32 1, %s1342
        %s1743 = ssub.s32 %s1742, 1
        %s1744 = smul.addr 4, 50
        %s1745 = scalar_lea.vmem %s606, %s1744 [#allocation2]
        %1746 = vst [vmem:[%s1745] sm:%s1743] %v1741
        %s1747 = scalar_lea.vmem [#allocation1], 408
        %v1748 = vld [vmem:[%s1747] sm:%s1341]
        %v1749 = vpack.c.bf16 0.0, %v1748
        %s1750 = sshll.u32 1, %s1342
        %s1751 = ssub.s32 %s1750, 1
        %s1752 = smul.addr 4, 51
        %s1753 = scalar_lea.vmem %s606, %s1752 [#allocation2]
        %1754 = vst [vmem:[%s1753] sm:%s1751] %v1749
        %s1755 = scalar_lea.vmem [#allocation1], 416
        %v1756 = vld [vmem:[%s1755] sm:%s1341]
        %v1757 = vpack.c.bf16 0.0, %v1756
        %s1758 = sshll.u32 1, %s1342
        %s1759 = ssub.s32 %s1758, 1
        %s1760 = smul.addr 4, 52
        %s1761 = scalar_lea.vmem %s606, %s1760 [#allocation2]
        %1762 = vst [vmem:[%s1761] sm:%s1759] %v1757
        %s1763 = scalar_lea.vmem [#allocation1], 424
        %v1764 = vld [vmem:[%s1763] sm:%s1341]
        %v1765 = vpack.c.bf16 0.0, %v1764
        %s1766 = sshll.u32 1, %s1342
        %s1767 = ssub.s32 %s1766, 1
        %s1768 = smul.addr 4, 53
        %s1769 = scalar_lea.vmem %s606, %s1768 [#allocation2]
        %1770 = vst [vmem:[%s1769] sm:%s1767] %v1765
        %s1771 = scalar_lea.vmem [#allocation1], 432
        %v1772 = vld [vmem:[%s1771] sm:%s1341]
        %v1773 = vpack.c.bf16 0.0, %v1772
        %s1774 = sshll.u32 1, %s1342
        %s1775 = ssub.s32 %s1774, 1
        %s1776 = smul.addr 4, 54
        %s1777 = scalar_lea.vmem %s606, %s1776 [#allocation2]
        %1778 = vst [vmem:[%s1777] sm:%s1775] %v1773
        %s1779 = scalar_lea.vmem [#allocation1], 440
        %v1780 = vld [vmem:[%s1779] sm:%s1341]
        %v1781 = vpack.c.bf16 0.0, %v1780
        %s1782 = sshll.u32 1, %s1342
        %s1783 = ssub.s32 %s1782, 1
        %s1784 = smul.addr 4, 55
        %s1785 = scalar_lea.vmem %s606, %s1784 [#allocation2]
        %1786 = vst [vmem:[%s1785] sm:%s1783] %v1781
        %s1787 = scalar_lea.vmem [#allocation1], 448
        %v1788 = vld [vmem:[%s1787] sm:%s1341]
        %v1789 = vpack.c.bf16 0.0, %v1788
        %s1790 = sshll.u32 1, %s1342
        %s1791 = ssub.s32 %s1790, 1
        %s1792 = smul.addr 4, 56
        %s1793 = scalar_lea.vmem %s606, %s1792 [#allocation2]
        %1794 = vst [vmem:[%s1793] sm:%s1791] %v1789
        %s1795 = scalar_lea.vmem [#allocation1], 456
        %v1796 = vld [vmem:[%s1795] sm:%s1341]
        %v1797 = vpack.c.bf16 0.0, %v1796
        %s1798 = sshll.u32 1, %s1342
        %s1799 = ssub.s32 %s1798, 1
        %s1800 = smul.addr 4, 57
        %s1801 = scalar_lea.vmem %s606, %s1800 [#allocation2]
        %1802 = vst [vmem:[%s1801] sm:%s1799] %v1797
        %s1803 = scalar_lea.vmem [#allocation1], 464
        %v1804 = vld [vmem:[%s1803] sm:%s1341]
        %v1805 = vpack.c.bf16 0.0, %v1804
        %s1806 = sshll.u32 1, %s1342
        %s1807 = ssub.s32 %s1806, 1
        %s1808 = smul.addr 4, 58
        %s1809 = scalar_lea.vmem %s606, %s1808 [#allocation2]
        %1810 = vst [vmem:[%s1809] sm:%s1807] %v1805
        %s1811 = scalar_lea.vmem [#allocation1], 472
        %v1812 = vld [vmem:[%s1811] sm:%s1341]
        %v1813 = vpack.c.bf16 0.0, %v1812
        %s1814 = sshll.u32 1, %s1342
        %s1815 = ssub.s32 %s1814, 1
        %s1816 = smul.addr 4, 59
        %s1817 = scalar_lea.vmem %s606, %s1816 [#allocation2]
        %1818 = vst [vmem:[%s1817] sm:%s1815] %v1813
        %s1819 = scalar_lea.vmem [#allocation1], 480
        %v1820 = vld [vmem:[%s1819] sm:%s1341]
        %v1821 = vpack.c.bf16 0.0, %v1820
        %s1822 = sshll.u32 1, %s1342
        %s1823 = ssub.s32 %s1822, 1
        %s1824 = smul.addr 4, 60
        %s1825 = scalar_lea.vmem %s606, %s1824 [#allocation2]
        %1826 = vst [vmem:[%s1825] sm:%s1823] %v1821
        %s1827 = scalar_lea.vmem [#allocation1], 488
        %v1828 = vld [vmem:[%s1827] sm:%s1341]
        %v1829 = vpack.c.bf16 0.0, %v1828
        %s1830 = sshll.u32 1, %s1342
        %s1831 = ssub.s32 %s1830, 1
        %s1832 = smul.addr 4, 61
        %s1833 = scalar_lea.vmem %s606, %s1832 [#allocation2]
        %1834 = vst [vmem:[%s1833] sm:%s1831] %v1829
        %s1835 = scalar_lea.vmem [#allocation1], 496
        %v1836 = vld [vmem:[%s1835] sm:%s1341]
        %v1837 = vpack.c.bf16 0.0, %v1836
        %s1838 = sshll.u32 1, %s1342
        %s1839 = ssub.s32 %s1838, 1
        %s1840 = smul.addr 4, 62
        %s1841 = scalar_lea.vmem %s606, %s1840 [#allocation2]
        %1842 = vst [vmem:[%s1841] sm:%s1839] %v1837
        %s1843 = scalar_lea.vmem [#allocation1], 504
        %v1844 = vld [vmem:[%s1843] sm:%s1341]
        %v1845 = vpack.c.bf16 0.0, %v1844
        %s1846 = sshll.u32 1, %s1342
        %s1847 = ssub.s32 %s1846, 1
        %s1848 = smul.addr 4, 63
        %s1849 = scalar_lea.vmem %s606, %s1848 [#allocation2]
        %1850 = vst [vmem:[%s1849] sm:%s1847] %v1845
        %s1851 = scalar_lea.vmem [#allocation1], 512
        %v1852 = vld [vmem:[%s1851] sm:%s1341]
        %v1853 = vpack.c.bf16 0.0, %v1852
        %s1854 = sshll.u32 1, %s1342
        %s1855 = ssub.s32 %s1854, 1
        %s1856 = smul.addr 4, 64
        %s1857 = scalar_lea.vmem %s606, %s1856 [#allocation2]
        %1858 = vst [vmem:[%s1857] sm:%s1855] %v1853
        %s1859 = scalar_lea.vmem [#allocation1], 520
        %v1860 = vld [vmem:[%s1859] sm:%s1341]
        %v1861 = vpack.c.bf16 0.0, %v1860
        %s1862 = sshll.u32 1, %s1342
        %s1863 = ssub.s32 %s1862, 1
        %s1864 = smul.addr 4, 65
        %s1865 = scalar_lea.vmem %s606, %s1864 [#allocation2]
        %1866 = vst [vmem:[%s1865] sm:%s1863] %v1861
        %s1867 = scalar_lea.vmem [#allocation1], 528
        %v1868 = vld [vmem:[%s1867] sm:%s1341]
        %v1869 = vpack.c.bf16 0.0, %v1868
        %s1870 = sshll.u32 1, %s1342
        %s1871 = ssub.s32 %s1870, 1
        %s1872 = smul.addr 4, 66
        %s1873 = scalar_lea.vmem %s606, %s1872 [#allocation2]
        %1874 = vst [vmem:[%s1873] sm:%s1871] %v1869
        %s1875 = scalar_lea.vmem [#allocation1], 536
        %v1876 = vld [vmem:[%s1875] sm:%s1341]
        %v1877 = vpack.c.bf16 0.0, %v1876
        %s1878 = sshll.u32 1, %s1342
        %s1879 = ssub.s32 %s1878, 1
        %s1880 = smul.addr 4, 67
        %s1881 = scalar_lea.vmem %s606, %s1880 [#allocation2]
        %1882 = vst [vmem:[%s1881] sm:%s1879] %v1877
        %s1883 = scalar_lea.vmem [#allocation1], 544
        %v1884 = vld [vmem:[%s1883] sm:%s1341]
        %v1885 = vpack.c.bf16 0.0, %v1884
        %s1886 = sshll.u32 1, %s1342
        %s1887 = ssub.s32 %s1886, 1
        %s1888 = smul.addr 4, 68
        %s1889 = scalar_lea.vmem %s606, %s1888 [#allocation2]
        %1890 = vst [vmem:[%s1889] sm:%s1887] %v1885
        %s1891 = scalar_lea.vmem [#allocation1], 552
        %v1892 = vld [vmem:[%s1891] sm:%s1341]
        %v1893 = vpack.c.bf16 0.0, %v1892
        %s1894 = sshll.u32 1, %s1342
        %s1895 = ssub.s32 %s1894, 1
        %s1896 = smul.addr 4, 69
        %s1897 = scalar_lea.vmem %s606, %s1896 [#allocation2]
        %1898 = vst [vmem:[%s1897] sm:%s1895] %v1893
        %s1899 = scalar_lea.vmem [#allocation1], 560
        %v1900 = vld [vmem:[%s1899] sm:%s1341]
        %v1901 = vpack.c.bf16 0.0, %v1900
        %s1902 = sshll.u32 1, %s1342
        %s1903 = ssub.s32 %s1902, 1
        %s1904 = smul.addr 4, 70
        %s1905 = scalar_lea.vmem %s606, %s1904 [#allocation2]
        %1906 = vst [vmem:[%s1905] sm:%s1903] %v1901
        %s1907 = scalar_lea.vmem [#allocation1], 568
        %v1908 = vld [vmem:[%s1907] sm:%s1341]
        %v1909 = vpack.c.bf16 0.0, %v1908
        %s1910 = sshll.u32 1, %s1342
        %s1911 = ssub.s32 %s1910, 1
        %s1912 = smul.addr 4, 71
        %s1913 = scalar_lea.vmem %s606, %s1912 [#allocation2]
        %1914 = vst [vmem:[%s1913] sm:%s1911] %v1909
        %s1915 = scalar_lea.vmem [#allocation1], 576
        %v1916 = vld [vmem:[%s1915] sm:%s1341]
        %v1917 = vpack.c.bf16 0.0, %v1916
        %s1918 = sshll.u32 1, %s1342
        %s1919 = ssub.s32 %s1918, 1
        %s1920 = smul.addr 4, 72
        %s1921 = scalar_lea.vmem %s606, %s1920 [#allocation2]
        %1922 = vst [vmem:[%s1921] sm:%s1919] %v1917
        %s1923 = scalar_lea.vmem [#allocation1], 584
        %v1924 = vld [vmem:[%s1923] sm:%s1341]
        %v1925 = vpack.c.bf16 0.0, %v1924
        %s1926 = sshll.u32 1, %s1342
        %s1927 = ssub.s32 %s1926, 1
        %s1928 = smul.addr 4, 73
        %s1929 = scalar_lea.vmem %s606, %s1928 [#allocation2]
        %1930 = vst [vmem:[%s1929] sm:%s1927] %v1925
        %s1931 = scalar_lea.vmem [#allocation1], 592
        %v1932 = vld [vmem:[%s1931] sm:%s1341]
        %v1933 = vpack.c.bf16 0.0, %v1932
        %s1934 = sshll.u32 1, %s1342
        %s1935 = ssub.s32 %s1934, 1
        %s1936 = smul.addr 4, 74
        %s1937 = scalar_lea.vmem %s606, %s1936 [#allocation2]
        %1938 = vst [vmem:[%s1937] sm:%s1935] %v1933
        %s1939 = scalar_lea.vmem [#allocation1], 600
        %v1940 = vld [vmem:[%s1939] sm:%s1341]
        %v1941 = vpack.c.bf16 0.0, %v1940
        %s1942 = sshll.u32 1, %s1342
        %s1943 = ssub.s32 %s1942, 1
        %s1944 = smul.addr 4, 75
        %s1945 = scalar_lea.vmem %s606, %s1944 [#allocation2]
        %1946 = vst [vmem:[%s1945] sm:%s1943] %v1941
        %s1947 = scalar_lea.vmem [#allocation1], 608
        %v1948 = vld [vmem:[%s1947] sm:%s1341]
        %v1949 = vpack.c.bf16 0.0, %v1948
        %s1950 = sshll.u32 1, %s1342
        %s1951 = ssub.s32 %s1950, 1
        %s1952 = smul.addr 4, 76
        %s1953 = scalar_lea.vmem %s606, %s1952 [#allocation2]
        %1954 = vst [vmem:[%s1953] sm:%s1951] %v1949
        %s1955 = scalar_lea.vmem [#allocation1], 616
        %v1956 = vld [vmem:[%s1955] sm:%s1341]
        %v1957 = vpack.c.bf16 0.0, %v1956
        %s1958 = sshll.u32 1, %s1342
        %s1959 = ssub.s32 %s1958, 1
        %s1960 = smul.addr 4, 77
        %s1961 = scalar_lea.vmem %s606, %s1960 [#allocation2]
        %1962 = vst [vmem:[%s1961] sm:%s1959] %v1957
        %s1963 = scalar_lea.vmem [#allocation1], 624
        %v1964 = vld [vmem:[%s1963] sm:%s1341]
        %v1965 = vpack.c.bf16 0.0, %v1964
        %s1966 = sshll.u32 1, %s1342
        %s1967 = ssub.s32 %s1966, 1
        %s1968 = smul.addr 4, 78
        %s1969 = scalar_lea.vmem %s606, %s1968 [#allocation2]
        %1970 = vst [vmem:[%s1969] sm:%s1967] %v1965
        %s1971 = scalar_lea.vmem [#allocation1], 632
        %v1972 = vld [vmem:[%s1971] sm:%s1341]
        %v1973 = vpack.c.bf16 0.0, %v1972
        %s1974 = sshll.u32 1, %s1342
        %s1975 = ssub.s32 %s1974, 1
        %s1976 = smul.addr 4, 79
        %s1977 = scalar_lea.vmem %s606, %s1976 [#allocation2]
        %1978 = vst [vmem:[%s1977] sm:%s1975] %v1973
        %s1979 = scalar_lea.vmem [#allocation1], 640
        %v1980 = vld [vmem:[%s1979] sm:%s1341]
        %v1981 = vpack.c.bf16 0.0, %v1980
        %s1982 = sshll.u32 1, %s1342
        %s1983 = ssub.s32 %s1982, 1
        %s1984 = smul.addr 4, 80
        %s1985 = scalar_lea.vmem %s606, %s1984 [#allocation2]
        %1986 = vst [vmem:[%s1985] sm:%s1983] %v1981
        %s1987 = scalar_lea.vmem [#allocation1], 648
        %v1988 = vld [vmem:[%s1987] sm:%s1341]
        %v1989 = vpack.c.bf16 0.0, %v1988
        %s1990 = sshll.u32 1, %s1342
        %s1991 = ssub.s32 %s1990, 1
        %s1992 = smul.addr 4, 81
        %s1993 = scalar_lea.vmem %s606, %s1992 [#allocation2]
        %1994 = vst [vmem:[%s1993] sm:%s1991] %v1989
        %s1995 = scalar_lea.vmem [#allocation1], 656
        %v1996 = vld [vmem:[%s1995] sm:%s1341]
        %v1997 = vpack.c.bf16 0.0, %v1996
        %s1998 = sshll.u32 1, %s1342
        %s1999 = ssub.s32 %s1998, 1
        %s2000 = smul.addr 4, 82
        %s2001 = scalar_lea.vmem %s606, %s2000 [#allocation2]
        %2002 = vst [vmem:[%s2001] sm:%s1999] %v1997
        %s2003 = scalar_lea.vmem [#allocation1], 664
        %v2004 = vld [vmem:[%s2003] sm:%s1341]
        %v2005 = vpack.c.bf16 0.0, %v2004
        %s2006 = sshll.u32 1, %s1342
        %s2007 = ssub.s32 %s2006, 1
        %s2008 = smul.addr 4, 83
        %s2009 = scalar_lea.vmem %s606, %s2008 [#allocation2]
        %2010 = vst [vmem:[%s2009] sm:%s2007] %v2005
        %s2011 = scalar_lea.vmem [#allocation1], 672
        %v2012 = vld [vmem:[%s2011] sm:%s1341]
        %v2013 = vpack.c.bf16 0.0, %v2012
        %s2014 = sshll.u32 1, %s1342
        %s2015 = ssub.s32 %s2014, 1
        %s2016 = smul.addr 4, 84
        %s2017 = scalar_lea.vmem %s606, %s2016 [#allocation2]
        %2018 = vst [vmem:[%s2017] sm:%s2015] %v2013
        %s2019 = scalar_lea.vmem [#allocation1], 680
        %v2020 = vld [vmem:[%s2019] sm:%s1341]
        %v2021 = vpack.c.bf16 0.0, %v2020
        %s2022 = sshll.u32 1, %s1342
        %s2023 = ssub.s32 %s2022, 1
        %s2024 = smul.addr 4, 85
        %s2025 = scalar_lea.vmem %s606, %s2024 [#allocation2]
        %2026 = vst [vmem:[%s2025] sm:%s2023] %v2021
        %s2027 = scalar_lea.vmem [#allocation1], 688
        %v2028 = vld [vmem:[%s2027] sm:%s1341]
        %v2029 = vpack.c.bf16 0.0, %v2028
        %s2030 = sshll.u32 1, %s1342
        %s2031 = ssub.s32 %s2030, 1
        %s2032 = smul.addr 4, 86
        %s2033 = scalar_lea.vmem %s606, %s2032 [#allocation2]
        %2034 = vst [vmem:[%s2033] sm:%s2031] %v2029
        %s2035 = scalar_lea.vmem [#allocation1], 696
        %v2036 = vld [vmem:[%s2035] sm:%s1341]
        %v2037 = vpack.c.bf16 0.0, %v2036
        %s2038 = sshll.u32 1, %s1342
        %s2039 = ssub.s32 %s2038, 1
        %s2040 = smul.addr 4, 87
        %s2041 = scalar_lea.vmem %s606, %s2040 [#allocation2]
        %2042 = vst [vmem:[%s2041] sm:%s2039] %v2037
        %s2043 = scalar_lea.vmem [#allocation1], 704
        %v2044 = vld [vmem:[%s2043] sm:%s1341]
        %v2045 = vpack.c.bf16 0.0, %v2044
        %s2046 = sshll.u32 1, %s1342
        %s2047 = ssub.s32 %s2046, 1
        %s2048 = smul.addr 4, 88
        %s2049 = scalar_lea.vmem %s606, %s2048 [#allocation2]
        %2050 = vst [vmem:[%s2049] sm:%s2047] %v2045
        %s2051 = scalar_lea.vmem [#allocation1], 712
        %v2052 = vld [vmem:[%s2051] sm:%s1341]
        %v2053 = vpack.c.bf16 0.0, %v2052
        %s2054 = sshll.u32 1, %s1342
        %s2055 = ssub.s32 %s2054, 1
        %s2056 = smul.addr 4, 89
        %s2057 = scalar_lea.vmem %s606, %s2056 [#allocation2]
        %2058 = vst [vmem:[%s2057] sm:%s2055] %v2053
        %s2059 = scalar_lea.vmem [#allocation1], 720
        %v2060 = vld [vmem:[%s2059] sm:%s1341]
        %v2061 = vpack.c.bf16 0.0, %v2060
        %s2062 = sshll.u32 1, %s1342
        %s2063 = ssub.s32 %s2062, 1
        %s2064 = smul.addr 4, 90
        %s2065 = scalar_lea.vmem %s606, %s2064 [#allocation2]
        %2066 = vst [vmem:[%s2065] sm:%s2063] %v2061
        %s2067 = scalar_lea.vmem [#allocation1], 728
        %v2068 = vld [vmem:[%s2067] sm:%s1341]
        %v2069 = vpack.c.bf16 0.0, %v2068
        %s2070 = sshll.u32 1, %s1342
        %s2071 = ssub.s32 %s2070, 1
        %s2072 = smul.addr 4, 91
        %s2073 = scalar_lea.vmem %s606, %s2072 [#allocation2]
        %2074 = vst [vmem:[%s2073] sm:%s2071] %v2069
        %s2075 = scalar_lea.vmem [#allocation1], 736
        %v2076 = vld [vmem:[%s2075] sm:%s1341]
        %v2077 = vpack.c.bf16 0.0, %v2076
        %s2078 = sshll.u32 1, %s1342
        %s2079 = ssub.s32 %s2078, 1
        %s2080 = smul.addr 4, 92
        %s2081 = scalar_lea.vmem %s606, %s2080 [#allocation2]
        %2082 = vst [vmem:[%s2081] sm:%s2079] %v2077
        %s2083 = scalar_lea.vmem [#allocation1], 744
        %v2084 = vld [vmem:[%s2083] sm:%s1341]
        %v2085 = vpack.c.bf16 0.0, %v2084
        %s2086 = sshll.u32 1, %s1342
        %s2087 = ssub.s32 %s2086, 1
        %s2088 = smul.addr 4, 93
        %s2089 = scalar_lea.vmem %s606, %s2088 [#allocation2]
        %2090 = vst [vmem:[%s2089] sm:%s2087] %v2085
        %s2091 = scalar_lea.vmem [#allocation1], 752
        %v2092 = vld [vmem:[%s2091] sm:%s1341]
        %v2093 = vpack.c.bf16 0.0, %v2092
        %s2094 = sshll.u32 1, %s1342
        %s2095 = ssub.s32 %s2094, 1
        %s2096 = smul.addr 4, 94
        %s2097 = scalar_lea.vmem %s606, %s2096 [#allocation2]
        %2098 = vst [vmem:[%s2097] sm:%s2095] %v2093
        %s2099 = scalar_lea.vmem [#allocation1], 760
        %v2100 = vld [vmem:[%s2099] sm:%s1341]
        %v2101 = vpack.c.bf16 0.0, %v2100
        %s2102 = sshll.u32 1, %s1342
        %s2103 = ssub.s32 %s2102, 1
        %s2104 = smul.addr 4, 95
        %s2105 = scalar_lea.vmem %s606, %s2104 [#allocation2]
        %2106 = vst [vmem:[%s2105] sm:%s2103] %v2101
        %s2107 = scalar_lea.vmem [#allocation1], 768
        %v2108 = vld [vmem:[%s2107] sm:%s1341]
        %v2109 = vpack.c.bf16 0.0, %v2108
        %s2110 = sshll.u32 1, %s1342
        %s2111 = ssub.s32 %s2110, 1
        %s2112 = smul.addr 4, 96
        %s2113 = scalar_lea.vmem %s606, %s2112 [#allocation2]
        %2114 = vst [vmem:[%s2113] sm:%s2111] %v2109
        %s2115 = scalar_lea.vmem [#allocation1], 776
        %v2116 = vld [vmem:[%s2115] sm:%s1341]
        %v2117 = vpack.c.bf16 0.0, %v2116
        %s2118 = sshll.u32 1, %s1342
        %s2119 = ssub.s32 %s2118, 1
        %s2120 = smul.addr 4, 97
        %s2121 = scalar_lea.vmem %s606, %s2120 [#allocation2]
        %2122 = vst [vmem:[%s2121] sm:%s2119] %v2117
        %s2123 = scalar_lea.vmem [#allocation1], 784
        %v2124 = vld [vmem:[%s2123] sm:%s1341]
        %v2125 = vpack.c.bf16 0.0, %v2124
        %s2126 = sshll.u32 1, %s1342
        %s2127 = ssub.s32 %s2126, 1
        %s2128 = smul.addr 4, 98
        %s2129 = scalar_lea.vmem %s606, %s2128 [#allocation2]
        %2130 = vst [vmem:[%s2129] sm:%s2127] %v2125
        %s2131 = scalar_lea.vmem [#allocation1], 792
        %v2132 = vld [vmem:[%s2131] sm:%s1341]
        %v2133 = vpack.c.bf16 0.0, %v2132
        %s2134 = sshll.u32 1, %s1342
        %s2135 = ssub.s32 %s2134, 1
        %s2136 = smul.addr 4, 99
        %s2137 = scalar_lea.vmem %s606, %s2136 [#allocation2]
        %2138 = vst [vmem:[%s2137] sm:%s2135] %v2133
        %s2139 = scalar_lea.vmem [#allocation1], 800
        %v2140 = vld [vmem:[%s2139] sm:%s1341]
        %v2141 = vpack.c.bf16 0.0, %v2140
        %s2142 = sshll.u32 1, %s1342
        %s2143 = ssub.s32 %s2142, 1
        %s2144 = smul.addr 4, 100
        %s2145 = scalar_lea.vmem %s606, %s2144 [#allocation2]
        %2146 = vst [vmem:[%s2145] sm:%s2143] %v2141
        %s2147 = scalar_lea.vmem [#allocation1], 808
        %v2148 = vld [vmem:[%s2147] sm:%s1341]
        %v2149 = vpack.c.bf16 0.0, %v2148
        %s2150 = sshll.u32 1, %s1342
        %s2151 = ssub.s32 %s2150, 1
        %s2152 = smul.addr 4, 101
        %s2153 = scalar_lea.vmem %s606, %s2152 [#allocation2]
        %2154 = vst [vmem:[%s2153] sm:%s2151] %v2149
        %s2155 = scalar_lea.vmem [#allocation1], 816
        %v2156 = vld [vmem:[%s2155] sm:%s1341]
        %v2157 = vpack.c.bf16 0.0, %v2156
        %s2158 = sshll.u32 1, %s1342
        %s2159 = ssub.s32 %s2158, 1
        %s2160 = smul.addr 4, 102
        %s2161 = scalar_lea.vmem %s606, %s2160 [#allocation2]
        %2162 = vst [vmem:[%s2161] sm:%s2159] %v2157
        %s2163 = scalar_lea.vmem [#allocation1], 824
        %v2164 = vld [vmem:[%s2163] sm:%s1341]
        %v2165 = vpack.c.bf16 0.0, %v2164
        %s2166 = sshll.u32 1, %s1342
        %s2167 = ssub.s32 %s2166, 1
        %s2168 = smul.addr 4, 103
        %s2169 = scalar_lea.vmem %s606, %s2168 [#allocation2]
        %2170 = vst [vmem:[%s2169] sm:%s2167] %v2165
        %s2171 = scalar_lea.vmem [#allocation1], 832
        %v2172 = vld [vmem:[%s2171] sm:%s1341]
        %v2173 = vpack.c.bf16 0.0, %v2172
        %s2174 = sshll.u32 1, %s1342
        %s2175 = ssub.s32 %s2174, 1
        %s2176 = smul.addr 4, 104
        %s2177 = scalar_lea.vmem %s606, %s2176 [#allocation2]
        %2178 = vst [vmem:[%s2177] sm:%s2175] %v2173
        %s2179 = scalar_lea.vmem [#allocation1], 840
        %v2180 = vld [vmem:[%s2179] sm:%s1341]
        %v2181 = vpack.c.bf16 0.0, %v2180
        %s2182 = sshll.u32 1, %s1342
        %s2183 = ssub.s32 %s2182, 1
        %s2184 = smul.addr 4, 105
        %s2185 = scalar_lea.vmem %s606, %s2184 [#allocation2]
        %2186 = vst [vmem:[%s2185] sm:%s2183] %v2181
        %s2187 = scalar_lea.vmem [#allocation1], 848
        %v2188 = vld [vmem:[%s2187] sm:%s1341]
        %v2189 = vpack.c.bf16 0.0, %v2188
        %s2190 = sshll.u32 1, %s1342
        %s2191 = ssub.s32 %s2190, 1
        %s2192 = smul.addr 4, 106
        %s2193 = scalar_lea.vmem %s606, %s2192 [#allocation2]
        %2194 = vst [vmem:[%s2193] sm:%s2191] %v2189
        %s2195 = scalar_lea.vmem [#allocation1], 856
        %v2196 = vld [vmem:[%s2195] sm:%s1341]
        %v2197 = vpack.c.bf16 0.0, %v2196
        %s2198 = sshll.u32 1, %s1342
        %s2199 = ssub.s32 %s2198, 1
        %s2200 = smul.addr 4, 107
        %s2201 = scalar_lea.vmem %s606, %s2200 [#allocation2]
        %2202 = vst [vmem:[%s2201] sm:%s2199] %v2197
        %s2203 = scalar_lea.vmem [#allocation1], 864
        %v2204 = vld [vmem:[%s2203] sm:%s1341]
        %v2205 = vpack.c.bf16 0.0, %v2204
        %s2206 = sshll.u32 1, %s1342
        %s2207 = ssub.s32 %s2206, 1
        %s2208 = smul.addr 4, 108
        %s2209 = scalar_lea.vmem %s606, %s2208 [#allocation2]
        %2210 = vst [vmem:[%s2209] sm:%s2207] %v2205
        %s2211 = scalar_lea.vmem [#allocation1], 872
        %v2212 = vld [vmem:[%s2211] sm:%s1341]
        %v2213 = vpack.c.bf16 0.0, %v2212
        %s2214 = sshll.u32 1, %s1342
        %s2215 = ssub.s32 %s2214, 1
        %s2216 = smul.addr 4, 109
        %s2217 = scalar_lea.vmem %s606, %s2216 [#allocation2]
        %2218 = vst [vmem:[%s2217] sm:%s2215] %v2213
        %s2219 = scalar_lea.vmem [#allocation1], 880
        %v2220 = vld [vmem:[%s2219] sm:%s1341]
        %v2221 = vpack.c.bf16 0.0, %v2220
        %s2222 = sshll.u32 1, %s1342
        %s2223 = ssub.s32 %s2222, 1
        %s2224 = smul.addr 4, 110
        %s2225 = scalar_lea.vmem %s606, %s2224 [#allocation2]
        %2226 = vst [vmem:[%s2225] sm:%s2223] %v2221
        %s2227 = scalar_lea.vmem [#allocation1], 888
        %v2228 = vld [vmem:[%s2227] sm:%s1341]
        %v2229 = vpack.c.bf16 0.0, %v2228
        %s2230 = sshll.u32 1, %s1342
        %s2231 = ssub.s32 %s2230, 1
        %s2232 = smul.addr 4, 111
        %s2233 = scalar_lea.vmem %s606, %s2232 [#allocation2]
        %2234 = vst [vmem:[%s2233] sm:%s2231] %v2229
        %s2235 = scalar_lea.vmem [#allocation1], 896
        %v2236 = vld [vmem:[%s2235] sm:%s1341]
        %v2237 = vpack.c.bf16 0.0, %v2236
        %s2238 = sshll.u32 1, %s1342
        %s2239 = ssub.s32 %s2238, 1
        %s2240 = smul.addr 4, 112
        %s2241 = scalar_lea.vmem %s606, %s2240 [#allocation2]
        %2242 = vst [vmem:[%s2241] sm:%s2239] %v2237
        %s2243 = scalar_lea.vmem [#allocation1], 904
        %v2244 = vld [vmem:[%s2243] sm:%s1341]
        %v2245 = vpack.c.bf16 0.0, %v2244
        %s2246 = sshll.u32 1, %s1342
        %s2247 = ssub.s32 %s2246, 1
        %s2248 = smul.addr 4, 113
        %s2249 = scalar_lea.vmem %s606, %s2248 [#allocation2]
        %2250 = vst [vmem:[%s2249] sm:%s2247] %v2245
        %s2251 = scalar_lea.vmem [#allocation1], 912
        %v2252 = vld [vmem:[%s2251] sm:%s1341]
        %v2253 = vpack.c.bf16 0.0, %v2252
        %s2254 = sshll.u32 1, %s1342
        %s2255 = ssub.s32 %s2254, 1
        %s2256 = smul.addr 4, 114
        %s2257 = scalar_lea.vmem %s606, %s2256 [#allocation2]
        %2258 = vst [vmem:[%s2257] sm:%s2255] %v2253
        %s2259 = scalar_lea.vmem [#allocation1], 920
        %v2260 = vld [vmem:[%s2259] sm:%s1341]
        %v2261 = vpack.c.bf16 0.0, %v2260
        %s2262 = sshll.u32 1, %s1342
        %s2263 = ssub.s32 %s2262, 1
        %s2264 = smul.addr 4, 115
        %s2265 = scalar_lea.vmem %s606, %s2264 [#allocation2]
        %2266 = vst [vmem:[%s2265] sm:%s2263] %v2261
        %s2267 = scalar_lea.vmem [#allocation1], 928
        %v2268 = vld [vmem:[%s2267] sm:%s1341]
        %v2269 = vpack.c.bf16 0.0, %v2268
        %s2270 = sshll.u32 1, %s1342
        %s2271 = ssub.s32 %s2270, 1
        %s2272 = smul.addr 4, 116
        %s2273 = scalar_lea.vmem %s606, %s2272 [#allocation2]
        %2274 = vst [vmem:[%s2273] sm:%s2271] %v2269
        %s2275 = scalar_lea.vmem [#allocation1], 936
        %v2276 = vld [vmem:[%s2275] sm:%s1341]
        %v2277 = vpack.c.bf16 0.0, %v2276
        %s2278 = sshll.u32 1, %s1342
        %s2279 = ssub.s32 %s2278, 1
        %s2280 = smul.addr 4, 117
        %s2281 = scalar_lea.vmem %s606, %s2280 [#allocation2]
        %2282 = vst [vmem:[%s2281] sm:%s2279] %v2277
        %s2283 = scalar_lea.vmem [#allocation1], 944
        %v2284 = vld [vmem:[%s2283] sm:%s1341]
        %v2285 = vpack.c.bf16 0.0, %v2284
        %s2286 = sshll.u32 1, %s1342
        %s2287 = ssub.s32 %s2286, 1
        %s2288 = smul.addr 4, 118
        %s2289 = scalar_lea.vmem %s606, %s2288 [#allocation2]
        %2290 = vst [vmem:[%s2289] sm:%s2287] %v2285
        %s2291 = scalar_lea.vmem [#allocation1], 952
        %v2292 = vld [vmem:[%s2291] sm:%s1341]
        %v2293 = vpack.c.bf16 0.0, %v2292
        %s2294 = sshll.u32 1, %s1342
        %s2295 = ssub.s32 %s2294, 1
        %s2296 = smul.addr 4, 119
        %s2297 = scalar_lea.vmem %s606, %s2296 [#allocation2]
        %2298 = vst [vmem:[%s2297] sm:%s2295] %v2293
        %s2299 = scalar_lea.vmem [#allocation1], 960
        %v2300 = vld [vmem:[%s2299] sm:%s1341]
        %v2301 = vpack.c.bf16 0.0, %v2300
        %s2302 = sshll.u32 1, %s1342
        %s2303 = ssub.s32 %s2302, 1
        %s2304 = smul.addr 4, 120
        %s2305 = scalar_lea.vmem %s606, %s2304 [#allocation2]
        %2306 = vst [vmem:[%s2305] sm:%s2303] %v2301
        %s2307 = sand.u32 %s11, 1
        %s2308 = sand.u32 %s11, 1
        %s2309 = smul.addr %s2308, 484
        %s2310 = scalar_lea.vmem [#allocation2], %s2309
        %s2311 = smul.u32 11, %s18
        %s2312 = smul.u32 11, %s19
        %s2313 = sadd.s32 %s22, %s21
        %s2314 = sadd.s32 %s2313, %s20
        %s2315 = smul.addr %s2312, 2
        %s2316 = sadd.s32 %s2314, %s2315
        %s2317 = smul.addr %s2311, 22
        %s2318 = sadd.s32 %s2316, %s2317
        %s2319 = smul.addr %s2318, 4
        %s2320 = scalar_lea.vmem %s1, %s2319
        // Predicated region
        $region55: #{reverse} parent=53 // pred_check
          _
        $region56: #{reverse} parent=53 // pred_check_branch
          %2322 = sbr.rel (0) target = $region58
        $region57: #{reverse} parent=53 // pred_region
          // Predicated region
          $region59: #{reverse} parent=57 // pred_check
            _
          $region60: #{reverse} parent=57 // pred_check_branch
            %2324 = sbr.rel target = $region62
          $region61: #{reverse} parent=57 // pred_region
            // Predicated region
            $region74: #{reverse} parent=61 // pred_check
              _
            $region75: #{reverse} parent=61 // pred_check_branch
              %2580 = sbr.rel (0) target = $region77
            $region76: #{reverse} parent=61 // pred_region
              loop: start=0, step=1, limit=1
              $region78: #{reverse} parent=76 // loop_pre_header
                _
              $region79: #{reverse} parent=76 // loop_header
                %s2582 = sphi 0, %s2586
                %p2583 = scmp.ge.s32.totalorder %s2582, 1
                %s2587 = sphi %s2310, %s2310
                %s2588 = sphi %s2320, %s2320
              $region80: #{reverse} parent=76 // loop_header_branch
                %2585 = sbr.rel (%p2583) target = $region84
              $region81: #{reverse} parent=76 // loop_body
                _
              $region82: #{reverse} parent=76 // loop_footer
                %s2586 = sadd.s32 1, %s2582
              $region83: #{reverse} parent=76 // loop_footer_branch
                %2581 = sbr.rel target = $region79
              $region84: #{reverse} parent=76 // loop_exit
                _
              %s2590 = ssub.s32 16, 1
              loop: start=0, step=1, limit=1
              $region85: #{reverse} parent=76 // loop_pre_header
                _
              $region86: #{reverse} parent=76 // loop_header
                %s2592 = sphi 0, %s2596
                %p2593 = scmp.ge.s32.totalorder %s2592, 1
                %s2597 = sphi %s2310, %s2310
                %s2598 = sphi %s2320, %s2320
              $region87: #{reverse} parent=76 // loop_header_branch
                %2595 = sbr.rel (%p2593) target = $region91
              $region88: #{reverse} parent=76 // loop_body
                %v2599 = vld [vmem:[%s2597] sm:%s2590]
                %2600 = vst [vmem:[%s2598] sm:%s2590] %v2599
                %v2601 = vld [vmem:[%s2597 + $0x4] sm:%s2590]
                %2602 = vst [vmem:[%s2598 + $0x8] sm:%s2590] %v2601
                %v2603 = vld [vmem:[%s2597 + $0x8] sm:%s2590]
                %2604 = vst [vmem:[%s2598 + $0x10] sm:%s2590] %v2603
                %v2605 = vld [vmem:[%s2597 + $0xc] sm:%s2590]
                %2606 = vst [vmem:[%s2598 + $0x18] sm:%s2590] %v2605
                %v2607 = vld [vmem:[%s2597 + $0x10] sm:%s2590]
                %2608 = vst [vmem:[%s2598 + $0x20] sm:%s2590] %v2607
                %v2609 = vld [vmem:[%s2597 + $0x14] sm:%s2590]
                %2610 = vst [vmem:[%s2598 + $0x28] sm:%s2590] %v2609
                %v2611 = vld [vmem:[%s2597 + $0x18] sm:%s2590]
                %2612 = vst [vmem:[%s2598 + $0x30] sm:%s2590] %v2611
                %v2613 = vld [vmem:[%s2597 + $0x1c] sm:%s2590]
                %2614 = vst [vmem:[%s2598 + $0x38] sm:%s2590] %v2613
                %v2615 = vld [vmem:[%s2597 + $0x20] sm:%s2590]
                %2616 = vst [vmem:[%s2598 + $0x40] sm:%s2590] %v2615
                %v2617 = vld [vmem:[%s2597 + $0x24] sm:%s2590]
                %2618 = vst [vmem:[%s2598 + $0x48] sm:%s2590] %v2617
                %v2619 = vld [vmem:[%s2597 + $0x28] sm:%s2590]
                %2620 = vst [vmem:[%s2598 + $0x50] sm:%s2590] %v2619
                %v2621 = vld [vmem:[%s2597 + $0x2c] sm:%s2590]
                %2622 = vst [vmem:[%s2598 + $0x58] sm:%s2590] %v2621
                %v2623 = vld [vmem:[%s2597 + $0x30] sm:%s2590]
                %2624 = vst [vmem:[%s2598 + $0x60] sm:%s2590] %v2623
                %v2625 = vld [vmem:[%s2597 + $0x34] sm:%s2590]
                %2626 = vst [vmem:[%s2598 + $0x68] sm:%s2590] %v2625
                %v2627 = vld [vmem:[%s2597 + $0x38] sm:%s2590]
                %2628 = vst [vmem:[%s2598 + $0x70] sm:%s2590] %v2627
                %v2629 = vld [vmem:[%s2597 + $0x3c] sm:%s2590]
                %2630 = vst [vmem:[%s2598 + $0x78] sm:%s2590] %v2629
                %v2631 = vld [vmem:[%s2597 + $0x40] sm:%s2590]
                %2632 = vst [vmem:[%s2598 + $0x80] sm:%s2590] %v2631
                %v2633 = vld [vmem:[%s2597 + $0x44] sm:%s2590]
                %2634 = vst [vmem:[%s2598 + $0x88] sm:%s2590] %v2633
                %v2635 = vld [vmem:[%s2597 + $0x48] sm:%s2590]
                %2636 = vst [vmem:[%s2598 + $0x90] sm:%s2590] %v2635
                %v2637 = vld [vmem:[%s2597 + $0x4c] sm:%s2590]
                %2638 = vst [vmem:[%s2598 + $0x98] sm:%s2590] %v2637
                %v2639 = vld [vmem:[%s2597 + $0x50] sm:%s2590]
                %2640 = vst [vmem:[%s2598 + $0xa0] sm:%s2590] %v2639
                %v2641 = vld [vmem:[%s2597 + $0x54] sm:%s2590]
                %2642 = vst [vmem:[%s2598 + $0xa8] sm:%s2590] %v2641
                %v2643 = vld [vmem:[%s2597 + $0x58] sm:%s2590]
                %2644 = vst [vmem:[%s2598 + $0xb0] sm:%s2590] %v2643
                %v2645 = vld [vmem:[%s2597 + $0x5c] sm:%s2590]
                %2646 = vst [vmem:[%s2598 + $0xb8] sm:%s2590] %v2645
                %v2647 = vld [vmem:[%s2597 + $0x60] sm:%s2590]
                %2648 = vst [vmem:[%s2598 + $0xc0] sm:%s2590] %v2647
                %v2649 = vld [vmem:[%s2597 + $0x64] sm:%s2590]
                %2650 = vst [vmem:[%s2598 + $0xc8] sm:%s2590] %v2649
                %v2651 = vld [vmem:[%s2597 + $0x68] sm:%s2590]
                %2652 = vst [vmem:[%s2598 + $0xd0] sm:%s2590] %v2651
                %v2653 = vld [vmem:[%s2597 + $0x6c] sm:%s2590]
                %2654 = vst [vmem:[%s2598 + $0xd8] sm:%s2590] %v2653
                %v2655 = vld [vmem:[%s2597 + $0x70] sm:%s2590]
                %2656 = vst [vmem:[%s2598 + $0xe0] sm:%s2590] %v2655
                %v2657 = vld [vmem:[%s2597 + $0x74] sm:%s2590]
                %2658 = vst [vmem:[%s2598 + $0xe8] sm:%s2590] %v2657
                %v2659 = vld [vmem:[%s2597 + $0x78] sm:%s2590]
                %2660 = vst [vmem:[%s2598 + $0xf0] sm:%s2590] %v2659
                %v2661 = vld [vmem:[%s2597 + $0x7c] sm:%s2590]
                %2662 = vst [vmem:[%s2598 + $0xf8] sm:%s2590] %v2661
                %v2663 = vld [vmem:[%s2597 + $0x80] sm:%s2590]
                %2664 = vst [vmem:[%s2598 + $0x100] sm:%s2590] %v2663
                %v2665 = vld [vmem:[%s2597 + $0x84] sm:%s2590]
                %2666 = vst [vmem:[%s2598 + $0x108] sm:%s2590] %v2665
                %v2667 = vld [vmem:[%s2597 + $0x88] sm:%s2590]
                %2668 = vst [vmem:[%s2598 + $0x110] sm:%s2590] %v2667
                %v2669 = vld [vmem:[%s2597 + $0x8c] sm:%s2590]
                %2670 = vst [vmem:[%s2598 + $0x118] sm:%s2590] %v2669
                %v2671 = vld [vmem:[%s2597 + $0x90] sm:%s2590]
                %2672 = vst [vmem:[%s2598 + $0x120] sm:%s2590] %v2671
                %v2673 = vld [vmem:[%s2597 + $0x94] sm:%s2590]
                %2674 = vst [vmem:[%s2598 + $0x128] sm:%s2590] %v2673
                %v2675 = vld [vmem:[%s2597 + $0x98] sm:%s2590]
                %2676 = vst [vmem:[%s2598 + $0x130] sm:%s2590] %v2675
                %v2677 = vld [vmem:[%s2597 + $0x9c] sm:%s2590]
                %2678 = vst [vmem:[%s2598 + $0x138] sm:%s2590] %v2677
                %v2679 = vld [vmem:[%s2597 + $0xa0] sm:%s2590]
                %2680 = vst [vmem:[%s2598 + $0x140] sm:%s2590] %v2679
                %v2681 = vld [vmem:[%s2597 + $0xa4] sm:%s2590]
                %2682 = vst [vmem:[%s2598 + $0x148] sm:%s2590] %v2681
                %v2683 = vld [vmem:[%s2597 + $0xa8] sm:%s2590]
                %2684 = vst [vmem:[%s2598 + $0x150] sm:%s2590] %v2683
                %v2685 = vld [vmem:[%s2597 + $0xac] sm:%s2590]
                %2686 = vst [vmem:[%s2598 + $0x158] sm:%s2590] %v2685
                %v2687 = vld [vmem:[%s2597 + $0xb0] sm:%s2590]
                %2688 = vst [vmem:[%s2598 + $0x160] sm:%s2590] %v2687
                %v2689 = vld [vmem:[%s2597 + $0xb4] sm:%s2590]
                %2690 = vst [vmem:[%s2598 + $0x168] sm:%s2590] %v2689
                %v2691 = vld [vmem:[%s2597 + $0xb8] sm:%s2590]
                %2692 = vst [vmem:[%s2598 + $0x170] sm:%s2590] %v2691
                %v2693 = vld [vmem:[%s2597 + $0xbc] sm:%s2590]
                %2694 = vst [vmem:[%s2598 + $0x178] sm:%s2590] %v2693
                %v2695 = vld [vmem:[%s2597 + $0xc0] sm:%s2590]
                %2696 = vst [vmem:[%s2598 + $0x180] sm:%s2590] %v2695
                %v2697 = vld [vmem:[%s2597 + $0xc4] sm:%s2590]
                %2698 = vst [vmem:[%s2598 + $0x188] sm:%s2590] %v2697
                %v2699 = vld [vmem:[%s2597 + $0xc8] sm:%s2590]
                %2700 = vst [vmem:[%s2598 + $0x190] sm:%s2590] %v2699
                %v2701 = vld [vmem:[%s2597 + $0xcc] sm:%s2590]
                %2702 = vst [vmem:[%s2598 + $0x198] sm:%s2590] %v2701
                %v2703 = vld [vmem:[%s2597 + $0xd0] sm:%s2590]
                %2704 = vst [vmem:[%s2598 + $0x1a0] sm:%s2590] %v2703
                %v2705 = vld [vmem:[%s2597 + $0xd4] sm:%s2590]
                %2706 = vst [vmem:[%s2598 + $0x1a8] sm:%s2590] %v2705
                %v2707 = vld [vmem:[%s2597 + $0xd8] sm:%s2590]
                %2708 = vst [vmem:[%s2598 + $0x1b0] sm:%s2590] %v2707
                %v2709 = vld [vmem:[%s2597 + $0xdc] sm:%s2590]
                %2710 = vst [vmem:[%s2598 + $0x1b8] sm:%s2590] %v2709
                %v2711 = vld [vmem:[%s2597 + $0xe0] sm:%s2590]
                %2712 = vst [vmem:[%s2598 + $0x1c0] sm:%s2590] %v2711
                %v2713 = vld [vmem:[%s2597 + $0xe4] sm:%s2590]
                %2714 = vst [vmem:[%s2598 + $0x1c8] sm:%s2590] %v2713
                %v2715 = vld [vmem:[%s2597 + $0xe8] sm:%s2590]
                %2716 = vst [vmem:[%s2598 + $0x1d0] sm:%s2590] %v2715
                %v2717 = vld [vmem:[%s2597 + $0xec] sm:%s2590]
                %2718 = vst [vmem:[%s2598 + $0x1d8] sm:%s2590] %v2717
                %v2719 = vld [vmem:[%s2597 + $0xf0] sm:%s2590]
                %2720 = vst [vmem:[%s2598 + $0x1e0] sm:%s2590] %v2719
                %v2721 = vld [vmem:[%s2597 + $0xf4] sm:%s2590]
                %2722 = vst [vmem:[%s2598 + $0x1e8] sm:%s2590] %v2721
                %v2723 = vld [vmem:[%s2597 + $0xf8] sm:%s2590]
                %2724 = vst [vmem:[%s2598 + $0x1f0] sm:%s2590] %v2723
                %v2725 = vld [vmem:[%s2597 + $0xfc] sm:%s2590]
                %2726 = vst [vmem:[%s2598 + $0x1f8] sm:%s2590] %v2725
                %v2727 = vld [vmem:[%s2597 + $0x100] sm:%s2590]
                %2728 = vst [vmem:[%s2598 + $0x200] sm:%s2590] %v2727
                %v2729 = vld [vmem:[%s2597 + $0x104] sm:%s2590]
                %2730 = vst [vmem:[%s2598 + $0x208] sm:%s2590] %v2729
                %v2731 = vld [vmem:[%s2597 + $0x108] sm:%s2590]
                %2732 = vst [vmem:[%s2598 + $0x210] sm:%s2590] %v2731
                %v2733 = vld [vmem:[%s2597 + $0x10c] sm:%s2590]
                %2734 = vst [vmem:[%s2598 + $0x218] sm:%s2590] %v2733
                %v2735 = vld [vmem:[%s2597 + $0x110] sm:%s2590]
                %2736 = vst [vmem:[%s2598 + $0x220] sm:%s2590] %v2735
                %v2737 = vld [vmem:[%s2597 + $0x114] sm:%s2590]
                %2738 = vst [vmem:[%s2598 + $0x228] sm:%s2590] %v2737
                %v2739 = vld [vmem:[%s2597 + $0x118] sm:%s2590]
                %2740 = vst [vmem:[%s2598 + $0x230] sm:%s2590] %v2739
                %v2741 = vld [vmem:[%s2597 + $0x11c] sm:%s2590]
                %2742 = vst [vmem:[%s2598 + $0x238] sm:%s2590] %v2741
                %v2743 = vld [vmem:[%s2597 + $0x120] sm:%s2590]
                %2744 = vst [vmem:[%s2598 + $0x240] sm:%s2590] %v2743
                %v2745 = vld [vmem:[%s2597 + $0x124] sm:%s2590]
                %2746 = vst [vmem:[%s2598 + $0x248] sm:%s2590] %v2745
                %v2747 = vld [vmem:[%s2597 + $0x128] sm:%s2590]
                %2748 = vst [vmem:[%s2598 + $0x250] sm:%s2590] %v2747
                %v2749 = vld [vmem:[%s2597 + $0x12c] sm:%s2590]
                %2750 = vst [vmem:[%s2598 + $0x258] sm:%s2590] %v2749
                %v2751 = vld [vmem:[%s2597 + $0x130] sm:%s2590]
                %2752 = vst [vmem:[%s2598 + $0x260] sm:%s2590] %v2751
                %v2753 = vld [vmem:[%s2597 + $0x134] sm:%s2590]
                %2754 = vst [vmem:[%s2598 + $0x268] sm:%s2590] %v2753
                %v2755 = vld [vmem:[%s2597 + $0x138] sm:%s2590]
                %2756 = vst [vmem:[%s2598 + $0x270] sm:%s2590] %v2755
                %v2757 = vld [vmem:[%s2597 + $0x13c] sm:%s2590]
                %2758 = vst [vmem:[%s2598 + $0x278] sm:%s2590] %v2757
                %v2759 = vld [vmem:[%s2597 + $0x140] sm:%s2590]
                %2760 = vst [vmem:[%s2598 + $0x280] sm:%s2590] %v2759
                %v2761 = vld [vmem:[%s2597 + $0x144] sm:%s2590]
                %2762 = vst [vmem:[%s2598 + $0x288] sm:%s2590] %v2761
                %v2763 = vld [vmem:[%s2597 + $0x148] sm:%s2590]
                %2764 = vst [vmem:[%s2598 + $0x290] sm:%s2590] %v2763
                %v2765 = vld [vmem:[%s2597 + $0x14c] sm:%s2590]
                %2766 = vst [vmem:[%s2598 + $0x298] sm:%s2590] %v2765
                %v2767 = vld [vmem:[%s2597 + $0x150] sm:%s2590]
                %2768 = vst [vmem:[%s2598 + $0x2a0] sm:%s2590] %v2767
                %v2769 = vld [vmem:[%s2597 + $0x154] sm:%s2590]
                %2770 = vst [vmem:[%s2598 + $0x2a8] sm:%s2590] %v2769
                %v2771 = vld [vmem:[%s2597 + $0x158] sm:%s2590]
                %2772 = vst [vmem:[%s2598 + $0x2b0] sm:%s2590] %v2771
                %v2773 = vld [vmem:[%s2597 + $0x15c] sm:%s2590]
                %2774 = vst [vmem:[%s2598 + $0x2b8] sm:%s2590] %v2773
                %v2775 = vld [vmem:[%s2597 + $0x160] sm:%s2590]
                %2776 = vst [vmem:[%s2598 + $0x2c0] sm:%s2590] %v2775
                %v2777 = vld [vmem:[%s2597 + $0x164] sm:%s2590]
                %2778 = vst [vmem:[%s2598 + $0x2c8] sm:%s2590] %v2777
                %v2779 = vld [vmem:[%s2597 + $0x168] sm:%s2590]
                %2780 = vst [vmem:[%s2598 + $0x2d0] sm:%s2590] %v2779
                %v2781 = vld [vmem:[%s2597 + $0x16c] sm:%s2590]
                %2782 = vst [vmem:[%s2598 + $0x2d8] sm:%s2590] %v2781
                %v2783 = vld [vmem:[%s2597 + $0x170] sm:%s2590]
                %2784 = vst [vmem:[%s2598 + $0x2e0] sm:%s2590] %v2783
                %v2785 = vld [vmem:[%s2597 + $0x174] sm:%s2590]
                %2786 = vst [vmem:[%s2598 + $0x2e8] sm:%s2590] %v2785
                %v2787 = vld [vmem:[%s2597 + $0x178] sm:%s2590]
                %2788 = vst [vmem:[%s2598 + $0x2f0] sm:%s2590] %v2787
                %v2789 = vld [vmem:[%s2597 + $0x17c] sm:%s2590]
                %2790 = vst [vmem:[%s2598 + $0x2f8] sm:%s2590] %v2789
                %v2791 = vld [vmem:[%s2597 + $0x180] sm:%s2590]
                %2792 = vst [vmem:[%s2598 + $0x300] sm:%s2590] %v2791
                %v2793 = vld [vmem:[%s2597 + $0x184] sm:%s2590]
                %2794 = vst [vmem:[%s2598 + $0x308] sm:%s2590] %v2793
                %v2795 = vld [vmem:[%s2597 + $0x188] sm:%s2590]
                %2796 = vst [vmem:[%s2598 + $0x310] sm:%s2590] %v2795
                %v2797 = vld [vmem:[%s2597 + $0x18c] sm:%s2590]
                %2798 = vst [vmem:[%s2598 + $0x318] sm:%s2590] %v2797
                %v2799 = vld [vmem:[%s2597 + $0x190] sm:%s2590]
                %2800 = vst [vmem:[%s2598 + $0x320] sm:%s2590] %v2799
                %v2801 = vld [vmem:[%s2597 + $0x194] sm:%s2590]
                %2802 = vst [vmem:[%s2598 + $0x328] sm:%s2590] %v2801
                %v2803 = vld [vmem:[%s2597 + $0x198] sm:%s2590]
                %2804 = vst [vmem:[%s2598 + $0x330] sm:%s2590] %v2803
                %v2805 = vld [vmem:[%s2597 + $0x19c] sm:%s2590]
                %2806 = vst [vmem:[%s2598 + $0x338] sm:%s2590] %v2805
                %v2807 = vld [vmem:[%s2597 + $0x1a0] sm:%s2590]
                %2808 = vst [vmem:[%s2598 + $0x340] sm:%s2590] %v2807
                %v2809 = vld [vmem:[%s2597 + $0x1a4] sm:%s2590]
                %2810 = vst [vmem:[%s2598 + $0x348] sm:%s2590] %v2809
                %v2811 = vld [vmem:[%s2597 + $0x1a8] sm:%s2590]
                %2812 = vst [vmem:[%s2598 + $0x350] sm:%s2590] %v2811
                %v2813 = vld [vmem:[%s2597 + $0x1ac] sm:%s2590]
                %2814 = vst [vmem:[%s2598 + $0x358] sm:%s2590] %v2813
                %v2815 = vld [vmem:[%s2597 + $0x1b0] sm:%s2590]
                %2816 = vst [vmem:[%s2598 + $0x360] sm:%s2590] %v2815
                %v2817 = vld [vmem:[%s2597 + $0x1b4] sm:%s2590]
                %2818 = vst [vmem:[%s2598 + $0x368] sm:%s2590] %v2817
                %v2819 = vld [vmem:[%s2597 + $0x1b8] sm:%s2590]
                %2820 = vst [vmem:[%s2598 + $0x370] sm:%s2590] %v2819
                %v2821 = vld [vmem:[%s2597 + $0x1bc] sm:%s2590]
                %2822 = vst [vmem:[%s2598 + $0x378] sm:%s2590] %v2821
                %v2823 = vld [vmem:[%s2597 + $0x1c0] sm:%s2590]
                %2824 = vst [vmem:[%s2598 + $0x380] sm:%s2590] %v2823
                %v2825 = vld [vmem:[%s2597 + $0x1c4] sm:%s2590]
                %2826 = vst [vmem:[%s2598 + $0x388] sm:%s2590] %v2825
                %v2827 = vld [vmem:[%s2597 + $0x1c8] sm:%s2590]
                %2828 = vst [vmem:[%s2598 + $0x390] sm:%s2590] %v2827
                %v2829 = vld [vmem:[%s2597 + $0x1cc] sm:%s2590]
                %2830 = vst [vmem:[%s2598 + $0x398] sm:%s2590] %v2829
                %v2831 = vld [vmem:[%s2597 + $0x1d0] sm:%s2590]
                %2832 = vst [vmem:[%s2598 + $0x3a0] sm:%s2590] %v2831
                %v2833 = vld [vmem:[%s2597 + $0x1d4] sm:%s2590]
                %2834 = vst [vmem:[%s2598 + $0x3a8] sm:%s2590] %v2833
                %v2835 = vld [vmem:[%s2597 + $0x1d8] sm:%s2590]
                %2836 = vst [vmem:[%s2598 + $0x3b0] sm:%s2590] %v2835
                %v2837 = vld [vmem:[%s2597 + $0x1dc] sm:%s2590]
                %2838 = vst [vmem:[%s2598 + $0x3b8] sm:%s2590] %v2837
                %v2839 = vld [vmem:[%s2597 + $0x1e0] sm:%s2590]
                %2840 = vst [vmem:[%s2598 + $0x3c0] sm:%s2590] %v2839
              $region89: #{reverse} parent=76 // loop_footer
                %s2596 = sadd.s32 1, %s2592
              $region90: #{reverse} parent=76 // loop_footer_branch
                %2591 = sbr.rel target = $region86
              $region91: #{reverse} parent=76 // loop_exit
                _
            $region77: #{reverse} parent=61 // pred_fallthru
              _
          $region62: #{reverse} parent=57 // pred_fallthru
            _
          // Predicated region
          $region63: #{reverse} parent=57 // pred_check
            _
          $region64: #{reverse} parent=57 // pred_check_branch
            %2326 = sbr.rel (0) target = $region66
          $region65: #{reverse} parent=57 // pred_region
            %s2328 = ssub.s32 16, 1
            loop: start=0, step=1, limit=1
            $region67: #{reverse} parent=65 // loop_pre_header
              _
            $region68: #{reverse} parent=65 // loop_header
              %s2330 = sphi 0, %s2334
              %p2331 = scmp.ge.s32.totalorder %s2330, 1
              %s2335 = sphi %s2310, %s2310
              %s2336 = sphi %s2320, %s2320
            $region69: #{reverse} parent=65 // loop_header_branch
              %2333 = sbr.rel (%p2331) target = $region73
            $region70: #{reverse} parent=65 // loop_body
              %v2337 = vld [vmem:[%s2335] sm:%s2328]
              %2338 = vst [vmem:[%s2336] sm:%s2328] %v2337
              %v2339 = vld [vmem:[%s2335 + $0x4] sm:%s2328]
              %2340 = vst [vmem:[%s2336 + $0x8] sm:%s2328] %v2339
              %v2341 = vld [vmem:[%s2335 + $0x8] sm:%s2328]
              %2342 = vst [vmem:[%s2336 + $0x10] sm:%s2328] %v2341
              %v2343 = vld [vmem:[%s2335 + $0xc] sm:%s2328]
              %2344 = vst [vmem:[%s2336 + $0x18] sm:%s2328] %v2343
              %v2345 = vld [vmem:[%s2335 + $0x10] sm:%s2328]
              %2346 = vst [vmem:[%s2336 + $0x20] sm:%s2328] %v2345
              %v2347 = vld [vmem:[%s2335 + $0x14] sm:%s2328]
              %2348 = vst [vmem:[%s2336 + $0x28] sm:%s2328] %v2347
              %v2349 = vld [vmem:[%s2335 + $0x18] sm:%s2328]
              %2350 = vst [vmem:[%s2336 + $0x30] sm:%s2328] %v2349
              %v2351 = vld [vmem:[%s2335 + $0x1c] sm:%s2328]
              %2352 = vst [vmem:[%s2336 + $0x38] sm:%s2328] %v2351
              %v2353 = vld [vmem:[%s2335 + $0x20] sm:%s2328]
              %2354 = vst [vmem:[%s2336 + $0x40] sm:%s2328] %v2353
              %v2355 = vld [vmem:[%s2335 + $0x24] sm:%s2328]
              %2356 = vst [vmem:[%s2336 + $0x48] sm:%s2328] %v2355
              %v2357 = vld [vmem:[%s2335 + $0x28] sm:%s2328]
              %2358 = vst [vmem:[%s2336 + $0x50] sm:%s2328] %v2357
              %v2359 = vld [vmem:[%s2335 + $0x2c] sm:%s2328]
              %2360 = vst [vmem:[%s2336 + $0x58] sm:%s2328] %v2359
              %v2361 = vld [vmem:[%s2335 + $0x30] sm:%s2328]
              %2362 = vst [vmem:[%s2336 + $0x60] sm:%s2328] %v2361
              %v2363 = vld [vmem:[%s2335 + $0x34] sm:%s2328]
              %2364 = vst [vmem:[%s2336 + $0x68] sm:%s2328] %v2363
              %v2365 = vld [vmem:[%s2335 + $0x38] sm:%s2328]
              %2366 = vst [vmem:[%s2336 + $0x70] sm:%s2328] %v2365
              %v2367 = vld [vmem:[%s2335 + $0x3c] sm:%s2328]
              %2368 = vst [vmem:[%s2336 + $0x78] sm:%s2328] %v2367
              %v2369 = vld [vmem:[%s2335 + $0x40] sm:%s2328]
              %2370 = vst [vmem:[%s2336 + $0x80] sm:%s2328] %v2369
              %v2371 = vld [vmem:[%s2335 + $0x44] sm:%s2328]
              %2372 = vst [vmem:[%s2336 + $0x88] sm:%s2328] %v2371
              %v2373 = vld [vmem:[%s2335 + $0x48] sm:%s2328]
              %2374 = vst [vmem:[%s2336 + $0x90] sm:%s2328] %v2373
              %v2375 = vld [vmem:[%s2335 + $0x4c] sm:%s2328]
              %2376 = vst [vmem:[%s2336 + $0x98] sm:%s2328] %v2375
              %v2377 = vld [vmem:[%s2335 + $0x50] sm:%s2328]
              %2378 = vst [vmem:[%s2336 + $0xa0] sm:%s2328] %v2377
              %v2379 = vld [vmem:[%s2335 + $0x54] sm:%s2328]
              %2380 = vst [vmem:[%s2336 + $0xa8] sm:%s2328] %v2379
              %v2381 = vld [vmem:[%s2335 + $0x58] sm:%s2328]
              %2382 = vst [vmem:[%s2336 + $0xb0] sm:%s2328] %v2381
              %v2383 = vld [vmem:[%s2335 + $0x5c] sm:%s2328]
              %2384 = vst [vmem:[%s2336 + $0xb8] sm:%s2328] %v2383
              %v2385 = vld [vmem:[%s2335 + $0x60] sm:%s2328]
              %2386 = vst [vmem:[%s2336 + $0xc0] sm:%s2328] %v2385
              %v2387 = vld [vmem:[%s2335 + $0x64] sm:%s2328]
              %2388 = vst [vmem:[%s2336 + $0xc8] sm:%s2328] %v2387
              %v2389 = vld [vmem:[%s2335 + $0x68] sm:%s2328]
              %2390 = vst [vmem:[%s2336 + $0xd0] sm:%s2328] %v2389
              %v2391 = vld [vmem:[%s2335 + $0x6c] sm:%s2328]
              %2392 = vst [vmem:[%s2336 + $0xd8] sm:%s2328] %v2391
              %v2393 = vld [vmem:[%s2335 + $0x70] sm:%s2328]
              %2394 = vst [vmem:[%s2336 + $0xe0] sm:%s2328] %v2393
              %v2395 = vld [vmem:[%s2335 + $0x74] sm:%s2328]
              %2396 = vst [vmem:[%s2336 + $0xe8] sm:%s2328] %v2395
              %v2397 = vld [vmem:[%s2335 + $0x78] sm:%s2328]
              %2398 = vst [vmem:[%s2336 + $0xf0] sm:%s2328] %v2397
              %v2399 = vld [vmem:[%s2335 + $0x7c] sm:%s2328]
              %2400 = vst [vmem:[%s2336 + $0xf8] sm:%s2328] %v2399
              %v2401 = vld [vmem:[%s2335 + $0x80] sm:%s2328]
              %2402 = vst [vmem:[%s2336 + $0x100] sm:%s2328] %v2401
              %v2403 = vld [vmem:[%s2335 + $0x84] sm:%s2328]
              %2404 = vst [vmem:[%s2336 + $0x108] sm:%s2328] %v2403
              %v2405 = vld [vmem:[%s2335 + $0x88] sm:%s2328]
              %2406 = vst [vmem:[%s2336 + $0x110] sm:%s2328] %v2405
              %v2407 = vld [vmem:[%s2335 + $0x8c] sm:%s2328]
              %2408 = vst [vmem:[%s2336 + $0x118] sm:%s2328] %v2407
              %v2409 = vld [vmem:[%s2335 + $0x90] sm:%s2328]
              %2410 = vst [vmem:[%s2336 + $0x120] sm:%s2328] %v2409
              %v2411 = vld [vmem:[%s2335 + $0x94] sm:%s2328]
              %2412 = vst [vmem:[%s2336 + $0x128] sm:%s2328] %v2411
              %v2413 = vld [vmem:[%s2335 + $0x98] sm:%s2328]
              %2414 = vst [vmem:[%s2336 + $0x130] sm:%s2328] %v2413
              %v2415 = vld [vmem:[%s2335 + $0x9c] sm:%s2328]
              %2416 = vst [vmem:[%s2336 + $0x138] sm:%s2328] %v2415
              %v2417 = vld [vmem:[%s2335 + $0xa0] sm:%s2328]
              %2418 = vst [vmem:[%s2336 + $0x140] sm:%s2328] %v2417
              %v2419 = vld [vmem:[%s2335 + $0xa4] sm:%s2328]
              %2420 = vst [vmem:[%s2336 + $0x148] sm:%s2328] %v2419
              %v2421 = vld [vmem:[%s2335 + $0xa8] sm:%s2328]
              %2422 = vst [vmem:[%s2336 + $0x150] sm:%s2328] %v2421
              %v2423 = vld [vmem:[%s2335 + $0xac] sm:%s2328]
              %2424 = vst [vmem:[%s2336 + $0x158] sm:%s2328] %v2423
              %v2425 = vld [vmem:[%s2335 + $0xb0] sm:%s2328]
              %2426 = vst [vmem:[%s2336 + $0x160] sm:%s2328] %v2425
              %v2427 = vld [vmem:[%s2335 + $0xb4] sm:%s2328]
              %2428 = vst [vmem:[%s2336 + $0x168] sm:%s2328] %v2427
              %v2429 = vld [vmem:[%s2335 + $0xb8] sm:%s2328]
              %2430 = vst [vmem:[%s2336 + $0x170] sm:%s2328] %v2429
              %v2431 = vld [vmem:[%s2335 + $0xbc] sm:%s2328]
              %2432 = vst [vmem:[%s2336 + $0x178] sm:%s2328] %v2431
              %v2433 = vld [vmem:[%s2335 + $0xc0] sm:%s2328]
              %2434 = vst [vmem:[%s2336 + $0x180] sm:%s2328] %v2433
              %v2435 = vld [vmem:[%s2335 + $0xc4] sm:%s2328]
              %2436 = vst [vmem:[%s2336 + $0x188] sm:%s2328] %v2435
              %v2437 = vld [vmem:[%s2335 + $0xc8] sm:%s2328]
              %2438 = vst [vmem:[%s2336 + $0x190] sm:%s2328] %v2437
              %v2439 = vld [vmem:[%s2335 + $0xcc] sm:%s2328]
              %2440 = vst [vmem:[%s2336 + $0x198] sm:%s2328] %v2439
              %v2441 = vld [vmem:[%s2335 + $0xd0] sm:%s2328]
              %2442 = vst [vmem:[%s2336 + $0x1a0] sm:%s2328] %v2441
              %v2443 = vld [vmem:[%s2335 + $0xd4] sm:%s2328]
              %2444 = vst [vmem:[%s2336 + $0x1a8] sm:%s2328] %v2443
              %v2445 = vld [vmem:[%s2335 + $0xd8] sm:%s2328]
              %2446 = vst [vmem:[%s2336 + $0x1b0] sm:%s2328] %v2445
              %v2447 = vld [vmem:[%s2335 + $0xdc] sm:%s2328]
              %2448 = vst [vmem:[%s2336 + $0x1b8] sm:%s2328] %v2447
              %v2449 = vld [vmem:[%s2335 + $0xe0] sm:%s2328]
              %2450 = vst [vmem:[%s2336 + $0x1c0] sm:%s2328] %v2449
              %v2451 = vld [vmem:[%s2335 + $0xe4] sm:%s2328]
              %2452 = vst [vmem:[%s2336 + $0x1c8] sm:%s2328] %v2451
              %v2453 = vld [vmem:[%s2335 + $0xe8] sm:%s2328]
              %2454 = vst [vmem:[%s2336 + $0x1d0] sm:%s2328] %v2453
              %v2455 = vld [vmem:[%s2335 + $0xec] sm:%s2328]
              %2456 = vst [vmem:[%s2336 + $0x1d8] sm:%s2328] %v2455
              %v2457 = vld [vmem:[%s2335 + $0xf0] sm:%s2328]
              %2458 = vst [vmem:[%s2336 + $0x1e0] sm:%s2328] %v2457
              %v2459 = vld [vmem:[%s2335 + $0xf4] sm:%s2328]
              %2460 = vst [vmem:[%s2336 + $0x1e8] sm:%s2328] %v2459
              %v2461 = vld [vmem:[%s2335 + $0xf8] sm:%s2328]
              %2462 = vst [vmem:[%s2336 + $0x1f0] sm:%s2328] %v2461
              %v2463 = vld [vmem:[%s2335 + $0xfc] sm:%s2328]
              %2464 = vst [vmem:[%s2336 + $0x1f8] sm:%s2328] %v2463
              %v2465 = vld [vmem:[%s2335 + $0x100] sm:%s2328]
              %2466 = vst [vmem:[%s2336 + $0x200] sm:%s2328] %v2465
              %v2467 = vld [vmem:[%s2335 + $0x104] sm:%s2328]
              %2468 = vst [vmem:[%s2336 + $0x208] sm:%s2328] %v2467
              %v2469 = vld [vmem:[%s2335 + $0x108] sm:%s2328]
              %2470 = vst [vmem:[%s2336 + $0x210] sm:%s2328] %v2469
              %v2471 = vld [vmem:[%s2335 + $0x10c] sm:%s2328]
              %2472 = vst [vmem:[%s2336 + $0x218] sm:%s2328] %v2471
              %v2473 = vld [vmem:[%s2335 + $0x110] sm:%s2328]
              %2474 = vst [vmem:[%s2336 + $0x220] sm:%s2328] %v2473
              %v2475 = vld [vmem:[%s2335 + $0x114] sm:%s2328]
              %2476 = vst [vmem:[%s2336 + $0x228] sm:%s2328] %v2475
              %v2477 = vld [vmem:[%s2335 + $0x118] sm:%s2328]
              %2478 = vst [vmem:[%s2336 + $0x230] sm:%s2328] %v2477
              %v2479 = vld [vmem:[%s2335 + $0x11c] sm:%s2328]
              %2480 = vst [vmem:[%s2336 + $0x238] sm:%s2328] %v2479
              %v2481 = vld [vmem:[%s2335 + $0x120] sm:%s2328]
              %2482 = vst [vmem:[%s2336 + $0x240] sm:%s2328] %v2481
              %v2483 = vld [vmem:[%s2335 + $0x124] sm:%s2328]
              %2484 = vst [vmem:[%s2336 + $0x248] sm:%s2328] %v2483
              %v2485 = vld [vmem:[%s2335 + $0x128] sm:%s2328]
              %2486 = vst [vmem:[%s2336 + $0x250] sm:%s2328] %v2485
              %v2487 = vld [vmem:[%s2335 + $0x12c] sm:%s2328]
              %2488 = vst [vmem:[%s2336 + $0x258] sm:%s2328] %v2487
              %v2489 = vld [vmem:[%s2335 + $0x130] sm:%s2328]
              %2490 = vst [vmem:[%s2336 + $0x260] sm:%s2328] %v2489
              %v2491 = vld [vmem:[%s2335 + $0x134] sm:%s2328]
              %2492 = vst [vmem:[%s2336 + $0x268] sm:%s2328] %v2491
              %v2493 = vld [vmem:[%s2335 + $0x138] sm:%s2328]
              %2494 = vst [vmem:[%s2336 + $0x270] sm:%s2328] %v2493
              %v2495 = vld [vmem:[%s2335 + $0x13c] sm:%s2328]
              %2496 = vst [vmem:[%s2336 + $0x278] sm:%s2328] %v2495
              %v2497 = vld [vmem:[%s2335 + $0x140] sm:%s2328]
              %2498 = vst [vmem:[%s2336 + $0x280] sm:%s2328] %v2497
              %v2499 = vld [vmem:[%s2335 + $0x144] sm:%s2328]
              %2500 = vst [vmem:[%s2336 + $0x288] sm:%s2328] %v2499
              %v2501 = vld [vmem:[%s2335 + $0x148] sm:%s2328]
              %2502 = vst [vmem:[%s2336 + $0x290] sm:%s2328] %v2501
              %v2503 = vld [vmem:[%s2335 + $0x14c] sm:%s2328]
              %2504 = vst [vmem:[%s2336 + $0x298] sm:%s2328] %v2503
              %v2505 = vld [vmem:[%s2335 + $0x150] sm:%s2328]
              %2506 = vst [vmem:[%s2336 + $0x2a0] sm:%s2328] %v2505
              %v2507 = vld [vmem:[%s2335 + $0x154] sm:%s2328]
              %2508 = vst [vmem:[%s2336 + $0x2a8] sm:%s2328] %v2507
              %v2509 = vld [vmem:[%s2335 + $0x158] sm:%s2328]
              %2510 = vst [vmem:[%s2336 + $0x2b0] sm:%s2328] %v2509
              %v2511 = vld [vmem:[%s2335 + $0x15c] sm:%s2328]
              %2512 = vst [vmem:[%s2336 + $0x2b8] sm:%s2328] %v2511
              %v2513 = vld [vmem:[%s2335 + $0x160] sm:%s2328]
              %2514 = vst [vmem:[%s2336 + $0x2c0] sm:%s2328] %v2513
              %v2515 = vld [vmem:[%s2335 + $0x164] sm:%s2328]
              %2516 = vst [vmem:[%s2336 + $0x2c8] sm:%s2328] %v2515
              %v2517 = vld [vmem:[%s2335 + $0x168] sm:%s2328]
              %2518 = vst [vmem:[%s2336 + $0x2d0] sm:%s2328] %v2517
              %v2519 = vld [vmem:[%s2335 + $0x16c] sm:%s2328]
              %2520 = vst [vmem:[%s2336 + $0x2d8] sm:%s2328] %v2519
              %v2521 = vld [vmem:[%s2335 + $0x170] sm:%s2328]
              %2522 = vst [vmem:[%s2336 + $0x2e0] sm:%s2328] %v2521
              %v2523 = vld [vmem:[%s2335 + $0x174] sm:%s2328]
              %2524 = vst [vmem:[%s2336 + $0x2e8] sm:%s2328] %v2523
              %v2525 = vld [vmem:[%s2335 + $0x178] sm:%s2328]
              %2526 = vst [vmem:[%s2336 + $0x2f0] sm:%s2328] %v2525
              %v2527 = vld [vmem:[%s2335 + $0x17c] sm:%s2328]
              %2528 = vst [vmem:[%s2336 + $0x2f8] sm:%s2328] %v2527
              %v2529 = vld [vmem:[%s2335 + $0x180] sm:%s2328]
              %2530 = vst [vmem:[%s2336 + $0x300] sm:%s2328] %v2529
              %v2531 = vld [vmem:[%s2335 + $0x184] sm:%s2328]
              %2532 = vst [vmem:[%s2336 + $0x308] sm:%s2328] %v2531
              %v2533 = vld [vmem:[%s2335 + $0x188] sm:%s2328]
              %2534 = vst [vmem:[%s2336 + $0x310] sm:%s2328] %v2533
              %v2535 = vld [vmem:[%s2335 + $0x18c] sm:%s2328]
              %2536 = vst [vmem:[%s2336 + $0x318] sm:%s2328] %v2535
              %v2537 = vld [vmem:[%s2335 + $0x190] sm:%s2328]
              %2538 = vst [vmem:[%s2336 + $0x320] sm:%s2328] %v2537
              %v2539 = vld [vmem:[%s2335 + $0x194] sm:%s2328]
              %2540 = vst [vmem:[%s2336 + $0x328] sm:%s2328] %v2539
              %v2541 = vld [vmem:[%s2335 + $0x198] sm:%s2328]
              %2542 = vst [vmem:[%s2336 + $0x330] sm:%s2328] %v2541
              %v2543 = vld [vmem:[%s2335 + $0x19c] sm:%s2328]
              %2544 = vst [vmem:[%s2336 + $0x338] sm:%s2328] %v2543
              %v2545 = vld [vmem:[%s2335 + $0x1a0] sm:%s2328]
              %2546 = vst [vmem:[%s2336 + $0x340] sm:%s2328] %v2545
              %v2547 = vld [vmem:[%s2335 + $0x1a4] sm:%s2328]
              %2548 = vst [vmem:[%s2336 + $0x348] sm:%s2328] %v2547
              %v2549 = vld [vmem:[%s2335 + $0x1a8] sm:%s2328]
              %2550 = vst [vmem:[%s2336 + $0x350] sm:%s2328] %v2549
              %v2551 = vld [vmem:[%s2335 + $0x1ac] sm:%s2328]
              %2552 = vst [vmem:[%s2336 + $0x358] sm:%s2328] %v2551
              %v2553 = vld [vmem:[%s2335 + $0x1b0] sm:%s2328]
              %2554 = vst [vmem:[%s2336 + $0x360] sm:%s2328] %v2553
              %v2555 = vld [vmem:[%s2335 + $0x1b4] sm:%s2328]
              %2556 = vst [vmem:[%s2336 + $0x368] sm:%s2328] %v2555
              %v2557 = vld [vmem:[%s2335 + $0x1b8] sm:%s2328]
              %2558 = vst [vmem:[%s2336 + $0x370] sm:%s2328] %v2557
              %v2559 = vld [vmem:[%s2335 + $0x1bc] sm:%s2328]
              %2560 = vst [vmem:[%s2336 + $0x378] sm:%s2328] %v2559
              %v2561 = vld [vmem:[%s2335 + $0x1c0] sm:%s2328]
              %2562 = vst [vmem:[%s2336 + $0x380] sm:%s2328] %v2561
              %v2563 = vld [vmem:[%s2335 + $0x1c4] sm:%s2328]
              %2564 = vst [vmem:[%s2336 + $0x388] sm:%s2328] %v2563
              %v2565 = vld [vmem:[%s2335 + $0x1c8] sm:%s2328]
              %2566 = vst [vmem:[%s2336 + $0x390] sm:%s2328] %v2565
              %v2567 = vld [vmem:[%s2335 + $0x1cc] sm:%s2328]
              %2568 = vst [vmem:[%s2336 + $0x398] sm:%s2328] %v2567
              %v2569 = vld [vmem:[%s2335 + $0x1d0] sm:%s2328]
              %2570 = vst [vmem:[%s2336 + $0x3a0] sm:%s2328] %v2569
              %v2571 = vld [vmem:[%s2335 + $0x1d4] sm:%s2328]
              %2572 = vst [vmem:[%s2336 + $0x3a8] sm:%s2328] %v2571
              %v2573 = vld [vmem:[%s2335 + $0x1d8] sm:%s2328]
              %2574 = vst [vmem:[%s2336 + $0x3b0] sm:%s2328] %v2573
              %v2575 = vld [vmem:[%s2335 + $0x1dc] sm:%s2328]
              %2576 = vst [vmem:[%s2336 + $0x3b8] sm:%s2328] %v2575
              %v2577 = vld [vmem:[%s2335 + $0x1e0] sm:%s2328]
              %2578 = vst [vmem:[%s2336 + $0x3c0] sm:%s2328] %v2577
            $region71: #{reverse} parent=65 // loop_footer
              %s2334 = sadd.s32 1, %s2330
            $region72: #{reverse} parent=65 // loop_footer_branch
              %2329 = sbr.rel target = $region68
            $region73: #{reverse} parent=65 // loop_exit
              _
          $region66: #{reverse} parent=57 // pred_fallthru
            _
        $region58: #{reverse} parent=53 // pred_fallthru
          _
        %2841 = vnop
      $region54: #{reverse} parent=5 // pred_fallthru
        _
      %p2842 = scmp.le.s32.totalorder 2, %s6
      // Predicated region
      $region92: #{reverse} parent=5 // pred_check
        %p2843 = pneg %p2842
      $region93: #{reverse} parent=5 // pred_check_branch
        %2845 = sbr.rel (%p2843) target = $region95
      $region94: #{reverse} parent=5 // pred_region
        %s2846 = ssub.s32 %s6, 2
        %s2847 = sand.u32 %s12, 1
        %s2848 = sand.u32 %s12, 1
        %s2849 = smul.addr %s2848, 484
        %s2850 = scalar_lea.vmem [#allocation2], %s2849
      $region95: #{reverse} parent=5 // pred_fallthru
        _
    $region6: #{reverse} parent=1 // loop_footer
      %s10 = sadd.s32 1, %s6
    $region7: #{reverse} parent=1 // loop_footer_branch
      %5 = sbr.rel target = $region3
    $region8: #{reverse} parent=1 // loop_exit
      _

// kernel: s1_forward.1
$region0: #{s1_forward.1}
  #allocation0 [shape = 'u32[]', space=smem, size = 0x4, offset = 0x4, fixed_abs, tag = 'smem constant byte address 0x4 - core index']
  #allocation1 [shape = 'u32[144,128]{1,0:T(1,128)}', space=vmem, size = 0x12000, scoped, tag = 'internal scratch']
  %s0 = inlined_call_operand.vmem [shape: bf16[3,24,1024], index: 0, kind: input, shape index: {}]
  %s1 = inlined_call_operand.vmem [shape: bf16[3,8,1024], index: 1, kind: input, shape index: {}]
  %s2 = inlined_call_operand.hbm [shape: f32[24,24], index: 2, kind: output, shape index: {}]
  %s3 = sld [smem:[#allocation0]]
  $region18: #{s1_forward.1} parent=0
    _
  %s5 = ssub.s32 1, %s3
  %s6 = scalar_select 0, %s5, %s3
  $region1: #{s1_forward.1} parent=0
    #allocation2 [shape = 'u8[12288]{0}', space=vmem, size = 0x3000, scoped, tag = 'output window, operand 0, single buffered']
    #allocation3 [shape = 's32[1]{0}', space=sflag, size = 0x4, scoped, tag = 'scoped memory for s1_forward.1']
    %7 = vsyncpa [#allocation3], 0
    // Predicated region
    $region2: #{s1_forward.1} parent=1 // pred_check
      _
    $region3: #{s1_forward.1} parent=1 // pred_check_branch
      %9 = sbr.rel (0) target = $region5
    $region4: #{s1_forward.1} parent=1 // pred_region
      _
    $region5: #{s1_forward.1} parent=1 // pred_fallthru
      _
    // Predicated region
    $region6: #{s1_forward.1} parent=1 // pred_check
      _
    $region7: #{s1_forward.1} parent=1 // pred_check_branch
      %11 = sbr.rel (0) target = $region9
    $region8: #{s1_forward.1} parent=1 // pred_region
      _
    $region9: #{s1_forward.1} parent=1 // pred_fallthru
      _
    %v13 = vld [vmem:[%s0] sm:$0xff]
    %v14 = vld [vmem:[%s0 + $0x8] sm:$0xff]
    %v15 = vld [vmem:[%s0 + $0x10] sm:$0xff]
    %v16 = vld [vmem:[%s0 + $0x18] sm:$0xff]
    %v17 = vld [vmem:[%s0 + $0x20] sm:$0xff]
    %v18 = vld [vmem:[%s0 + $0x28] sm:$0xff]
    %v19 = vld [vmem:[%s0 + $0x30] sm:$0xff]
    %v20 = vld [vmem:[%s0 + $0x38] sm:$0xff]
    %v21 = vld [vmem:[%s0 + $0x40] sm:$0xff]
    %v22 = vld [vmem:[%s0 + $0x48] sm:$0xff]
    %v23 = vld [vmem:[%s0 + $0x50] sm:$0xff]
    %v24 = vld [vmem:[%s0 + $0x58] sm:$0xff]
    %v25 = vld [vmem:[%s0 + $0x60] sm:$0xff]
    %v26 = vld [vmem:[%s0 + $0x68] sm:$0xff]
    %v27 = vld [vmem:[%s0 + $0x70] sm:$0xff]
    %v28 = vld [vmem:[%s0 + $0x78] sm:$0xff]
    %v29 = vld [vmem:[%s0 + $0x80] sm:$0xff]
    %v30 = vld [vmem:[%s0 + $0x88] sm:$0xff]
    %v31 = vld [vmem:[%s0 + $0x90] sm:$0xff]
    %v32 = vld [vmem:[%s0 + $0x98] sm:$0xff]
    %v33 = vld [vmem:[%s0 + $0xa0] sm:$0xff]
    %v34 = vld [vmem:[%s0 + $0xa8] sm:$0xff]
    %v35 = vld [vmem:[%s0 + $0xb0] sm:$0xff]
    %v36 = vld [vmem:[%s0 + $0xb8] sm:$0xff]
    %v37 = vld [vmem:[%s0 + $0xc0] sm:$0xff]
    %v38 = vld [vmem:[%s0 + $0xc8] sm:$0xff]
    %v39 = vld [vmem:[%s0 + $0xd0] sm:$0xff]
    %v40 = vld [vmem:[%s0 + $0xd8] sm:$0xff]
    %v41 = vld [vmem:[%s0 + $0xe0] sm:$0xff]
    %v42 = vld [vmem:[%s0 + $0xe8] sm:$0xff]
    %v43 = vld [vmem:[%s0 + $0xf0] sm:$0xff]
    %v44 = vld [vmem:[%s0 + $0xf8] sm:$0xff]
    %v45 = vld [vmem:[%s0 + $0x100] sm:$0xff]
    %v46 = vld [vmem:[%s0 + $0x108] sm:$0xff]
    %v47 = vld [vmem:[%s0 + $0x110] sm:$0xff]
    %v48 = vld [vmem:[%s0 + $0x118] sm:$0xff]
    %v49 = vmax.bf16 %v13, 0
    %v50 = vmax.bf16 %v14, 0
    %v51 = vmax.bf16 %v15, 0
    %v52 = vmax.bf16 %v16, 0
    %v53 = vmax.bf16 %v17, 0
    %v54 = vmax.bf16 %v18, 0
    %v55 = vmax.bf16 %v19, 0
    %v56 = vmax.bf16 %v20, 0
    %v57 = vmax.bf16 %v21, 0
    %v58 = vmax.bf16 %v22, 0
    %v59 = vmax.bf16 %v23, 0
    %v60 = vmax.bf16 %v24, 0
    %v61 = vmax.bf16 %v25, 0
    %v62 = vmax.bf16 %v26, 0
    %v63 = vmax.bf16 %v27, 0
    %v64 = vmax.bf16 %v28, 0
    %v65 = vmax.bf16 %v29, 0
    %v66 = vmax.bf16 %v30, 0
    %v67 = vmax.bf16 %v31, 0
    %v68 = vmax.bf16 %v32, 0
    %v69 = vmax.bf16 %v33, 0
    %v70 = vmax.bf16 %v34, 0
    %v71 = vmax.bf16 %v35, 0
    %v72 = vmax.bf16 %v36, 0
    %v73 = vmax.bf16 %v37, 0
    %v74 = vmax.bf16 %v38, 0
    %v75 = vmax.bf16 %v39, 0
    %v76 = vmax.bf16 %v40, 0
    %v77 = vmax.bf16 %v41, 0
    %v78 = vmax.bf16 %v42, 0
    %v79 = vmax.bf16 %v43, 0
    %v80 = vmax.bf16 %v44, 0
    %v81 = vmax.bf16 %v45, 0
    %v82 = vmax.bf16 %v46, 0
    %v83 = vmax.bf16 %v47, 0
    %v84 = vmax.bf16 %v48, 0
    %v85 = vld [vmem:[%s1] sm:$0xff]
    %v86 = vld [vmem:[%s1 + $0x8] sm:$0xff]
    %v87 = vld [vmem:[%s1 + $0x10] sm:$0xff]
    %v88 = vld [vmem:[%s1 + $0x18] sm:$0xff]
    %v89 = vld [vmem:[%s1 + $0x20] sm:$0xff]
    %v90 = vld [vmem:[%s1 + $0x28] sm:$0xff]
    %v91 = vld [vmem:[%s1 + $0x30] sm:$0xff]
    %v92 = vld [vmem:[%s1 + $0x38] sm:$0xff]
    %v93 = vld [vmem:[%s1 + $0x40] sm:$0xff]
    %v94 = vld [vmem:[%s1 + $0x48] sm:$0xff]
    %v95 = vld [vmem:[%s1 + $0x50] sm:$0xff]
    %v96 = vld [vmem:[%s1 + $0x58] sm:$0xff]
    %v109 = vunpack.c.l.b16 %v49
    %v110 = vunpack.c.h.b16 %v49
    %v111 = vunpack.c.l.b16 %v50
    %v112 = vunpack.c.h.b16 %v50
    %v113 = vunpack.c.l.b16 %v51
    %v114 = vunpack.c.h.b16 %v51
    %v115 = vunpack.c.l.b16 %v52
    %v116 = vunpack.c.h.b16 %v52
    %v117 = vunpack.c.l.b16 %v53
    %v118 = vunpack.c.h.b16 %v53
    %v119 = vunpack.c.l.b16 %v54
    %v120 = vunpack.c.h.b16 %v54
    %v121 = vunpack.c.l.b16 %v55
    %v122 = vunpack.c.h.b16 %v55
    %v123 = vunpack.c.l.b16 %v56
    %v124 = vunpack.c.h.b16 %v56
    %v125 = vunpack.c.l.b16 %v57
    %v126 = vunpack.c.h.b16 %v57
    %v127 = vunpack.c.l.b16 %v58
    %v128 = vunpack.c.h.b16 %v58
    %v129 = vunpack.c.l.b16 %v59
    %v130 = vunpack.c.h.b16 %v59
    %v131 = vunpack.c.l.b16 %v60
    %v132 = vunpack.c.h.b16 %v60
    %v133 = vpack.c.b16 %v117, %v109
    %v134 = vpack.c.b16 %v118, %v110
    %v135 = vpack.c.b16 %v119, %v111
    %v136 = vpack.c.b16 %v120, %v112
    %v137 = vpack.c.b16 %v121, %v113
    %v138 = vpack.c.b16 %v122, %v114
    %v139 = vpack.c.b16 %v123, %v115
    %v140 = vpack.c.b16 %v124, %v116
    %v141 = vpack.c.b16 %v125, %v125
    %v142 = vpack.c.b16 %v126, %v126
    %v143 = vpack.c.b16 %v127, %v127
    %v144 = vpack.c.b16 %v128, %v128
    %v145 = vpack.c.b16 %v129, %v129
    %v146 = vpack.c.b16 %v130, %v130
    %v147 = vpack.c.b16 %v131, %v131
    %v148 = vpack.c.b16 %v132, %v132
    %v169 = vunpack.c.l.b16 %v85
    %v170 = vunpack.c.h.b16 %v85
    %v171 = vunpack.c.l.b16 %v86
    %v172 = vunpack.c.h.b16 %v86
    %v173 = vunpack.c.l.b16 %v87
    %v174 = vunpack.c.h.b16 %v87
    %v175 = vunpack.c.l.b16 %v88
    %v176 = vunpack.c.h.b16 %v88
    %v177 = vpack.c.b16 %v169, %v169
    %v178 = vpack.c.b16 %v170, %v170
    %v179 = vpack.c.b16 %v171, %v171
    %v180 = vpack.c.b16 %v172, %v172
    %v181 = vpack.c.b16 %v173, %v173
    %v182 = vpack.c.b16 %v174, %v174
    %v183 = vpack.c.b16 %v175, %v175
    %v184 = vpack.c.b16 %v176, %v176
    %193 = vmatprep.subr.bf16.mxu0 0
    %194 = vmatpush1.bf16.xpose.msra.mxu0 0
    %195 = vmatprep.subr.bf16.mxu0 0
    %196 = vmatpush1.bf16.xpose.msra.mxu0 0
    %197 = vmatprep.subr.bf16.mxu0 0
    %198 = vmatpush1.bf16.xpose.msra.mxu0 0
    %199 = vmatprep.subr.bf16.mxu0 0
    %200 = vmatpush1.bf16.xpose.msra.mxu0 0
    %201 = vmatprep.subr.bf16.mxu0 0
    %202 = vmatpush1.bf16.xpose.msra.mxu0 0
    %203 = vmatprep.subr.bf16.mxu0 0
    %204 = vmatpush1.bf16.xpose.msra.mxu0 0
    %205 = vmatprep.subr.bf16.mxu0 0
    %206 = vmatpush1.bf16.xpose.msra.mxu0 0
    %207 = vmatprep.subr.bf16.mxu0 %v178
    %208 = vmatpush1.bf16.xpose.msra.mxu0 %v177
    %209 = vmatprep.subr.bf16.mxu0 0
    %210 = vmatpush2.bf16.xpose.msra.mxu0 0
    %211 = vmatprep.subr.bf16.mxu0 0
    %212 = vmatpush2.bf16.xpose.msra.mxu0 0
    %213 = vmatprep.subr.bf16.mxu0 0
    %214 = vmatpush2.bf16.xpose.msra.mxu0 0
    %215 = vmatprep.subr.bf16.mxu0 0
    %216 = vmatpush2.bf16.xpose.msra.mxu0 0
    %217 = vmatprep.subr.bf16.mxu0 0
    %218 = vmatpush2.bf16.xpose.msra.mxu0 0
    %219 = vmatprep.subr.bf16.mxu0 0
    %220 = vmatpush2.bf16.xpose.msra.mxu0 0
    %221 = vmatprep.subr.bf16.mxu0 0
    %222 = vmatpush2.bf16.xpose.msra.mxu0 0
    %223 = vmatprep.subr.bf16.mxu0 0
    %224 = vmatpush2.bf16.xpose.msra.mxu0 0
    %225 = vmatprep.mubr.bf16.mxu0 %v134
    %226 = vmatmul.mubr.bf16.gmra.mxu0 %v133
    %v227 = vpop.f32.mrf.mxu0
    %v228 = vadd.f32 0.0, %v227
    %v229 = vpop.f32.mrf.mxu0
    %v230 = vpop.f32.mrf.mxu0
    %v231 = vadd.f32 0.0, %v230
    %v232 = vpop.f32.mrf.mxu0
    %233 = vmatprep.mubr.bf16.mxu0 %v142
    %234 = vmatmul.mubr.bf16.gmra.mxu0 %v141
    %v235 = vpop.f32.mrf.mxu0
    %v236 = vadd.f32 0.0, %v235
    %v237 = vpop.f32.mrf.mxu0
    %v238 = vpop.f32.mrf.mxu0
    %v239 = vpop.f32.mrf.mxu0
    %240 = vdwg.mxu0
    %241 = vmatprep.subr.bf16.mxu0 0
    %242 = vmatpush1.bf16.xpose.msra.mxu0 0
    %243 = vmatprep.subr.bf16.mxu0 0
    %244 = vmatpush1.bf16.xpose.msra.mxu0 0
    %245 = vmatprep.subr.bf16.mxu0 0
    %246 = vmatpush1.bf16.xpose.msra.mxu0 0
    %247 = vmatprep.subr.bf16.mxu0 0
    %248 = vmatpush1.bf16.xpose.msra.mxu0 0
    %249 = vmatprep.subr.bf16.mxu0 0
    %250 = vmatpush1.bf16.xpose.msra.mxu0 0
    %251 = vmatprep.subr.bf16.mxu0 0
    %252 = vmatpush1.bf16.xpose.msra.mxu0 0
    %253 = vmatprep.subr.bf16.mxu0 0
    %254 = vmatpush1.bf16.xpose.msra.mxu0 0
    %255 = vmatprep.subr.bf16.mxu0 %v180
    %256 = vmatpush1.bf16.xpose.msra.mxu0 %v179
    %257 = vmatprep.subr.bf16.mxu0 0
    %258 = vmatpush2.bf16.xpose.msra.mxu0 0
    %259 = vmatprep.subr.bf16.mxu0 0
    %260 = vmatpush2.bf16.xpose.msra.mxu0 0
    %261 = vmatprep.subr.bf16.mxu0 0
    %262 = vmatpush2.bf16.xpose.msra.mxu0 0
    %263 = vmatprep.subr.bf16.mxu0 0
    %264 = vmatpush2.bf16.xpose.msra.mxu0 0
    %265 = vmatprep.subr.bf16.mxu0 0
    %266 = vmatpush2.bf16.xpose.msra.mxu0 0
    %267 = vmatprep.subr.bf16.mxu0 0
    %268 = vmatpush2.bf16.xpose.msra.mxu0 0
    %269 = vmatprep.subr.bf16.mxu0 0
    %270 = vmatpush2.bf16.xpose.msra.mxu0 0
    %271 = vmatprep.subr.bf16.mxu0 0
    %272 = vmatpush2.bf16.xpose.msra.mxu0 0
    %273 = vmatprep.mubr.bf16.mxu0 %v136
    %274 = vmatmul.mubr.bf16.gmra.mxu0 %v135
    %v275 = vpop.f32.mrf.mxu0
    %v276 = vadd.f32 %v228, %v275
    %v277 = vpop.f32.mrf.mxu0
    %v278 = vpop.f32.mrf.mxu0
    %v279 = vadd.f32 %v231, %v278
    %v280 = vpop.f32.mrf.mxu0
    %281 = vmatprep.mubr.bf16.mxu0 %v144
    %282 = vmatmul.mubr.bf16.gmra.mxu0 %v143
    %v283 = vpop.f32.mrf.mxu0
    %v284 = vadd.f32 %v236, %v283
    %v285 = vpop.f32.mrf.mxu0
    %v286 = vpop.f32.mrf.mxu0
    %v287 = vpop.f32.mrf.mxu0
    %288 = vdwg.mxu0
    %289 = vmatprep.subr.bf16.mxu0 0
    %290 = vmatpush1.bf16.xpose.msra.mxu0 0
    %291 = vmatprep.subr.bf16.mxu0 0
    %292 = vmatpush1.bf16.xpose.msra.mxu0 0
    %293 = vmatprep.subr.bf16.mxu0 0
    %294 = vmatpush1.bf16.xpose.msra.mxu0 0
    %295 = vmatprep.subr.bf16.mxu0 0
    %296 = vmatpush1.bf16.xpose.msra.mxu0 0
    %297 = vmatprep.subr.bf16.mxu0 0
    %298 = vmatpush1.bf16.xpose.msra.mxu0 0
    %299 = vmatprep.subr.bf16.mxu0 0
    %300 = vmatpush1.bf16.xpose.msra.mxu0 0
    %301 = vmatprep.subr.bf16.mxu0 0
    %302 = vmatpush1.bf16.xpose.msra.mxu0 0
    %303 = vmatprep.subr.bf16.mxu0 %v182
    %304 = vmatpush1.bf16.xpose.msra.mxu0 %v181
    %305 = vmatprep.subr.bf16.mxu0 0
    %306 = vmatpush2.bf16.xpose.msra.mxu0 0
    %307 = vmatprep.subr.bf16.mxu0 0
    %308 = vmatpush2.bf16.xpose.msra.mxu0 0
    %309 = vmatprep.subr.bf16.mxu0 0
    %310 = vmatpush2.bf16.xpose.msra.mxu0 0
    %311 = vmatprep.subr.bf16.mxu0 0
    %312 = vmatpush2.bf16.xpose.msra.mxu0 0
    %313 = vmatprep.subr.bf16.mxu0 0
    %314 = vmatpush2.bf16.xpose.msra.mxu0 0
    %315 = vmatprep.subr.bf16.mxu0 0
    %316 = vmatpush2.bf16.xpose.msra.mxu0 0
    %317 = vmatprep.subr.bf16.mxu0 0
    %318 = vmatpush2.bf16.xpose.msra.mxu0 0
    %319 = vmatprep.subr.bf16.mxu0 0
    %320 = vmatpush2.bf16.xpose.msra.mxu0 0
    %321 = vmatprep.mubr.bf16.mxu0 %v138
    %322 = vmatmul.mubr.bf16.gmra.mxu0 %v137
    %v323 = vpop.f32.mrf.mxu0
    %v324 = vadd.f32 %v276, %v323
    %v325 = vpop.f32.mrf.mxu0
    %v326 = vpop.f32.mrf.mxu0
    %v327 = vadd.f32 %v279, %v326
    %v328 = vpop.f32.mrf.mxu0
    %329 = vmatprep.mubr.bf16.mxu0 %v146
    %330 = vmatmul.mubr.bf16.gmra.mxu0 %v145
    %v331 = vpop.f32.mrf.mxu0
    %v332 = vadd.f32 %v284, %v331
    %v333 = vpop.f32.mrf.mxu0
    %v334 = vpop.f32.mrf.mxu0
    %v335 = vpop.f32.mrf.mxu0
    %336 = vdwg.mxu0
    %337 = vmatprep.subr.bf16.mxu0 0
    %338 = vmatpush1.bf16.xpose.msra.mxu0 0
    %339 = vmatprep.subr.bf16.mxu0 0
    %340 = vmatpush1.bf16.xpose.msra.mxu0 0
    %341 = vmatprep.subr.bf16.mxu0 0
    %342 = vmatpush1.bf16.xpose.msra.mxu0 0
    %343 = vmatprep.subr.bf16.mxu0 0
    %344 = vmatpush1.bf16.xpose.msra.mxu0 0
    %345 = vmatprep.subr.bf16.mxu0 0
    %346 = vmatpush1.bf16.xpose.msra.mxu0 0
    %347 = vmatprep.subr.bf16.mxu0 0
    %348 = vmatpush1.bf16.xpose.msra.mxu0 0
    %349 = vmatprep.subr.bf16.mxu0 0
    %350 = vmatpush1.bf16.xpose.msra.mxu0 0
    %351 = vmatprep.subr.bf16.mxu0 %v184
    %352 = vmatpush1.bf16.xpose.msra.mxu0 %v183
    %353 = vmatprep.subr.bf16.mxu0 0
    %354 = vmatpush2.bf16.xpose.msra.mxu0 0
    %355 = vmatprep.subr.bf16.mxu0 0
    %356 = vmatpush2.bf16.xpose.msra.mxu0 0
    %357 = vmatprep.subr.bf16.mxu0 0
    %358 = vmatpush2.bf16.xpose.msra.mxu0 0
    %359 = vmatprep.subr.bf16.mxu0 0
    %360 = vmatpush2.bf16.xpose.msra.mxu0 0
    %361 = vmatprep.subr.bf16.mxu0 0
    %362 = vmatpush2.bf16.xpose.msra.mxu0 0
    %363 = vmatprep.subr.bf16.mxu0 0
    %364 = vmatpush2.bf16.xpose.msra.mxu0 0
    %365 = vmatprep.subr.bf16.mxu0 0
    %366 = vmatpush2.bf16.xpose.msra.mxu0 0
    %367 = vmatprep.subr.bf16.mxu0 0
    %368 = vmatpush2.bf16.xpose.msra.mxu0 0
    %369 = vmatprep.mubr.bf16.mxu0 %v140
    %370 = vmatmul.mubr.bf16.gmra.mxu0 %v139
    %v371 = vpop.f32.mrf.mxu0
    %v372 = vadd.f32 %v324, %v371
    %v373 = vpop.f32.mrf.mxu0
    %v374 = vpop.f32.mrf.mxu0
    %v375 = vadd.f32 %v327, %v374
    %v376 = vpop.f32.mrf.mxu0
    %377 = vmatprep.mubr.bf16.mxu0 %v148
    %378 = vmatmul.mubr.bf16.gmra.mxu0 %v147
    %v379 = vpop.f32.mrf.mxu0
    %v380 = vadd.f32 %v332, %v379
    %v381 = vpop.f32.mrf.mxu0
    %v382 = vpop.f32.mrf.mxu0
    %v383 = vpop.f32.mrf.mxu0
    %384 = vdwg.mxu0
    %v397 = vunpack.c.l.b16 %v61
    %v398 = vunpack.c.h.b16 %v61
    %v399 = vunpack.c.l.b16 %v62
    %v400 = vunpack.c.h.b16 %v62
    %v401 = vunpack.c.l.b16 %v63
    %v402 = vunpack.c.h.b16 %v63
    %v403 = vunpack.c.l.b16 %v64
    %v404 = vunpack.c.h.b16 %v64
    %v405 = vunpack.c.l.b16 %v65
    %v406 = vunpack.c.h.b16 %v65
    %v407 = vunpack.c.l.b16 %v66
    %v408 = vunpack.c.h.b16 %v66
    %v409 = vunpack.c.l.b16 %v67
    %v410 = vunpack.c.h.b16 %v67
    %v411 = vunpack.c.l.b16 %v68
    %v412 = vunpack.c.h.b16 %v68
    %v413 = vunpack.c.l.b16 %v69
    %v414 = vunpack.c.h.b16 %v69
    %v415 = vunpack.c.l.b16 %v70
    %v416 = vunpack.c.h.b16 %v70
    %v417 = vunpack.c.l.b16 %v71
    %v418 = vunpack.c.h.b16 %v71
    %v419 = vunpack.c.l.b16 %v72
    %v420 = vunpack.c.h.b16 %v72
    %v421 = vpack.c.b16 %v405, %v397
    %v422 = vpack.c.b16 %v406, %v398
    %v423 = vpack.c.b16 %v407, %v399
    %v424 = vpack.c.b16 %v408, %v400
    %v425 = vpack.c.b16 %v409, %v401
    %v426 = vpack.c.b16 %v410, %v402
    %v427 = vpack.c.b16 %v411, %v403
    %v428 = vpack.c.b16 %v412, %v404
    %v429 = vpack.c.b16 %v413, %v413
    %v430 = vpack.c.b16 %v414, %v414
    %v431 = vpack.c.b16 %v415, %v415
    %v432 = vpack.c.b16 %v416, %v416
    %v433 = vpack.c.b16 %v417, %v417
    %v434 = vpack.c.b16 %v418, %v418
    %v435 = vpack.c.b16 %v419, %v419
    %v436 = vpack.c.b16 %v420, %v420
    %v457 = vunpack.c.l.b16 %v89
    %v458 = vunpack.c.h.b16 %v89
    %v459 = vunpack.c.l.b16 %v90
    %v460 = vunpack.c.h.b16 %v90
    %v461 = vunpack.c.l.b16 %v91
    %v462 = vunpack.c.h.b16 %v91
    %v463 = vunpack.c.l.b16 %v92
    %v464 = vunpack.c.h.b16 %v92
    %v465 = vpack.c.b16 %v457, %v457
    %v466 = vpack.c.b16 %v458, %v458
    %v467 = vpack.c.b16 %v459, %v459
    %v468 = vpack.c.b16 %v460, %v460
    %v469 = vpack.c.b16 %v461, %v461
    %v470 = vpack.c.b16 %v462, %v462
    %v471 = vpack.c.b16 %v463, %v463
    %v472 = vpack.c.b16 %v464, %v464
    %481 = vmatprep.subr.bf16.mxu0 0
    %482 = vmatpush1.bf16.xpose.msra.mxu0 0
    %483 = vmatprep.subr.bf16.mxu0 0
    %484 = vmatpush1.bf16.xpose.msra.mxu0 0
    %485 = vmatprep.subr.bf16.mxu0 0
    %486 = vmatpush1.bf16.xpose.msra.mxu0 0
    %487 = vmatprep.subr.bf16.mxu0 0
    %488 = vmatpush1.bf16.xpose.msra.mxu0 0
    %489 = vmatprep.subr.bf16.mxu0 0
    %490 = vmatpush1.bf16.xpose.msra.mxu0 0
    %491 = vmatprep.subr.bf16.mxu0 0
    %492 = vmatpush1.bf16.xpose.msra.mxu0 0
    %493 = vmatprep.subr.bf16.mxu0 0
    %494 = vmatpush1.bf16.xpose.msra.mxu0 0
    %495 = vmatprep.subr.bf16.mxu0 %v466
    %496 = vmatpush1.bf16.xpose.msra.mxu0 %v465
    %497 = vmatprep.subr.bf16.mxu0 0
    %498 = vmatpush2.bf16.xpose.msra.mxu0 0
    %499 = vmatprep.subr.bf16.mxu0 0
    %500 = vmatpush2.bf16.xpose.msra.mxu0 0
    %501 = vmatprep.subr.bf16.mxu0 0
    %502 = vmatpush2.bf16.xpose.msra.mxu0 0
    %503 = vmatprep.subr.bf16.mxu0 0
    %504 = vmatpush2.bf16.xpose.msra.mxu0 0
    %505 = vmatprep.subr.bf16.mxu0 0
    %506 = vmatpush2.bf16.xpose.msra.mxu0 0
    %507 = vmatprep.subr.bf16.mxu0 0
    %508 = vmatpush2.bf16.xpose.msra.mxu0 0
    %509 = vmatprep.subr.bf16.mxu0 0
    %510 = vmatpush2.bf16.xpose.msra.mxu0 0
    %511 = vmatprep.subr.bf16.mxu0 0
    %512 = vmatpush2.bf16.xpose.msra.mxu0 0
    %513 = vmatprep.mubr.bf16.mxu0 %v422
    %514 = vmatmul.mubr.bf16.gmra.mxu0 %v421
    %v515 = vpop.f32.mrf.mxu0
    %v516 = vadd.f32 0.0, %v515
    %v517 = vpop.f32.mrf.mxu0
    %v518 = vpop.f32.mrf.mxu0
    %v519 = vadd.f32 0.0, %v518
    %v520 = vpop.f32.mrf.mxu0
    %521 = vmatprep.mubr.bf16.mxu0 %v430
    %522 = vmatmul.mubr.bf16.gmra.mxu0 %v429
    %v523 = vpop.f32.mrf.mxu0
    %v524 = vadd.f32 0.0, %v523
    %v525 = vpop.f32.mrf.mxu0
    %v526 = vpop.f32.mrf.mxu0
    %v527 = vpop.f32.mrf.mxu0
    %528 = vdwg.mxu0
    %529 = vmatprep.subr.bf16.mxu0 0
    %530 = vmatpush1.bf16.xpose.msra.mxu0 0
    %531 = vmatprep.subr.bf16.mxu0 0
    %532 = vmatpush1.bf16.xpose.msra.mxu0 0
    %533 = vmatprep.subr.bf16.mxu0 0
    %534 = vmatpush1.bf16.xpose.msra.mxu0 0
    %535 = vmatprep.subr.bf16.mxu0 0
    %536 = vmatpush1.bf16.xpose.msra.mxu0 0
    %537 = vmatprep.subr.bf16.mxu0 0
    %538 = vmatpush1.bf16.xpose.msra.mxu0 0
    %539 = vmatprep.subr.bf16.mxu0 0
    %540 = vmatpush1.bf16.xpose.msra.mxu0 0
    %541 = vmatprep.subr.bf16.mxu0 0
    %542 = vmatpush1.bf16.xpose.msra.mxu0 0
    %543 = vmatprep.subr.bf16.mxu0 %v468
    %544 = vmatpush1.bf16.xpose.msra.mxu0 %v467
    %545 = vmatprep.subr.bf16.mxu0 0
    %546 = vmatpush2.bf16.xpose.msra.mxu0 0
    %547 = vmatprep.subr.bf16.mxu0 0
    %548 = vmatpush2.bf16.xpose.msra.mxu0 0
    %549 = vmatprep.subr.bf16.mxu0 0
    %550 = vmatpush2.bf16.xpose.msra.mxu0 0
    %551 = vmatprep.subr.bf16.mxu0 0
    %552 = vmatpush2.bf16.xpose.msra.mxu0 0
    %553 = vmatprep.subr.bf16.mxu0 0
    %554 = vmatpush2.bf16.xpose.msra.mxu0 0
    %555 = vmatprep.subr.bf16.mxu0 0
    %556 = vmatpush2.bf16.xpose.msra.mxu0 0
    %557 = vmatprep.subr.bf16.mxu0 0
    %558 = vmatpush2.bf16.xpose.msra.mxu0 0
    %559 = vmatprep.subr.bf16.mxu0 0
    %560 = vmatpush2.bf16.xpose.msra.mxu0 0
    %561 = vmatprep.mubr.bf16.mxu0 %v424
    %562 = vmatmul.mubr.bf16.gmra.mxu0 %v423
    %v563 = vpop.f32.mrf.mxu0
    %v564 = vadd.f32 %v516, %v563
    %v565 = vpop.f32.mrf.mxu0
    %v566 = vpop.f32.mrf.mxu0
    %v567 = vadd.f32 %v519, %v566
    %v568 = vpop.f32.mrf.mxu0
    %569 = vmatprep.mubr.bf16.mxu0 %v432
    %570 = vmatmul.mubr.bf16.gmra.mxu0 %v431
    %v571 = vpop.f32.mrf.mxu0
    %v572 = vadd.f32 %v524, %v571
    %v573 = vpop.f32.mrf.mxu0
    %v574 = vpop.f32.mrf.mxu0
    %v575 = vpop.f32.mrf.mxu0
    %576 = vdwg.mxu0
    %577 = vmatprep.subr.bf16.mxu0 0
    %578 = vmatpush1.bf16.xpose.msra.mxu0 0
    %579 = vmatprep.subr.bf16.mxu0 0
    %580 = vmatpush1.bf16.xpose.msra.mxu0 0
    %581 = vmatprep.subr.bf16.mxu0 0
    %582 = vmatpush1.bf16.xpose.msra.mxu0 0
    %583 = vmatprep.subr.bf16.mxu0 0
    %584 = vmatpush1.bf16.xpose.msra.mxu0 0
    %585 = vmatprep.subr.bf16.mxu0 0
    %586 = vmatpush1.bf16.xpose.msra.mxu0 0
    %587 = vmatprep.subr.bf16.mxu0 0
    %588 = vmatpush1.bf16.xpose.msra.mxu0 0
    %589 = vmatprep.subr.bf16.mxu0 0
    %590 = vmatpush1.bf16.xpose.msra.mxu0 0
    %591 = vmatprep.subr.bf16.mxu0 %v470
    %592 = vmatpush1.bf16.xpose.msra.mxu0 %v469
    %593 = vmatprep.subr.bf16.mxu0 0
    %594 = vmatpush2.bf16.xpose.msra.mxu0 0
    %595 = vmatprep.subr.bf16.mxu0 0
    %596 = vmatpush2.bf16.xpose.msra.mxu0 0
    %597 = vmatprep.subr.bf16.mxu0 0
    %598 = vmatpush2.bf16.xpose.msra.mxu0 0
    %599 = vmatprep.subr.bf16.mxu0 0
    %600 = vmatpush2.bf16.xpose.msra.mxu0 0
    %601 = vmatprep.subr.bf16.mxu0 0
    %602 = vmatpush2.bf16.xpose.msra.mxu0 0
    %603 = vmatprep.subr.bf16.mxu0 0
    %604 = vmatpush2.bf16.xpose.msra.mxu0 0
    %605 = vmatprep.subr.bf16.mxu0 0
    %606 = vmatpush2.bf16.xpose.msra.mxu0 0
    %607 = vmatprep.subr.bf16.mxu0 0
    %608 = vmatpush2.bf16.xpose.msra.mxu0 0
    %609 = vmatprep.mubr.bf16.mxu0 %v426
    %610 = vmatmul.mubr.bf16.gmra.mxu0 %v425
    %v611 = vpop.f32.mrf.mxu0
    %v612 = vadd.f32 %v564, %v611
    %v613 = vpop.f32.mrf.mxu0
    %v614 = vpop.f32.mrf.mxu0
    %v615 = vadd.f32 %v567, %v614
    %v616 = vpop.f32.mrf.mxu0
    %617 = vmatprep.mubr.bf16.mxu0 %v434
    %618 = vmatmul.mubr.bf16.gmra.mxu0 %v433
    %v619 = vpop.f32.mrf.mxu0
    %v620 = vadd.f32 %v572, %v619
    %v621 = vpop.f32.mrf.mxu0
    %v622 = vpop.f32.mrf.mxu0
    %v623 = vpop.f32.mrf.mxu0
    %624 = vdwg.mxu0
    %625 = vmatprep.subr.bf16.mxu0 0
    %626 = vmatpush1.bf16.xpose.msra.mxu0 0
    %627 = vmatprep.subr.bf16.mxu0 0
    %628 = vmatpush1.bf16.xpose.msra.mxu0 0
    %629 = vmatprep.subr.bf16.mxu0 0
    %630 = vmatpush1.bf16.xpose.msra.mxu0 0
    %631 = vmatprep.subr.bf16.mxu0 0
    %632 = vmatpush1.bf16.xpose.msra.mxu0 0
    %633 = vmatprep.subr.bf16.mxu0 0
    %634 = vmatpush1.bf16.xpose.msra.mxu0 0
    %635 = vmatprep.subr.bf16.mxu0 0
    %636 = vmatpush1.bf16.xpose.msra.mxu0 0
    %637 = vmatprep.subr.bf16.mxu0 0
    %638 = vmatpush1.bf16.xpose.msra.mxu0 0
    %639 = vmatprep.subr.bf16.mxu0 %v472
    %640 = vmatpush1.bf16.xpose.msra.mxu0 %v471
    %641 = vmatprep.subr.bf16.mxu0 0
    %642 = vmatpush2.bf16.xpose.msra.mxu0 0
    %643 = vmatprep.subr.bf16.mxu0 0
    %644 = vmatpush2.bf16.xpose.msra.mxu0 0
    %645 = vmatprep.subr.bf16.mxu0 0
    %646 = vmatpush2.bf16.xpose.msra.mxu0 0
    %647 = vmatprep.subr.bf16.mxu0 0
    %648 = vmatpush2.bf16.xpose.msra.mxu0 0
    %649 = vmatprep.subr.bf16.mxu0 0
    %650 = vmatpush2.bf16.xpose.msra.mxu0 0
    %651 = vmatprep.subr.bf16.mxu0 0
    %652 = vmatpush2.bf16.xpose.msra.mxu0 0
    %653 = vmatprep.subr.bf16.mxu0 0
    %654 = vmatpush2.bf16.xpose.msra.mxu0 0
    %655 = vmatprep.subr.bf16.mxu0 0
    %656 = vmatpush2.bf16.xpose.msra.mxu0 0
    %657 = vmatprep.mubr.bf16.mxu0 %v428
    %658 = vmatmul.mubr.bf16.gmra.mxu0 %v427
    %v659 = vpop.f32.mrf.mxu0
    %v660 = vadd.f32 %v612, %v659
    %v661 = vpop.f32.mrf.mxu0
    %v662 = vpop.f32.mrf.mxu0
    %v663 = vadd.f32 %v615, %v662
    %v664 = vpop.f32.mrf.mxu0
    %665 = vmatprep.mubr.bf16.mxu0 %v436
    %666 = vmatmul.mubr.bf16.gmra.mxu0 %v435
    %v667 = vpop.f32.mrf.mxu0
    %v668 = vadd.f32 %v620, %v667
    %v669 = vpop.f32.mrf.mxu0
    %v670 = vpop.f32.mrf.mxu0
    %v671 = vpop.f32.mrf.mxu0
    %672 = vdwg.mxu0
    %v685 = vunpack.c.l.b16 %v73
    %v686 = vunpack.c.h.b16 %v73
    %v687 = vunpack.c.l.b16 %v74
    %v688 = vunpack.c.h.b16 %v74
    %v689 = vunpack.c.l.b16 %v75
    %v690 = vunpack.c.h.b16 %v75
    %v691 = vunpack.c.l.b16 %v76
    %v692 = vunpack.c.h.b16 %v76
    %v693 = vunpack.c.l.b16 %v77
    %v694 = vunpack.c.h.b16 %v77
    %v695 = vunpack.c.l.b16 %v78
    %v696 = vunpack.c.h.b16 %v78
    %v697 = vunpack.c.l.b16 %v79
    %v698 = vunpack.c.h.b16 %v79
    %v699 = vunpack.c.l.b16 %v80
    %v700 = vunpack.c.h.b16 %v80
    %v701 = vunpack.c.l.b16 %v81
    %v702 = vunpack.c.h.b16 %v81
    %v703 = vunpack.c.l.b16 %v82
    %v704 = vunpack.c.h.b16 %v82
    %v705 = vunpack.c.l.b16 %v83
    %v706 = vunpack.c.h.b16 %v83
    %v707 = vunpack.c.l.b16 %v84
    %v708 = vunpack.c.h.b16 %v84
    %v709 = vpack.c.b16 %v693, %v685
    %v710 = vpack.c.b16 %v694, %v686
    %v711 = vpack.c.b16 %v695, %v687
    %v712 = vpack.c.b16 %v696, %v688
    %v713 = vpack.c.b16 %v697, %v689
    %v714 = vpack.c.b16 %v698, %v690
    %v715 = vpack.c.b16 %v699, %v691
    %v716 = vpack.c.b16 %v700, %v692
    %v717 = vpack.c.b16 %v701, %v701
    %v718 = vpack.c.b16 %v702, %v702
    %v719 = vpack.c.b16 %v703, %v703
    %v720 = vpack.c.b16 %v704, %v704
    %v721 = vpack.c.b16 %v705, %v705
    %v722 = vpack.c.b16 %v706, %v706
    %v723 = vpack.c.b16 %v707, %v707
    %v724 = vpack.c.b16 %v708, %v708
    %v745 = vunpack.c.l.b16 %v93
    %v746 = vunpack.c.h.b16 %v93
    %v747 = vunpack.c.l.b16 %v94
    %v748 = vunpack.c.h.b16 %v94
    %v749 = vunpack.c.l.b16 %v95
    %v750 = vunpack.c.h.b16 %v95
    %v751 = vunpack.c.l.b16 %v96
    %v752 = vunpack.c.h.b16 %v96
    %v753 = vpack.c.b16 %v745, %v745
    %v754 = vpack.c.b16 %v746, %v746
    %v755 = vpack.c.b16 %v747, %v747
    %v756 = vpack.c.b16 %v748, %v748
    %v757 = vpack.c.b16 %v749, %v749
    %v758 = vpack.c.b16 %v750, %v750
    %v759 = vpack.c.b16 %v751, %v751
    %v760 = vpack.c.b16 %v752, %v752
    %769 = vmatprep.subr.bf16.mxu0 0
    %770 = vmatpush1.bf16.xpose.msra.mxu0 0
    %771 = vmatprep.subr.bf16.mxu0 0
    %772 = vmatpush1.bf16.xpose.msra.mxu0 0
    %773 = vmatprep.subr.bf16.mxu0 0
    %774 = vmatpush1.bf16.xpose.msra.mxu0 0
    %775 = vmatprep.subr.bf16.mxu0 0
    %776 = vmatpush1.bf16.xpose.msra.mxu0 0
    %777 = vmatprep.subr.bf16.mxu0 0
    %778 = vmatpush1.bf16.xpose.msra.mxu0 0
    %779 = vmatprep.subr.bf16.mxu0 0
    %780 = vmatpush1.bf16.xpose.msra.mxu0 0
    %781 = vmatprep.subr.bf16.mxu0 0
    %782 = vmatpush1.bf16.xpose.msra.mxu0 0
    %783 = vmatprep.subr.bf16.mxu0 %v754
    %784 = vmatpush1.bf16.xpose.msra.mxu0 %v753
    %785 = vmatprep.subr.bf16.mxu0 0
    %786 = vmatpush2.bf16.xpose.msra.mxu0 0
    %787 = vmatprep.subr.bf16.mxu0 0
    %788 = vmatpush2.bf16.xpose.msra.mxu0 0
    %789 = vmatprep.subr.bf16.mxu0 0
    %790 = vmatpush2.bf16.xpose.msra.mxu0 0
    %791 = vmatprep.subr.bf16.mxu0 0
    %792 = vmatpush2.bf16.xpose.msra.mxu0 0
    %793 = vmatprep.subr.bf16.mxu0 0
    %794 = vmatpush2.bf16.xpose.msra.mxu0 0
    %795 = vmatprep.subr.bf16.mxu0 0
    %796 = vmatpush2.bf16.xpose.msra.mxu0 0
    %797 = vmatprep.subr.bf16.mxu0 0
    %798 = vmatpush2.bf16.xpose.msra.mxu0 0
    %799 = vmatprep.subr.bf16.mxu0 0
    %800 = vmatpush2.bf16.xpose.msra.mxu0 0
    %801 = vmatprep.mubr.bf16.mxu0 %v710
    %802 = vmatmul.mubr.bf16.gmra.mxu0 %v709
    %v803 = vpop.f32.mrf.mxu0
    %v804 = vadd.f32 0.0, %v803
    %v805 = vpop.f32.mrf.mxu0
    %v806 = vpop.f32.mrf.mxu0
    %v807 = vadd.f32 0.0, %v806
    %v808 = vpop.f32.mrf.mxu0
    %809 = vmatprep.mubr.bf16.mxu0 %v718
    %810 = vmatmul.mubr.bf16.gmra.mxu0 %v717
    %v811 = vpop.f32.mrf.mxu0
    %v812 = vadd.f32 0.0, %v811
    %v813 = vpop.f32.mrf.mxu0
    %v814 = vpop.f32.mrf.mxu0
    %v815 = vpop.f32.mrf.mxu0
    %816 = vdwg.mxu0
    %817 = vmatprep.subr.bf16.mxu0 0
    %818 = vmatpush1.bf16.xpose.msra.mxu0 0
    %819 = vmatprep.subr.bf16.mxu0 0
    %820 = vmatpush1.bf16.xpose.msra.mxu0 0
    %821 = vmatprep.subr.bf16.mxu0 0
    %822 = vmatpush1.bf16.xpose.msra.mxu0 0
    %823 = vmatprep.subr.bf16.mxu0 0
    %824 = vmatpush1.bf16.xpose.msra.mxu0 0
    %825 = vmatprep.subr.bf16.mxu0 0
    %826 = vmatpush1.bf16.xpose.msra.mxu0 0
    %827 = vmatprep.subr.bf16.mxu0 0
    %828 = vmatpush1.bf16.xpose.msra.mxu0 0
    %829 = vmatprep.subr.bf16.mxu0 0
    %830 = vmatpush1.bf16.xpose.msra.mxu0 0
    %831 = vmatprep.subr.bf16.mxu0 %v756
    %832 = vmatpush1.bf16.xpose.msra.mxu0 %v755
    %833 = vmatprep.subr.bf16.mxu0 0
    %834 = vmatpush2.bf16.xpose.msra.mxu0 0
    %835 = vmatprep.subr.bf16.mxu0 0
    %836 = vmatpush2.bf16.xpose.msra.mxu0 0
    %837 = vmatprep.subr.bf16.mxu0 0
    %838 = vmatpush2.bf16.xpose.msra.mxu0 0
    %839 = vmatprep.subr.bf16.mxu0 0
    %840 = vmatpush2.bf16.xpose.msra.mxu0 0
    %841 = vmatprep.subr.bf16.mxu0 0
    %842 = vmatpush2.bf16.xpose.msra.mxu0 0
    %843 = vmatprep.subr.bf16.mxu0 0
    %844 = vmatpush2.bf16.xpose.msra.mxu0 0
    %845 = vmatprep.subr.bf16.mxu0 0
    %846 = vmatpush2.bf16.xpose.msra.mxu0 0
    %847 = vmatprep.subr.bf16.mxu0 0
    %848 = vmatpush2.bf16.xpose.msra.mxu0 0
    %849 = vmatprep.mubr.bf16.mxu0 %v712
    %850 = vmatmul.mubr.bf16.gmra.mxu0 %v711
    %v851 = vpop.f32.mrf.mxu0
    %v852 = vadd.f32 %v804, %v851
    %v853 = vpop.f32.mrf.mxu0
    %v854 = vpop.f32.mrf.mxu0
    %v855 = vadd.f32 %v807, %v854
    %v856 = vpop.f32.mrf.mxu0
    %857 = vmatprep.mubr.bf16.mxu0 %v720
    %858 = vmatmul.mubr.bf16.gmra.mxu0 %v719
    %v859 = vpop.f32.mrf.mxu0
    %v860 = vadd.f32 %v812, %v859
    %v861 = vpop.f32.mrf.mxu0
    %v862 = vpop.f32.mrf.mxu0
    %v863 = vpop.f32.mrf.mxu0
    %864 = vdwg.mxu0
    %865 = vmatprep.subr.bf16.mxu0 0
    %866 = vmatpush1.bf16.xpose.msra.mxu0 0
    %867 = vmatprep.subr.bf16.mxu0 0
    %868 = vmatpush1.bf16.xpose.msra.mxu0 0
    %869 = vmatprep.subr.bf16.mxu0 0
    %870 = vmatpush1.bf16.xpose.msra.mxu0 0
    %871 = vmatprep.subr.bf16.mxu0 0
    %872 = vmatpush1.bf16.xpose.msra.mxu0 0
    %873 = vmatprep.subr.bf16.mxu0 0
    %874 = vmatpush1.bf16.xpose.msra.mxu0 0
    %875 = vmatprep.subr.bf16.mxu0 0
    %876 = vmatpush1.bf16.xpose.msra.mxu0 0
    %877 = vmatprep.subr.bf16.mxu0 0
    %878 = vmatpush1.bf16.xpose.msra.mxu0 0
    %879 = vmatprep.subr.bf16.mxu0 %v758
    %880 = vmatpush1.bf16.xpose.msra.mxu0 %v757
    %881 = vmatprep.subr.bf16.mxu0 0
    %882 = vmatpush2.bf16.xpose.msra.mxu0 0
    %883 = vmatprep.subr.bf16.mxu0 0
    %884 = vmatpush2.bf16.xpose.msra.mxu0 0
    %885 = vmatprep.subr.bf16.mxu0 0
    %886 = vmatpush2.bf16.xpose.msra.mxu0 0
    %887 = vmatprep.subr.bf16.mxu0 0
    %888 = vmatpush2.bf16.xpose.msra.mxu0 0
    %889 = vmatprep.subr.bf16.mxu0 0
    %890 = vmatpush2.bf16.xpose.msra.mxu0 0
    %891 = vmatprep.subr.bf16.mxu0 0
    %892 = vmatpush2.bf16.xpose.msra.mxu0 0
    %893 = vmatprep.subr.bf16.mxu0 0
    %894 = vmatpush2.bf16.xpose.msra.mxu0 0
    %895 = vmatprep.subr.bf16.mxu0 0
    %896 = vmatpush2.bf16.xpose.msra.mxu0 0
    %897 = vmatprep.mubr.bf16.mxu0 %v714
    %898 = vmatmul.mubr.bf16.gmra.mxu0 %v713
    %v899 = vpop.f32.mrf.mxu0
    %v900 = vadd.f32 %v852, %v899
    %v901 = vpop.f32.mrf.mxu0
    %v902 = vpop.f32.mrf.mxu0
    %v903 = vadd.f32 %v855, %v902
    %v904 = vpop.f32.mrf.mxu0
    %905 = vmatprep.mubr.bf16.mxu0 %v722
    %906 = vmatmul.mubr.bf16.gmra.mxu0 %v721
    %v907 = vpop.f32.mrf.mxu0
    %v908 = vadd.f32 %v860, %v907
    %v909 = vpop.f32.mrf.mxu0
    %v910 = vpop.f32.mrf.mxu0
    %v911 = vpop.f32.mrf.mxu0
    %912 = vdwg.mxu0
    %913 = vmatprep.subr.bf16.mxu0 0
    %914 = vmatpush1.bf16.xpose.msra.mxu0 0
    %915 = vmatprep.subr.bf16.mxu0 0
    %916 = vmatpush1.bf16.xpose.msra.mxu0 0
    %917 = vmatprep.subr.bf16.mxu0 0
    %918 = vmatpush1.bf16.xpose.msra.mxu0 0
    %919 = vmatprep.subr.bf16.mxu0 0
    %920 = vmatpush1.bf16.xpose.msra.mxu0 0
    %921 = vmatprep.subr.bf16.mxu0 0
    %922 = vmatpush1.bf16.xpose.msra.mxu0 0
    %923 = vmatprep.subr.bf16.mxu0 0
    %924 = vmatpush1.bf16.xpose.msra.mxu0 0
    %925 = vmatprep.subr.bf16.mxu0 0
    %926 = vmatpush1.bf16.xpose.msra.mxu0 0
    %927 = vmatprep.subr.bf16.mxu0 %v760
    %928 = vmatpush1.bf16.xpose.msra.mxu0 %v759
    %929 = vmatprep.subr.bf16.mxu0 0
    %930 = vmatpush2.bf16.xpose.msra.mxu0 0
    %931 = vmatprep.subr.bf16.mxu0 0
    %932 = vmatpush2.bf16.xpose.msra.mxu0 0
    %933 = vmatprep.subr.bf16.mxu0 0
    %934 = vmatpush2.bf16.xpose.msra.mxu0 0
    %935 = vmatprep.subr.bf16.mxu0 0
    %936 = vmatpush2.bf16.xpose.msra.mxu0 0
    %937 = vmatprep.subr.bf16.mxu0 0
    %938 = vmatpush2.bf16.xpose.msra.mxu0 0
    %939 = vmatprep.subr.bf16.mxu0 0
    %940 = vmatpush2.bf16.xpose.msra.mxu0 0
    %941 = vmatprep.subr.bf16.mxu0 0
    %942 = vmatpush2.bf16.xpose.msra.mxu0 0
    %943 = vmatprep.subr.bf16.mxu0 0
    %944 = vmatpush2.bf16.xpose.msra.mxu0 0
    %945 = vmatprep.mubr.bf16.mxu0 %v716
    %946 = vmatmul.mubr.bf16.gmra.mxu0 %v715
    %v947 = vpop.f32.mrf.mxu0
    %v948 = vadd.f32 %v900, %v947
    %v949 = vpop.f32.mrf.mxu0
    %v950 = vpop.f32.mrf.mxu0
    %v951 = vadd.f32 %v903, %v950
    %v952 = vpop.f32.mrf.mxu0
    %953 = vmatprep.mubr.bf16.mxu0 %v724
    %954 = vmatmul.mubr.bf16.gmra.mxu0 %v723
    %v955 = vpop.f32.mrf.mxu0
    %v956 = vadd.f32 %v908, %v955
    %v957 = vpop.f32.mrf.mxu0
    %v958 = vpop.f32.mrf.mxu0
    %v959 = vpop.f32.mrf.mxu0
    %960 = vdwg.mxu0
    %v961 = vmax.f32 %v372, 0.0
    %v962 = vmax.f32 %v375, 0.0
    %v963 = vmax.f32 %v380, 0.0
    %v964 = vmax.f32 %v660, 0.0
    %v965 = vmax.f32 %v663, 0.0
    %v966 = vmax.f32 %v668, 0.0
    %v967 = vmax.f32 %v948, 0.0
    %v968 = vmax.f32 %v951, 0.0
    %v969 = vmax.f32 %v956, 0.0
    %vm970 = vcmask 64512
    %v971 = vsel %vm970, %v961, 0.0
    %v972 = vsel %vm970, %v962, 0.0
    %v973 = vadd.f32 %v971, %v972
    %v974 = vsel %vm970, %v963, 0.0
    %v975 = vadd.f32 %v973, %v974
    %v976 = vrot.slane %v975, 4
    %v977 = vadd.f32 %v975, %v976
    %v978 = vrot.slane %v977, 2
    %v979 = vadd.f32 %v977, %v978
    %v980 = vrot.slane %v979, 1
    %v981 = vadd.f32 %v979, %v980
    %v982 = vsel %vm970, %v964, 0.0
    %v983 = vsel %vm970, %v965, 0.0
    %v984 = vadd.f32 %v982, %v983
    %v985 = vsel %vm970, %v966, 0.0
    %v986 = vadd.f32 %v984, %v985
    %v987 = vrot.slane %v986, 4
    %v988 = vadd.f32 %v986, %v987
    %v989 = vrot.slane %v988, 2
    %v990 = vadd.f32 %v988, %v989
    %v991 = vrot.slane %v990, 1
    %v992 = vadd.f32 %v990, %v991
    %v993 = vsel %vm970, %v967, 0.0
    %v994 = vsel %vm970, %v968, 0.0
    %v995 = vadd.f32 %v993, %v994
    %v996 = vsel %vm970, %v969, 0.0
    %v997 = vadd.f32 %v995, %v996
    %v998 = vrot.slane %v997, 4
    %v999 = vadd.f32 %v997, %v998
    %v1000 = vrot.slane %v999, 2
    %v1001 = vadd.f32 %v999, %v1000
    %v1002 = vrot.slane %v1001, 1
    %v1003 = vadd.f32 %v1001, %v1002
    %v1004 = vmul.f32 %v961, %v961
    %v1005 = vmul.f32 %v962, %v962
    %v1006 = vmul.f32 %v963, %v963
    %v1007 = vmul.f32 %v964, %v964
    %v1008 = vmul.f32 %v965, %v965
    %v1009 = vmul.f32 %v966, %v966
    %v1010 = vmul.f32 %v967, %v967
    %v1011 = vmul.f32 %v968, %v968
    %v1012 = vmul.f32 %v969, %v969
    %v1013 = vsel %vm970, %v1004, 0.0
    %v1014 = vsel %vm970, %v1005, 0.0
    %v1015 = vadd.f32 %v1013, %v1014
    %v1016 = vsel %vm970, %v1006, 0.0
    %v1017 = vadd.f32 %v1015, %v1016
    %v1018 = vrot.slane %v1017, 4
    %v1019 = vadd.f32 %v1017, %v1018
    %v1020 = vrot.slane %v1019, 2
    %v1021 = vadd.f32 %v1019, %v1020
    %v1022 = vrot.slane %v1021, 1
    %v1023 = vadd.f32 %v1021, %v1022
    %v1024 = vsel %vm970, %v1007, 0.0
    %v1025 = vsel %vm970, %v1008, 0.0
    %v1026 = vadd.f32 %v1024, %v1025
    %v1027 = vsel %vm970, %v1009, 0.0
    %v1028 = vadd.f32 %v1026, %v1027
    %v1029 = vrot.slane %v1028, 4
    %v1030 = vadd.f32 %v1028, %v1029
    %v1031 = vrot.slane %v1030, 2
    %v1032 = vadd.f32 %v1030, %v1031
    %v1033 = vrot.slane %v1032, 1
    %v1034 = vadd.f32 %v1032, %v1033
    %v1035 = vsel %vm970, %v1010, 0.0
    %v1036 = vsel %vm970, %v1011, 0.0
    %v1037 = vadd.f32 %v1035, %v1036
    %v1038 = vsel %vm970, %v1012, 0.0
    %v1039 = vadd.f32 %v1037, %v1038
    %v1040 = vrot.slane %v1039, 4
    %v1041 = vadd.f32 %v1039, %v1040
    %v1042 = vrot.slane %v1041, 2
    %v1043 = vadd.f32 %v1041, %v1042
    %v1044 = vrot.slane %v1043, 1
    %v1045 = vadd.f32 %v1043, %v1044
    %v1046 = vmul.f32 %v981, 0.041666668
    %v1047 = vmul.f32 %v992, 0.041666668
    %v1048 = vmul.f32 %v1003, 0.041666668
    %v1049 = vmul.f32 %v1023, 0.041666668
    %v1050 = vmul.f32 %v1034, 0.041666668
    %v1051 = vmul.f32 %v1045, 0.041666668
    %v1052 = vmul.f32 %v1046, %v1046
    %v1053 = vmul.f32 %v1047, %v1047
    %v1054 = vmul.f32 %v1048, %v1048
    %v1055 = vsub.f32 %v1049, %v1052
    %v1056 = vsub.f32 %v1050, %v1053
    %v1057 = vsub.f32 %v1051, %v1054
    %v1058 = vsub.f32 %v961, %v1046
    %v1059 = vsub.f32 %v962, %v1046
    %v1060 = vsub.f32 %v963, %v1046
    %v1061 = vsub.f32 %v964, %v1047
    %v1062 = vsub.f32 %v965, %v1047
    %v1063 = vsub.f32 %v966, %v1047
    %v1064 = vsub.f32 %v967, %v1048
    %v1065 = vsub.f32 %v968, %v1048
    %v1066 = vsub.f32 %v969, %v1048
    %v1067 = vadd.f32 %v1055, 0.01
    %v1068 = vadd.f32 %v1056, 0.01
    %v1069 = vadd.f32 %v1057, 0.01
    %v1070 = vrsqrt.pop %v1067
    %v1071 = vrsqrt.pop %v1068
    %v1072 = vrsqrt.pop %v1069
    %v1073 = vmul.f32 %v1058, %v1070
    %v1074 = vmul.f32 %v1059, %v1070
    %v1075 = vmul.f32 %v1060, %v1070
    %v1076 = vmul.f32 %v1061, %v1071
    %v1077 = vmul.f32 %v1062, %v1071
    %v1078 = vmul.f32 %v1063, %v1071
    %v1079 = vmul.f32 %v1064, %v1072
    %v1080 = vmul.f32 %v1065, %v1072
    %v1081 = vmul.f32 %v1066, %v1072
    %1085 = vrot.lane.b32.xlu0 %v1076, 8
    %v1086 = vpop.permute.xlu0 %1085
    %1087 = vrot.lane.b32.xlu0 %v1077, 8
    %v1088 = vpop.permute.xlu0 %1087
    %1089 = vrot.lane.b32.xlu0 %v1078, 8
    %v1090 = vpop.permute.xlu0 %1089
    %1097 = vrot.lane.b32.xlu0 %v1079, 16
    %v1098 = vpop.permute.xlu0 %1097
    %1099 = vrot.lane.b32.xlu0 %v1080, 16
    %v1100 = vpop.permute.xlu0 %1099
    %1101 = vrot.lane.b32.xlu0 %v1081, 16
    %v1102 = vpop.permute.xlu0 %1101
    %v1106 = vsel %vm970, %v1073, %v1086
    %v1107 = vsel %vm970, %v1074, %v1088
    %v1108 = vsel %vm970, %v1075, %v1090
    %vm1109 = vcmask 130048
    %v1110 = vsel %vm1109, %v1106, %v1098
    %v1111 = vsel %vm1109, %v1107, %v1100
    %v1112 = vsel %vm1109, %v1108, %v1102
    %vm1113 = vcmask 195584
    %1114 = vst.msk [vmem:[#allocation2] sm:$0xff] %vm1113, %v1110
    %1115 = vst.msk [vmem:[#allocation2 + $0x8] sm:$0xff] %vm1113, %v1111
    %1116 = vst.msk [vmem:[#allocation2 + $0x10] sm:$0xff] %vm1113, %v1112
    // Predicated region
    $region10: #{s1_forward.1} parent=1 // pred_check
      _
    $region11: #{s1_forward.1} parent=1 // pred_check_branch
      %1118 = sbr.rel (0) target = $region13
    $region12: #{s1_forward.1} parent=1 // pred_region
      %s1120 = ssub.s32 384, 384
      %1121 = vsyncadd [#allocation3], %s1120
      %s1122 = sshll.u32 [#allocation2], 4
      %s1123 = int_to_ptr.vmem [resolvable:$true] %s1122
      %1128 = dma.vmem_to_hbm [thread:$0]  %s1123, 384, %s2, [#allocation3], 128, 128, 8
    $region13: #{s1_forward.1} parent=1 // pred_fallthru
      _
    // Predicated region
    $region14: #{s1_forward.1} parent=1 // pred_check
      _
    $region15: #{s1_forward.1} parent=1 // pred_check_branch
      %1130 = sbr.rel (0) target = $region17
    $region16: #{s1_forward.1} parent=1 // pred_region
      %1131 = dma.done [#allocation3], 384
    $region17: #{s1_forward.1} parent=1 // pred_fallthru
      _
    %1132 = vsyncpa [#allocation3], 1

</llo_original>
